<compile_context>
chip_gen: v7x
topology: tpu7x:2x2x1
jax: 0.10.0
libtpu: 0.0.40
codegen_flags: <defaults>
</compile_context>

<pallas_src>
import functools

import jax
import jax.numpy as jnp
from jax.experimental import pallas as pl
from jax.experimental.pallas import tpu as pltpu


# ----------------------------------------------------------------------------
# Fused whole-network kernel: one grid step = one image of the batch.
# ----------------------------------------------------------------------------
def _srnet_kernel(x_ref, wh_ref, bh_ref, wb_ref, bb_ref, wu_ref, bu_ref,
                  o_ref, pad_ref, *, H, W, F, num_blocks, c_up):
    """SRNet forward for one image, activations resident in VMEM."""

    def conv3x3(w2d, b2d):
        # im2col: concat the 9 shifted views -> (H*W, 9*F); one MXU matmul.
        xp = pad_ref[...]                                     # (H+2, W+2, F)
        views = [xp[ky:ky + H, kx:kx + W, :].reshape(H * W, F)
                 for ky in range(3) for kx in range(3)]
        slab = jnp.concatenate(views, axis=-1)                # (H*W, 9F)
        return jnp.dot(slab, w2d,
                       preferred_element_type=jnp.float32) + b2d

    def set_interior(val2d, cout):
        pad_ref[1:H + 1, 1:W + 1, :] = val2d.reshape(H, W, cout)

    # Zero the padded buffer once; the 1-px border stays zero for every layer
    # because only the interior is ever rewritten.
    pad_ref[...] = jnp.zeros_like(pad_ref)
    pad_ref[1:H + 1, 1:W + 1, :] = x_ref[0]                   # (H, W, F)

    # head conv (no ReLU) -> residual branch
    res = conv3x3(wh_ref[...], bh_ref[...])                   # (H*W, F) f32
    set_interior(res, F)

    # body: [conv + ReLU] * num_blocks (static unroll; num_blocks is small)
    out = res
    for l in range(num_blocks):
        out = jnp.maximum(conv3x3(wb_ref[l], bb_ref[l]), 0.0)
        set_interior(out, F)

    # residual add fused in-kernel, then upsample conv
    set_interior(res + out, F)
    up = conv3x3(wu_ref[...], bu_ref[...])                    # (H*W, c_up)
    o_ref[0] = up.reshape(H, W, c_up).astype(o_ref.dtype)


# ----------------------------------------------------------------------------
# Parameter init (deterministic, synthetic), PixelShuffle glue, forward.
# ----------------------------------------------------------------------------
def _conv_params(k, cin, cout):
    kw, kb = jax.random.split(k)
    scale = 1.0 / jnp.sqrt(cin * 9.0)
    w = jax.random.uniform(kw, (3, 3, cin, cout), jnp.float32, -scale, scale)
    b = jax.random.uniform(kb, (cout,), jnp.float32, -scale, scale)
    return w, b


def init_srnet_params(key, num_channels, num_feats, num_blocks, upscale):
    keys = jax.random.split(key, num_blocks + 2)
    return {
        "head": _conv_params(keys[0], num_channels, num_feats),
        "body": [_conv_params(keys[1 + i], num_feats, num_feats)
                 for i in range(num_blocks)],
        "up": _conv_params(keys[-1], num_feats, 3 * upscale ** 2),
    }


def pixel_shuffle_nhwc(x_nhwc, r):
    # channel index follows PyTorch convention c*r*r + i*r + j
    N, H, W, Crr = x_nhwc.shape
    C = Crr // (r * r)
    x = x_nhwc.reshape(N, H, W, C, r, r)
    x = jnp.transpose(x, (0, 1, 4, 2, 5, 3))        # (N, H, r, W, r, C)
    return x.reshape(N, H * r, W * r, C)


def srnet_forward(params, x_nchw, upscale):
    N, Cin, H, W = x_nchw.shape
    F = params["head"][0].shape[-1]
    num_blocks = len(params["body"])
    c_up = params["up"][0].shape[-1]
    assert Cin <= F, "head input channels must not exceed num_feats"

    # NCHW -> NHWC; zero-pad input channels to F (head weights padded to match)
    x = jnp.transpose(x_nchw, (0, 2, 3, 1))
    if Cin < F:
        x = jnp.pad(x, ((0, 0), (0, 0), (0, 0), (0, F - Cin)))

    # weights: HWIO -> fused-tap (9*F, Cout) matrices (row = (ky*3+kx)*F + cin)
    wh, bh = params["head"]
    if Cin < F:
        wh = jnp.pad(wh, ((0, 0), (0, 0), (0, F - Cin), (0, 0)))
    wh = wh.reshape(9 * F, F)
    bh = bh.reshape(1, F)

    if num_blocks > 0:
        wb = jnp.stack([w.reshape(9 * F, F) for (w, _) in params["body"]])
        bb = jnp.stack([b.reshape(1, F) for (_, b) in params["body"]])
    else:  # dummy, never read (static body loop has zero trips)
        wb = jnp.zeros((1, 9 * F, F), jnp.float32)
        bb = jnp.zeros((1, 1, F), jnp.float32)
    L = wb.shape[0]

    wu, bu = params["up"]
    wu = wu.reshape(9 * F, c_up)
    bu = bu.reshape(1, c_up)

    kernel = functools.partial(_srnet_kernel, H=H, W=W, F=F,
                               num_blocks=num_blocks, c_up=c_up)

    up = pl.pallas_call(
        kernel,
        out_shape=jax.ShapeDtypeStruct((N, H, W, c_up), jnp.float32),
        grid_spec=pltpu.PrefetchScalarGridSpec(
            num_scalar_prefetch=0,
            grid=(N,),
            in_specs=[
                pl.BlockSpec((1, H, W, F), lambda n: (n, 0, 0, 0)),
                pl.BlockSpec((9 * F, F), lambda n: (0, 0)),
                pl.BlockSpec((1, F), lambda n: (0, 0)),
                pl.BlockSpec((L, 9 * F, F), lambda n: (0, 0, 0)),
                pl.BlockSpec((L, 1, F), lambda n: (0, 0, 0)),
                pl.BlockSpec((9 * F, c_up), lambda n: (0, 0)),
                pl.BlockSpec((1, c_up), lambda n: (0, 0)),
            ],
            out_specs=pl.BlockSpec((1, H, W, c_up), lambda n: (n, 0, 0, 0)),
            scratch_shapes=[pltpu.VMEM((H + 2, W + 2, F), jnp.float32)],
        ),
        compiler_params=pltpu.CompilerParams(
            dimension_semantics=("parallel",)),
    )(x, wh, bh, wb, bb, wu, bu)

    # TODO(synk): PixelShuffle + final NCHW transpose kept as thin JAX glue on
    # the tiny (N, H, W, 3*r*r) output; a spatial row-tile grid (with multi-layer
    # halo) and bf16 matmul inputs would be the next steps for large images.
    up = pixel_shuffle_nhwc(up, upscale)
    return jnp.transpose(up, (0, 3, 1, 2))


# ----------------------------------------------------------------------------
# Pure-JAX reference (lax.conv) for a correctness sanity check.
# ----------------------------------------------------------------------------
def _ref_conv(x_nhwc, w_hwio, b, relu):
    y = jax.lax.conv_general_dilated(
        x_nhwc, w_hwio, window_strides=(1, 1), padding="SAME",
        dimension_numbers=("NHWC", "HWIO", "NHWC"))
    y = y + b
    return jnp.maximum(y, 0.0) if relu else y


def srnet_reference(params, x_nchw, upscale):
    x = jnp.transpose(x_nchw, (0, 2, 3, 1))
    w, b = params["head"]
    res = _ref_conv(x, w, b, False)
    out = res
    for (w, b) in params["body"]:
        out = _ref_conv(out, w, b, True)
    w, b = params["up"]
    up = _ref_conv(res + out, w, b, False)
    up = pixel_shuffle_nhwc(up, upscale)
    return jnp.transpose(up, (0, 3, 1, 2))


if __name__ == "__main__":
    num_channels, num_feats, num_blocks, upscale = 3, 16, 2, 2
    N, H, W = 2, 16, 16

    key = jax.random.PRNGKey(0)
    kp, kx = jax.random.split(key)
    params = init_srnet_params(kp, num_channels, num_feats, num_blocks, upscale)
    x = jax.random.normal(kx, (N, num_channels, H, W), jnp.float32)

    fwd = jax.jit(functools.partial(srnet_forward, upscale=upscale))
    out = jax.block_until_ready(fwd(params, x))
    assert out.shape == (N, 3, H * upscale, W * upscale), out.shape

    ref = jax.block_until_ready(srnet_reference(params, x, upscale))
    assert jnp.allclose(out, ref, atol=1e-3, rtol=1e-3), \
        float(jnp.max(jnp.abs(out - ref)))

    print("KERNEL_OK")
</pallas_src>

<mosaic_0001>
module attributes {stable_mosaic.version = 11 : i64} {
  func.func @_srnet_kernel(%arg0: i32, %arg1: memref<1x16x16x16xf32, #tpu.memory_space<vmem>>, %arg2: memref<144x16xf32, #tpu.memory_space<vmem>>, %arg3: memref<1x16xf32, #tpu.memory_space<vmem>>, %arg4: memref<2x144x16xf32, #tpu.memory_space<vmem>>, %arg5: memref<2x1x16xf32, #tpu.memory_space<vmem>>, %arg6: memref<144x12xf32, #tpu.memory_space<vmem>>, %arg7: memref<1x12xf32, #tpu.memory_space<vmem>>, %arg8: memref<1x16x16x12xf32, #tpu.memory_space<vmem>>, %arg9: memref<18x18x16xf32, #tpu.memory_space<vmem>>) attributes {dimension_semantics = [#tpu.dimension_semantics<parallel>], iteration_bounds = array<i64: 2>, scalar_prefetch = 0 : i64, scratch_operands = 1 : i64, tpu.core_type = #tpu.core_type<tc>, window_params = [{transform_indices = @transform_0, window_bounds = array<i64: 1, 16, 16, 16>}, {pipeline_mode = #tpu.pipeline_mode<synchronous>, transform_indices = @transform_1, window_bounds = array<i64: 144, 16>}, {pipeline_mode = #tpu.pipeline_mode<synchronous>, transform_indices = @transform_2, window_bounds = array<i64: 1, 16>}, {pipeline_mode = #tpu.pipeline_mode<synchronous>, transform_indices = @transform_3, window_bounds = array<i64: 2, 144, 16>}, {pipeline_mode = #tpu.pipeline_mode<synchronous>, transform_indices = @transform_4, window_bounds = array<i64: 2, 1, 16>}, {pipeline_mode = #tpu.pipeline_mode<synchronous>, transform_indices = @transform_5, window_bounds = array<i64: 144, 12>}, {pipeline_mode = #tpu.pipeline_mode<synchronous>, transform_indices = @transform_6, window_bounds = array<i64: 1, 12>}, {transform_indices = @transform_7, window_bounds = array<i64: 1, 16, 16, 12>}]} {
    %cst = arith.constant 0.000000e+00 : f32
    %0 = vector.broadcast %cst : f32 to vector<18x18x16xf32>
    %c0 = arith.constant 0 : index
    %c0_0 = arith.constant 0 : index
    %c0_1 = arith.constant 0 : index
    %1 = vector.load %arg9[%c0, %c0_0, %c0_1] : memref<18x18x16xf32, #tpu.memory_space<vmem>>, vector<18x18x16xf32>
    tpu.vector_store %arg9[%c0, %c0_0, %c0_1], %0 {strides = array<i32>} : memref<18x18x16xf32, #tpu.memory_space<vmem>>, vector<18x18x16xf32>,
    %c0_2 = arith.constant 0 : index
    %c0_3 = arith.constant 0 : index
    %c0_4 = arith.constant 0 : index
    %c0_5 = arith.constant 0 : index
    %2 = vector.load %arg1[%c0_2, %c0_3, %c0_4, %c0_5] : memref<1x16x16x16xf32, #tpu.memory_space<vmem>>, vector<1x16x16x16xf32>
    %3 = vector.shape_cast %2 : vector<1x16x16x16xf32> to vector<16x16x16xf32>
    %c1 = arith.constant 1 : index
    %c1_6 = arith.constant 1 : index
    %c0_7 = arith.constant 0 : index
    %4 = vector.load %arg9[%c1, %c1_6, %c0_7] : memref<18x18x16xf32, #tpu.memory_space<vmem>>, vector<16x16x16xf32>
    tpu.vector_store %arg9[%c1, %c1_6, %c0_7], %3 {strides = array<i32>} : memref<18x18x16xf32, #tpu.memory_space<vmem>>, vector<16x16x16xf32>,
    %c0_8 = arith.constant 0 : index
    %c0_9 = arith.constant 0 : index
    %5 = vector.load %arg2[%c0_8, %c0_9] : memref<144x16xf32, #tpu.memory_space<vmem>>, vector<144x16xf32>
    %c0_10 = arith.constant 0 : index
    %c0_11 = arith.constant 0 : index
    %6 = vector.load %arg3[%c0_10, %c0_11] : memref<1x16xf32, #tpu.memory_space<vmem>>, vector<1x16xf32>
    %c0_12 = arith.constant 0 : index
    %c0_13 = arith.constant 0 : index
    %c0_14 = arith.constant 0 : index
    %7 = vector.load %arg9[%c0_12, %c0_13, %c0_14] : memref<18x18x16xf32, #tpu.memory_space<vmem>>, vector<18x18x16xf32>
    %8 = vector.extract_strided_slice %7 {offsets = [0, 0, 0], sizes = [16, 16, 16], strides = [1, 1, 1]} : vector<18x18x16xf32> to vector<16x16x16xf32>
    %9 = vector.shape_cast %8 : vector<16x16x16xf32> to vector<256x16xf32>
    %10 = vector.extract_strided_slice %7 {offsets = [0, 1, 0], sizes = [16, 16, 16], strides = [1, 1, 1]} : vector<18x18x16xf32> to vector<16x16x16xf32>
    %11 = vector.shape_cast %10 : vector<16x16x16xf32> to vector<256x16xf32>
    %12 = vector.extract_strided_slice %7 {offsets = [0, 2, 0], sizes = [16, 16, 16], strides = [1, 1, 1]} : vector<18x18x16xf32> to vector<16x16x16xf32>
    %13 = vector.shape_cast %12 : vector<16x16x16xf32> to vector<256x16xf32>
    %14 = vector.extract_strided_slice %7 {offsets = [1, 0, 0], sizes = [16, 16, 16], strides = [1, 1, 1]} : vector<18x18x16xf32> to vector<16x16x16xf32>
    %15 = vector.shape_cast %14 : vector<16x16x16xf32> to vector<256x16xf32>
    %16 = vector.extract_strided_slice %7 {offsets = [1, 1, 0], sizes = [16, 16, 16], strides = [1, 1, 1]} : vector<18x18x16xf32> to vector<16x16x16xf32>
    %17 = vector.shape_cast %16 : vector<16x16x16xf32> to vector<256x16xf32>
    %18 = vector.extract_strided_slice %7 {offsets = [1, 2, 0], sizes = [16, 16, 16], strides = [1, 1, 1]} : vector<18x18x16xf32> to vector<16x16x16xf32>
    %19 = vector.shape_cast %18 : vector<16x16x16xf32> to vector<256x16xf32>
    %20 = vector.extract_strided_slice %7 {offsets = [2, 0, 0], sizes = [16, 16, 16], strides = [1, 1, 1]} : vector<18x18x16xf32> to vector<16x16x16xf32>
    %21 = vector.shape_cast %20 : vector<16x16x16xf32> to vector<256x16xf32>
    %22 = vector.extract_strided_slice %7 {offsets = [2, 1, 0], sizes = [16, 16, 16], strides = [1, 1, 1]} : vector<18x18x16xf32> to vector<16x16x16xf32>
    %23 = vector.shape_cast %22 : vector<16x16x16xf32> to vector<256x16xf32>
    %24 = vector.extract_strided_slice %7 {offsets = [2, 2, 0], sizes = [16, 16, 16], strides = [1, 1, 1]} : vector<18x18x16xf32> to vector<16x16x16xf32>
    %25 = vector.shape_cast %24 : vector<16x16x16xf32> to vector<256x16xf32>
    %26 = tpu.concatenate %9, %11, %13, %15, %17, %19, %21, %23, %25 in 1 : vector<256x16xf32>, vector<256x16xf32>, vector<256x16xf32>, vector<256x16xf32>, vector<256x16xf32>, vector<256x16xf32>, vector<256x16xf32>, vector<256x16xf32>, vector<256x16xf32> -> vector<256x144xf32>
    %cst_15 = arith.constant dense<0.000000e+00> : vector<256x16xf32>
    %27 = tpu.matmul %26, %5, %cst_15 {dimension_numbers = #tpu.dot_dimension_numbers<[1], [0], [0], [1], [0, 0, 1, 1], [], []>} : vector<256x144xf32>, vector<144x16xf32>, vector<256x16xf32> -> vector<256x16xf32>
    %28 = vector.broadcast %6 : vector<1x16xf32> to vector<256x16xf32>
    %29 = arith.addf %27, %28 : vector<256x16xf32>
    %30 = vector.shape_cast %29 : vector<256x16xf32> to vector<16x16x16xf32>
    %c1_16 = arith.constant 1 : index
    %c1_17 = arith.constant 1 : index
    %c0_18 = arith.constant 0 : index
    %31 = vector.load %arg9[%c1_16, %c1_17, %c0_18] : memref<18x18x16xf32, #tpu.memory_space<vmem>>, vector<16x16x16xf32>
    tpu.vector_store %arg9[%c1_16, %c1_17, %c0_18], %30 {strides = array<i32>} : memref<18x18x16xf32, #tpu.memory_space<vmem>>, vector<16x16x16xf32>,
    %c0_19 = arith.constant 0 : index
    %c0_20 = arith.constant 0 : index
    %c0_21 = arith.constant 0 : index
    %32 = vector.load %arg4[%c0_19, %c0_20, %c0_21] : memref<2x144x16xf32, #tpu.memory_space<vmem>>, vector<1x144x16xf32>
    %33 = vector.shape_cast %32 : vector<1x144x16xf32> to vector<144x16xf32>
    %c0_22 = arith.constant 0 : index
    %c0_23 = arith.constant 0 : index
    %c0_24 = arith.constant 0 : index
    %34 = vector.load %arg5[%c0_22, %c0_23, %c0_24] : memref<2x1x16xf32, #tpu.memory_space<vmem>>, vector<1x1x16xf32>
    %35 = vector.shape_cast %34 : vector<1x1x16xf32> to vector<1x16xf32>
    %c0_25 = arith.constant 0 : index
    %c0_26 = arith.constant 0 : index
    %c0_27 = arith.constant 0 : index
    %36 = vector.load %arg9[%c0_25, %c0_26, %c0_27] : memref<18x18x16xf32, #tpu.memory_space<vmem>>, vector<18x18x16xf32>
    %37 = vector.extract_strided_slice %36 {offsets = [0, 0, 0], sizes = [16, 16, 16], strides = [1, 1, 1]} : vector<18x18x16xf32> to vector<16x16x16xf32>
    %38 = vector.shape_cast %37 : vector<16x16x16xf32> to vector<256x16xf32>
    %39 = vector.extract_strided_slice %36 {offsets = [0, 1, 0], sizes = [16, 16, 16], strides = [1, 1, 1]} : vector<18x18x16xf32> to vector<16x16x16xf32>
    %40 = vector.shape_cast %39 : vector<16x16x16xf32> to vector<256x16xf32>
    %41 = vector.extract_strided_slice %36 {offsets = [0, 2, 0], sizes = [16, 16, 16], strides = [1, 1, 1]} : vector<18x18x16xf32> to vector<16x16x16xf32>
    %42 = vector.shape_cast %41 : vector<16x16x16xf32> to vector<256x16xf32>
    %43 = vector.extract_strided_slice %36 {offsets = [1, 0, 0], sizes = [16, 16, 16], strides = [1, 1, 1]} : vector<18x18x16xf32> to vector<16x16x16xf32>
    %44 = vector.shape_cast %43 : vector<16x16x16xf32> to vector<256x16xf32>
    %45 = vector.extract_strided_slice %36 {offsets = [1, 1, 0], sizes = [16, 16, 16], strides = [1, 1, 1]} : vector<18x18x16xf32> to vector<16x16x16xf32>
    %46 = vector.shape_cast %45 : vector<16x16x16xf32> to vector<256x16xf32>
    %47 = vector.extract_strided_slice %36 {offsets = [1, 2, 0], sizes = [16, 16, 16], strides = [1, 1, 1]} : vector<18x18x16xf32> to vector<16x16x16xf32>
    %48 = vector.shape_cast %47 : vector<16x16x16xf32> to vector<256x16xf32>
    %49 = vector.extract_strided_slice %36 {offsets = [2, 0, 0], sizes = [16, 16, 16], strides = [1, 1, 1]} : vector<18x18x16xf32> to vector<16x16x16xf32>
    %50 = vector.shape_cast %49 : vector<16x16x16xf32> to vector<256x16xf32>
    %51 = vector.extract_strided_slice %36 {offsets = [2, 1, 0], sizes = [16, 16, 16], strides = [1, 1, 1]} : vector<18x18x16xf32> to vector<16x16x16xf32>
    %52 = vector.shape_cast %51 : vector<16x16x16xf32> to vector<256x16xf32>
    %53 = vector.extract_strided_slice %36 {offsets = [2, 2, 0], sizes = [16, 16, 16], strides = [1, 1, 1]} : vector<18x18x16xf32> to vector<16x16x16xf32>
    %54 = vector.shape_cast %53 : vector<16x16x16xf32> to vector<256x16xf32>
    %55 = tpu.concatenate %38, %40, %42, %44, %46, %48, %50, %52, %54 in 1 : vector<256x16xf32>, vector<256x16xf32>, vector<256x16xf32>, vector<256x16xf32>, vector<256x16xf32>, vector<256x16xf32>, vector<256x16xf32>, vector<256x16xf32>, vector<256x16xf32> -> vector<256x144xf32>
    %cst_28 = arith.constant dense<0.000000e+00> : vector<256x16xf32>
    %56 = tpu.matmul %55, %33, %cst_28 {dimension_numbers = #tpu.dot_dimension_numbers<[1], [0], [0], [1], [0, 0, 1, 1], [], []>} : vector<256x144xf32>, vector<144x16xf32>, vector<256x16xf32> -> vector<256x16xf32>
    %57 = vector.broadcast %35 : vector<1x16xf32> to vector<256x16xf32>
    %58 = arith.addf %56, %57 : vector<256x16xf32>
    %cst_29 = arith.constant 0.000000e+00 : f32
    %59 = vector.broadcast %cst_29 : f32 to vector<256x16xf32>
    %60 = arith.maximumf %58, %59 : vector<256x16xf32>
    %61 = vector.shape_cast %60 : vector<256x16xf32> to vector<16x16x16xf32>
    %c1_30 = arith.constant 1 : index
    %c1_31 = arith.constant 1 : index
    %c0_32 = arith.constant 0 : index
    %62 = vector.load %arg9[%c1_30, %c1_31, %c0_32] : memref<18x18x16xf32, #tpu.memory_space<vmem>>, vector<16x16x16xf32>
    tpu.vector_store %arg9[%c1_30, %c1_31, %c0_32], %61 {strides = array<i32>} : memref<18x18x16xf32, #tpu.memory_space<vmem>>, vector<16x16x16xf32>,
    %c1_33 = arith.constant 1 : index
    %c0_34 = arith.constant 0 : index
    %c0_35 = arith.constant 0 : index
    %63 = vector.load %arg4[%c1_33, %c0_34, %c0_35] : memref<2x144x16xf32, #tpu.memory_space<vmem>>, vector<1x144x16xf32>
    %64 = vector.shape_cast %63 : vector<1x144x16xf32> to vector<144x16xf32>
    %c1_36 = arith.constant 1 : index
    %c0_37 = arith.constant 0 : index
    %c0_38 = arith.constant 0 : index
    %65 = vector.load %arg5[%c1_36, %c0_37, %c0_38] : memref<2x1x16xf32, #tpu.memory_space<vmem>>, vector<1x1x16xf32>
    %66 = vector.shape_cast %65 : vector<1x1x16xf32> to vector<1x16xf32>
    %c0_39 = arith.constant 0 : index
    %c0_40 = arith.constant 0 : index
    %c0_41 = arith.constant 0 : index
    %67 = vector.load %arg9[%c0_39, %c0_40, %c0_41] : memref<18x18x16xf32, #tpu.memory_space<vmem>>, vector<18x18x16xf32>
    %68 = vector.extract_strided_slice %67 {offsets = [0, 0, 0], sizes = [16, 16, 16], strides = [1, 1, 1]} : vector<18x18x16xf32> to vector<16x16x16xf32>
    %69 = vector.shape_cast %68 : vector<16x16x16xf32> to vector<256x16xf32>
    %70 = vector.extract_strided_slice %67 {offsets = [0, 1, 0], sizes = [16, 16, 16], strides = [1, 1, 1]} : vector<18x18x16xf32> to vector<16x16x16xf32>
    %71 = vector.shape_cast %70 : vector<16x16x16xf32> to vector<256x16xf32>
    %72 = vector.extract_strided_slice %67 {offsets = [0, 2, 0], sizes = [16, 16, 16], strides = [1, 1, 1]} : vector<18x18x16xf32> to vector<16x16x16xf32>
    %73 = vector.shape_cast %72 : vector<16x16x16xf32> to vector<256x16xf32>
    %74 = vector.extract_strided_slice %67 {offsets = [1, 0, 0], sizes = [16, 16, 16], strides = [1, 1, 1]} : vector<18x18x16xf32> to vector<16x16x16xf32>
    %75 = vector.shape_cast %74 : vector<16x16x16xf32> to vector<256x16xf32>
    %76 = vector.extract_strided_slice %67 {offsets = [1, 1, 0], sizes = [16, 16, 16], strides = [1, 1, 1]} : vector<18x18x16xf32> to vector<16x16x16xf32>
    %77 = vector.shape_cast %76 : vector<16x16x16xf32> to vector<256x16xf32>
    %78 = vector.extract_strided_slice %67 {offsets = [1, 2, 0], sizes = [16, 16, 16], strides = [1, 1, 1]} : vector<18x18x16xf32> to vector<16x16x16xf32>
    %79 = vector.shape_cast %78 : vector<16x16x16xf32> to vector<256x16xf32>
    %80 = vector.extract_strided_slice %67 {offsets = [2, 0, 0], sizes = [16, 16, 16], strides = [1, 1, 1]} : vector<18x18x16xf32> to vector<16x16x16xf32>
    %81 = vector.shape_cast %80 : vector<16x16x16xf32> to vector<256x16xf32>
    %82 = vector.extract_strided_slice %67 {offsets = [2, 1, 0], sizes = [16, 16, 16], strides = [1, 1, 1]} : vector<18x18x16xf32> to vector<16x16x16xf32>
    %83 = vector.shape_cast %82 : vector<16x16x16xf32> to vector<256x16xf32>
    %84 = vector.extract_strided_slice %67 {offsets = [2, 2, 0], sizes = [16, 16, 16], strides = [1, 1, 1]} : vector<18x18x16xf32> to vector<16x16x16xf32>
    %85 = vector.shape_cast %84 : vector<16x16x16xf32> to vector<256x16xf32>
    %86 = tpu.concatenate %69, %71, %73, %75, %77, %79, %81, %83, %85 in 1 : vector<256x16xf32>, vector<256x16xf32>, vector<256x16xf32>, vector<256x16xf32>, vector<256x16xf32>, vector<256x16xf32>, vector<256x16xf32>, vector<256x16xf32>, vector<256x16xf32> -> vector<256x144xf32>
    %cst_42 = arith.constant dense<0.000000e+00> : vector<256x16xf32>
    %87 = tpu.matmul %86, %64, %cst_42 {dimension_numbers = #tpu.dot_dimension_numbers<[1], [0], [0], [1], [0, 0, 1, 1], [], []>} : vector<256x144xf32>, vector<144x16xf32>, vector<256x16xf32> -> vector<256x16xf32>
    %88 = vector.broadcast %66 : vector<1x16xf32> to vector<256x16xf32>
    %89 = arith.addf %87, %88 : vector<256x16xf32>
    %cst_43 = arith.constant 0.000000e+00 : f32
    %90 = vector.broadcast %cst_43 : f32 to vector<256x16xf32>
    %91 = arith.maximumf %89, %90 : vector<256x16xf32>
    %92 = vector.shape_cast %91 : vector<256x16xf32> to vector<16x16x16xf32>
    %c1_44 = arith.constant 1 : index
    %c1_45 = arith.constant 1 : index
    %c0_46 = arith.constant 0 : index
    %93 = vector.load %arg9[%c1_44, %c1_45, %c0_46] : memref<18x18x16xf32, #tpu.memory_space<vmem>>, vector<16x16x16xf32>
    tpu.vector_store %arg9[%c1_44, %c1_45, %c0_46], %92 {strides = array<i32>} : memref<18x18x16xf32, #tpu.memory_space<vmem>>, vector<16x16x16xf32>,
    %94 = arith.addf %29, %91 : vector<256x16xf32>
    %95 = vector.shape_cast %94 : vector<256x16xf32> to vector<16x16x16xf32>
    %c1_47 = arith.constant 1 : index
    %c1_48 = arith.constant 1 : index
    %c0_49 = arith.constant 0 : index
    %96 = vector.load %arg9[%c1_47, %c1_48, %c0_49] : memref<18x18x16xf32, #tpu.memory_space<vmem>>, vector<16x16x16xf32>
    tpu.vector_store %arg9[%c1_47, %c1_48, %c0_49], %95 {strides = array<i32>} : memref<18x18x16xf32, #tpu.memory_space<vmem>>, vector<16x16x16xf32>,
    %c0_50 = arith.constant 0 : index
    %c0_51 = arith.constant 0 : index
    %97 = vector.load %arg6[%c0_50, %c0_51] : memref<144x12xf32, #tpu.memory_space<vmem>>, vector<144x12xf32>
    %c0_52 = arith.constant 0 : index
    %c0_53 = arith.constant 0 : index
    %98 = vector.load %arg7[%c0_52, %c0_53] : memref<1x12xf32, #tpu.memory_space<vmem>>, vector<1x12xf32>
    %c0_54 = arith.constant 0 : index
    %c0_55 = arith.constant 0 : index
    %c0_56 = arith.constant 0 : index
    %99 = vector.load %arg9[%c0_54, %c0_55, %c0_56] : memref<18x18x16xf32, #tpu.memory_space<vmem>>, vector<18x18x16xf32>
    %100 = vector.extract_strided_slice %99 {offsets = [0, 0, 0], sizes = [16, 16, 16], strides = [1, 1, 1]} : vector<18x18x16xf32> to vector<16x16x16xf32>
    %101 = vector.shape_cast %100 : vector<16x16x16xf32> to vector<256x16xf32>
    %102 = vector.extract_strided_slice %99 {offsets = [0, 1, 0], sizes = [16, 16, 16], strides = [1, 1, 1]} : vector<18x18x16xf32> to vector<16x16x16xf32>
    %103 = vector.shape_cast %102 : vector<16x16x16xf32> to vector<256x16xf32>
    %104 = vector.extract_strided_slice %99 {offsets = [0, 2, 0], sizes = [16, 16, 16], strides = [1, 1, 1]} : vector<18x18x16xf32> to vector<16x16x16xf32>
    %105 = vector.shape_cast %104 : vector<16x16x16xf32> to vector<256x16xf32>
    %106 = vector.extract_strided_slice %99 {offsets = [1, 0, 0], sizes = [16, 16, 16], strides = [1, 1, 1]} : vector<18x18x16xf32> to vector<16x16x16xf32>
    %107 = vector.shape_cast %106 : vector<16x16x16xf32> to vector<256x16xf32>
    %108 = vector.extract_strided_slice %99 {offsets = [1, 1, 0], sizes = [16, 16, 16], strides = [1, 1, 1]} : vector<18x18x16xf32> to vector<16x16x16xf32>
    %109 = vector.shape_cast %108 : vector<16x16x16xf32> to vector<256x16xf32>
    %110 = vector.extract_strided_slice %99 {offsets = [1, 2, 0], sizes = [16, 16, 16], strides = [1, 1, 1]} : vector<18x18x16xf32> to vector<16x16x16xf32>
    %111 = vector.shape_cast %110 : vector<16x16x16xf32> to vector<256x16xf32>
    %112 = vector.extract_strided_slice %99 {offsets = [2, 0, 0], sizes = [16, 16, 16], strides = [1, 1, 1]} : vector<18x18x16xf32> to vector<16x16x16xf32>
    %113 = vector.shape_cast %112 : vector<16x16x16xf32> to vector<256x16xf32>
    %114 = vector.extract_strided_slice %99 {offsets = [2, 1, 0], sizes = [16, 16, 16], strides = [1, 1, 1]} : vector<18x18x16xf32> to vector<16x16x16xf32>
    %115 = vector.shape_cast %114 : vector<16x16x16xf32> to vector<256x16xf32>
    %116 = vector.extract_strided_slice %99 {offsets = [2, 2, 0], sizes = [16, 16, 16], strides = [1, 1, 1]} : vector<18x18x16xf32> to vector<16x16x16xf32>
    %117 = vector.shape_cast %116 : vector<16x16x16xf32> to vector<256x16xf32>
    %118 = tpu.concatenate %101, %103, %105, %107, %109, %111, %113, %115, %117 in 1 : vector<256x16xf32>, vector<256x16xf32>, vector<256x16xf32>, vector<256x16xf32>, vector<256x16xf32>, vector<256x16xf32>, vector<256x16xf32>, vector<256x16xf32>, vector<256x16xf32> -> vector<256x144xf32>
    %cst_57 = arith.constant dense<0.000000e+00> : vector<256x12xf32>
    %119 = tpu.matmul %118, %97, %cst_57 {dimension_numbers = #tpu.dot_dimension_numbers<[1], [0], [0], [1], [0, 0, 1, 1], [], []>} : vector<256x144xf32>, vector<144x12xf32>, vector<256x12xf32> -> vector<256x12xf32>
    %120 = vector.broadcast %98 : vector<1x12xf32> to vector<256x12xf32>
    %121 = arith.addf %119, %120 : vector<256x12xf32>
    %122 = vector.shape_cast %121 : vector<256x12xf32> to vector<16x16x12xf32>
    %c0_58 = arith.constant 0 : index
    %c0_59 = arith.constant 0 : index
    %c0_60 = arith.constant 0 : index
    %c0_61 = arith.constant 0 : index
    %123 = vector.load %arg8[%c0_58, %c0_59, %c0_60, %c0_61] : memref<1x16x16x12xf32, #tpu.memory_space<vmem>>, vector<1x16x16x12xf32>
    %124 = vector.shape_cast %123 : vector<1x16x16x12xf32> to vector<16x16x12xf32>
    %125 = vector.shape_cast %122 : vector<16x16x12xf32> to vector<1x16x16x12xf32>
    tpu.vector_store %arg8[%c0_58, %c0_59, %c0_60, %c0_61], %125 {strides = array<i32>} : memref<1x16x16x12xf32, #tpu.memory_space<vmem>>, vector<1x16x16x12xf32>,
    return
  }
  func.func @transform_0(%arg0: i32) -> (i32, i32, i32, i32) {
    %c0_i32 = arith.constant 0 : i32
    %c0_i32_0 = arith.constant 0 : i32
    %c0_i32_1 = arith.constant 0 : i32
    %c0_i32_2 = arith.constant 0 : i32
    return %arg0, %c0_i32, %c0_i32_0, %c0_i32_1 : i32, i32, i32, i32
  }
  func.func @transform_1(%arg0: i32) -> (i32, i32) {
    %c0_i32 = arith.constant 0 : i32
    %c0_i32_0 = arith.constant 0 : i32
    %c0_i32_1 = arith.constant 0 : i32
    return %c0_i32, %c0_i32_0 : i32, i32
  }
  func.func @transform_2(%arg0: i32) -> (i32, i32) {
    %c0_i32 = arith.constant 0 : i32
    %c0_i32_0 = arith.constant 0 : i32
    %c0_i32_1 = arith.constant 0 : i32
    return %c0_i32, %c0_i32_0 : i32, i32
  }
  func.func @transform_3(%arg0: i32) -> (i32, i32, i32) {
    %c0_i32 = arith.constant 0 : i32
    %c0_i32_0 = arith.constant 0 : i32
    %c0_i32_1 = arith.constant 0 : i32
    %c0_i32_2 = arith.constant 0 : i32
    return %c0_i32, %c0_i32_0, %c0_i32_1 : i32, i32, i32
  }
  func.func @transform_4(%arg0: i32) -> (i32, i32, i32) {
    %c0_i32 = arith.constant 0 : i32
    %c0_i32_0 = arith.constant 0 : i32
    %c0_i32_1 = arith.constant 0 : i32
    %c0_i32_2 = arith.constant 0 : i32
    return %c0_i32, %c0_i32_0, %c0_i32_1 : i32, i32, i32
  }
  func.func @transform_5(%arg0: i32) -> (i32, i32) {
    %c0_i32 = arith.constant 0 : i32
    %c0_i32_0 = arith.constant 0 : i32
    %c0_i32_1 = arith.constant 0 : i32
    return %c0_i32, %c0_i32_0 : i32, i32
  }
  func.func @transform_6(%arg0: i32) -> (i32, i32) {
    %c0_i32 = arith.constant 0 : i32
    %c0_i32_0 = arith.constant 0 : i32
    %c0_i32_1 = arith.constant 0 : i32
    return %c0_i32, %c0_i32_0 : i32, i32
  }
  func.func @transform_7(%arg0: i32) -> (i32, i32, i32, i32) {
    %c0_i32 = arith.constant 0 : i32
    %c0_i32_0 = arith.constant 0 : i32
    %c0_i32_1 = arith.constant 0 : i32
    %c0_i32_2 = arith.constant 0 : i32
    return %arg0, %c0_i32, %c0_i32_0, %c0_i32_1 : i32, i32, i32, i32
  }
}

</mosaic_0001>

<llo_original>
// kernel: srnet_forward.1
$region0: #{srnet_forward.1}
  #allocation0 [shape = 'u32[]', space=smem, size = 0x4, offset = 0x4, fixed_abs, tag = 'smem constant byte address 0x4 - core index']
  #allocation1 [shape = 'u32[144,128]{1,0:T(1,128)}', space=vmem, size = 0x12000, scoped, tag = 'internal scratch']
  #allocation2 [shape = 'f32[18,18,16]{2,1,0:T(8,128)}', space=vmem, size = 0x36000, scoped, tag = 'scratch operand']
  %s0 = inlined_call_operand.vmem [shape: f32[2,16,16,16], index: 0, kind: input, shape index: {}]
  %s1 = inlined_call_operand.vmem [shape: f32[144,16], index: 1, kind: input, shape index: {}]
  %s2 = inlined_call_operand.hbm [shape: f32[1,16], index: 2, kind: input, shape index: {}]
  %s3 = inlined_call_operand.vmem [shape: f32[2,144,16], index: 3, kind: input, shape index: {}]
  %s4 = inlined_call_operand.vmem [shape: f32[2,1,16], index: 4, kind: input, shape index: {}]
  %s5 = inlined_call_operand.hbm [shape: f32[144,12], index: 5, kind: input, shape index: {}]
  %s6 = inlined_call_operand.hbm [shape: f32[1,12], index: 6, kind: input, shape index: {}]
  %s7 = inlined_call_operand.vmem [shape: f32[2,16,16,12], index: 7, kind: output, shape index: {}]
  %s8 = sld [smem:[#allocation0]]
  $region73: #{srnet_forward.1} parent=0
    _
  %s10 = ssub.s32 1, %s8
  %s11 = scalar_select 0, %s10, %s8
  $region1: #{srnet_forward.1} parent=0
    #allocation3 [shape = 'u8[512]{0}', space=vmem, size = 0x400, scoped, tag = 'input window, operand 2, single buffered']
    #allocation4 [shape = 's32[2]{0}', space=sflag, size = 0x8, scoped, tag = 'scoped memory for srnet_forward.1']
    #allocation5 [shape = 'u8[73728]{0}', space=vmem, size = 0x12000, scoped, tag = 'input window, operand 5, single buffered']
    #allocation6 [shape = 's32[1]{0}', space=sflag, size = 0x4, scoped, tag = 'scoped memory for srnet_forward.1']
    #allocation7 [shape = 'u8[512]{0}', space=vmem, size = 0x400, scoped, tag = 'input window, operand 6, single buffered']
    %12 = vsyncpa [#allocation4], 0
    %13 = vsyncpa [#allocation6], 0
    loop: start=0, step=1, limit=4
    $region2: #{srnet_forward.1} parent=1 // loop_pre_header
      _
    $region3: #{srnet_forward.1} parent=1 // loop_header
      %s15 = sphi 0, %s19
      %p16 = scmp.ge.s32.totalorder %s15, 4
      %s25 = sphi 0, %s27
      %s28 = sphi 0, %s25
      %s29 = sphi 0, %s28
      %s45 = sphi 0, %s29
      %s49 = sphi 0, %s49
      %s51 = sphi 0, %s49
      %s52 = sphi 0, %s51
      %s66 = sphi 0, %s52
      %s70 = sphi 0, %s70
      %s72 = sphi 0, %s70
      %s73 = sphi 0, %s72
      %s87 = sphi 0, %s73
      %s91 = sphi 0, %s91
      %s93 = sphi 0, %s91
      %s94 = sphi 0, %s93
      %s108 = sphi 0, %s94
      %s112 = sphi 0, %s112
      %s114 = sphi 0, %s112
      %s115 = sphi 0, %s114
      %s129 = sphi 0, %s115
      %s133 = sphi 0, %s133
      %s135 = sphi 0, %s133
      %s136 = sphi 0, %s135
      %s150 = sphi 0, %s136
      %s154 = sphi 0, %s154
      %s156 = sphi 0, %s154
      %s157 = sphi 0, %s156
      %s171 = sphi 0, %s157
      %s177 = sphi 0, %s179
      %s180 = sphi 0, %s177
      %s181 = sphi 0, %s180
      %s197 = sphi 0, %s181
    $region4: #{srnet_forward.1} parent=1 // loop_header_branch
      %18 = sbr.rel (%p16) target = $region8
    $region5: #{srnet_forward.1} parent=1 // loop_body
      %s20 = ssub.s32 %s15, 1
      %s21 = ssub.s32 %s15, 2
      %s22 = sadd.s32 %s15, 1
      %s23 = ssub.s32 %s15, %s22
      %p24 = scmp.eq.s32.totalorder %s23, 0
      %s26 = sadd.s32 %s25, 1
      %s27 = scalar_select %p24, %s25, %s26
      %p30 = pneg %p24
      %p31 = scmp.eq.s32.totalorder %s15, 1
      %p32 = por %p30, %p31
      %p33 = scmp.ne.s32.totalorder %s25, %s28
      %p34 = scmp.eq.s32.totalorder %s15, 0
      %p35 = por %p33, %p34
      %p36 = scmp.ne.s32.totalorder %s25, %s28
      %p37 = scmp.eq.s32.totalorder %s20, 1
      %p38 = por %p36, %p37
      %p39 = scmp.ne.s32.totalorder %s28, %s29
      %p40 = scmp.eq.s32.totalorder %s20, 0
      %p41 = por %p39, %p40
      %p42 = scmp.ne.s32.totalorder %s28, %s29
      %p43 = scmp.eq.s32.totalorder %s21, 1
      %p44 = por %p42, %p43
      %p46 = scmp.ne.s32.totalorder %s29, %s45
      %p47 = scmp.eq.s32.totalorder %s21, 0
      %p48 = por %p46, %p47
      %s50 = sadd.s32 %s49, 1
      %p53 = scmp.eq.s32.totalorder %s15, 1
      %p54 = scmp.ne.s32.totalorder %s49, %s51
      %p55 = scmp.eq.s32.totalorder %s15, 0
      %p56 = por %p54, %p55
      %p57 = scmp.ne.s32.totalorder %s49, %s51
      %p58 = scmp.eq.s32.totalorder %s20, 1
      %p59 = por %p57, %p58
      %p60 = scmp.ne.s32.totalorder %s51, %s52
      %p61 = scmp.eq.s32.totalorder %s20, 0
      %p62 = por %p60, %p61
      %p63 = scmp.ne.s32.totalorder %s51, %s52
      %p64 = scmp.eq.s32.totalorder %s21, 1
      %p65 = por %p63, %p64
      %p67 = scmp.ne.s32.totalorder %s52, %s66
      %p68 = scmp.eq.s32.totalorder %s21, 0
      %p69 = por %p67, %p68
      %s71 = sadd.s32 %s70, 1
      %p74 = scmp.eq.s32.totalorder %s15, 1
      %p75 = scmp.ne.s32.totalorder %s70, %s72
      %p76 = scmp.eq.s32.totalorder %s15, 0
      %p77 = por %p75, %p76
      %p78 = scmp.ne.s32.totalorder %s70, %s72
      %p79 = scmp.eq.s32.totalorder %s20, 1
      %p80 = por %p78, %p79
      %p81 = scmp.ne.s32.totalorder %s72, %s73
      %p82 = scmp.eq.s32.totalorder %s20, 0
      %p83 = por %p81, %p82
      %p84 = scmp.ne.s32.totalorder %s72, %s73
      %p85 = scmp.eq.s32.totalorder %s21, 1
      %p86 = por %p84, %p85
      %p88 = scmp.ne.s32.totalorder %s73, %s87
      %p89 = scmp.eq.s32.totalorder %s21, 0
      %p90 = por %p88, %p89
      %s92 = sadd.s32 %s91, 1
      %p95 = scmp.eq.s32.totalorder %s15, 1
      %p96 = scmp.ne.s32.totalorder %s91, %s93
      %p97 = scmp.eq.s32.totalorder %s15, 0
      %p98 = por %p96, %p97
      %p99 = scmp.ne.s32.totalorder %s91, %s93
      %p100 = scmp.eq.s32.totalorder %s20, 1
      %p101 = por %p99, %p100
      %p102 = scmp.ne.s32.totalorder %s93, %s94
      %p103 = scmp.eq.s32.totalorder %s20, 0
      %p104 = por %p102, %p103
      %p105 = scmp.ne.s32.totalorder %s93, %s94
      %p106 = scmp.eq.s32.totalorder %s21, 1
      %p107 = por %p105, %p106
      %p109 = scmp.ne.s32.totalorder %s94, %s108
      %p110 = scmp.eq.s32.totalorder %s21, 0
      %p111 = por %p109, %p110
      %s113 = sadd.s32 %s112, 1
      %p116 = scmp.eq.s32.totalorder %s15, 1
      %p117 = scmp.ne.s32.totalorder %s112, %s114
      %p118 = scmp.eq.s32.totalorder %s15, 0
      %p119 = por %p117, %p118
      %p120 = scmp.ne.s32.totalorder %s112, %s114
      %p121 = scmp.eq.s32.totalorder %s20, 1
      %p122 = por %p120, %p121
      %p123 = scmp.ne.s32.totalorder %s114, %s115
      %p124 = scmp.eq.s32.totalorder %s20, 0
      %p125 = por %p123, %p124
      %p126 = scmp.ne.s32.totalorder %s114, %s115
      %p127 = scmp.eq.s32.totalorder %s21, 1
      %p128 = por %p126, %p127
      %p130 = scmp.ne.s32.totalorder %s115, %s129
      %p131 = scmp.eq.s32.totalorder %s21, 0
      %p132 = por %p130, %p131
      %s134 = sadd.s32 %s133, 1
      %p137 = scmp.eq.s32.totalorder %s15, 1
      %p138 = scmp.ne.s32.totalorder %s133, %s135
      %p139 = scmp.eq.s32.totalorder %s15, 0
      %p140 = por %p138, %p139
      %p141 = scmp.ne.s32.totalorder %s133, %s135
      %p142 = scmp.eq.s32.totalorder %s20, 1
      %p143 = por %p141, %p142
      %p144 = scmp.ne.s32.totalorder %s135, %s136
      %p145 = scmp.eq.s32.totalorder %s20, 0
      %p146 = por %p144, %p145
      %p147 = scmp.ne.s32.totalorder %s135, %s136
      %p148 = scmp.eq.s32.totalorder %s21, 1
      %p149 = por %p147, %p148
      %p151 = scmp.ne.s32.totalorder %s136, %s150
      %p152 = scmp.eq.s32.totalorder %s21, 0
      %p153 = por %p151, %p152
      %s155 = sadd.s32 %s154, 1
      %p158 = scmp.eq.s32.totalorder %s15, 1
      %p159 = scmp.ne.s32.totalorder %s154, %s156
      %p160 = scmp.eq.s32.totalorder %s15, 0
      %p161 = por %p159, %p160
      %p162 = scmp.ne.s32.totalorder %s154, %s156
      %p163 = scmp.eq.s32.totalorder %s20, 1
      %p164 = por %p162, %p163
      %p165 = scmp.ne.s32.totalorder %s156, %s157
      %p166 = scmp.eq.s32.totalorder %s20, 0
      %p167 = por %p165, %p166
      %p168 = scmp.ne.s32.totalorder %s156, %s157
      %p169 = scmp.eq.s32.totalorder %s21, 1
      %p170 = por %p168, %p169
      %p172 = scmp.ne.s32.totalorder %s157, %s171
      %p173 = scmp.eq.s32.totalorder %s21, 0
      %p174 = por %p172, %p173
      %s175 = ssub.s32 %s15, %s22
      %p176 = scmp.eq.s32.totalorder %s175, 0
      %s178 = sadd.s32 %s177, 1
      %s179 = scalar_select %p176, %s177, %s178
      %p182 = pneg %p176
      %p183 = scmp.eq.s32.totalorder %s15, 1
      %p184 = por %p182, %p183
      %p185 = scmp.ne.s32.totalorder %s177, %s180
      %p186 = scmp.eq.s32.totalorder %s15, 0
      %p187 = por %p185, %p186
      %p188 = scmp.ne.s32.totalorder %s177, %s180
      %p189 = scmp.eq.s32.totalorder %s20, 1
      %p190 = por %p188, %p189
      %p191 = scmp.ne.s32.totalorder %s180, %s181
      %p192 = scmp.eq.s32.totalorder %s20, 0
      %p193 = por %p191, %p192
      %p194 = scmp.ne.s32.totalorder %s180, %s181
      %p195 = scmp.eq.s32.totalorder %s21, 1
      %p196 = por %p194, %p195
      %p198 = scmp.ne.s32.totalorder %s181, %s197
      %p199 = scmp.eq.s32.totalorder %s21, 0
      %p200 = por %p198, %p199
      %p201 = scmp.le.s32.totalorder 1, %s15
      %p202 = scmp.lt.s32.totalorder %s15, 3
      %p203 = pnand %p201, %p202
      %p204 = pneg %p203
      // Predicated region
      $region9: #{srnet_forward.1} parent=5 // pred_check
        _
      $region10: #{srnet_forward.1} parent=5 // pred_check_branch
        %206 = sbr.rel (%p203) target = $region12
      $region11: #{srnet_forward.1} parent=5 // pred_region
        %s207 = ssub.s32 %s15, 1
        // Predicated region
        $region13: #{srnet_forward.1} parent=11 // pred_check
          %p208 = pneg %p62
        $region14: #{srnet_forward.1} parent=11 // pred_check_branch
          %210 = sbr.rel (%p208) target = $region16
        $region15: #{srnet_forward.1} parent=11 // pred_region
          _
        $region16: #{srnet_forward.1} parent=11 // pred_fallthru
          _
        // Predicated region
        $region17: #{srnet_forward.1} parent=11 // pred_check
          %p211 = pneg %p83
        $region18: #{srnet_forward.1} parent=11 // pred_check_branch
          %213 = sbr.rel (%p211) target = $region20
        $region19: #{srnet_forward.1} parent=11 // pred_region
          %s215 = ssub.s32 16, 16
          %216 = vsyncadd [#allocation4], %s215
          %s218 = sshll.u32 [#allocation3], 4
          %s219 = int_to_ptr.vmem [resolvable:$true] %s218
          %221 = dma.hbm_to_vmem [thread:$0]  %s2, 16, %s219, [#allocation4]
        $region20: #{srnet_forward.1} parent=11 // pred_fallthru
          _
        // Predicated region
        $region21: #{srnet_forward.1} parent=11 // pred_check
          %p222 = pneg %p104
        $region22: #{srnet_forward.1} parent=11 // pred_check_branch
          %224 = sbr.rel (%p222) target = $region24
        $region23: #{srnet_forward.1} parent=11 // pred_region
          _
        $region24: #{srnet_forward.1} parent=11 // pred_fallthru
          _
        // Predicated region
        $region25: #{srnet_forward.1} parent=11 // pred_check
          %p225 = pneg %p125
        $region26: #{srnet_forward.1} parent=11 // pred_check_branch
          %227 = sbr.rel (%p225) target = $region28
        $region27: #{srnet_forward.1} parent=11 // pred_region
          _
        $region28: #{srnet_forward.1} parent=11 // pred_fallthru
          _
        // Predicated region
        $region29: #{srnet_forward.1} parent=11 // pred_check
          %p228 = pneg %p146
        $region30: #{srnet_forward.1} parent=11 // pred_check_branch
          %230 = sbr.rel (%p228) target = $region32
        $region31: #{srnet_forward.1} parent=11 // pred_region
          %s232 = ssub.s32 2304, 2304
          %233 = vsyncadd [#allocation6], %s232
          %s234 = sshll.u32 [#allocation5], 4
          %s235 = int_to_ptr.vmem [resolvable:$true] %s234
          %240 = dma.hbm_to_vmem [thread:$0]  %s5, 2304, %s235, [#allocation6], 128, 128, 8
        $region32: #{srnet_forward.1} parent=11 // pred_fallthru
          _
        // Predicated region
        $region33: #{srnet_forward.1} parent=11 // pred_check
          %p241 = pneg %p167
        $region34: #{srnet_forward.1} parent=11 // pred_check_branch
          %243 = sbr.rel (%p241) target = $region36
        $region35: #{srnet_forward.1} parent=11 // pred_region
          %s245 = ssub.s32 16, 16
          %246 = vsyncadd [#allocation6], %s245
          %s248 = sshll.u32 [#allocation7], 4
          %s249 = int_to_ptr.vmem [resolvable:$true] %s248
          %251 = dma.hbm_to_vmem [thread:$0]  %s6, 16, %s249, [#allocation6]
        $region36: #{srnet_forward.1} parent=11 // pred_fallthru
          _
      $region12: #{srnet_forward.1} parent=5 // pred_fallthru
        _
      %p252 = scmp.lt.s32.totalorder %s15, 2
      // Predicated region
      $region37: #{srnet_forward.1} parent=5 // pred_check
        %p253 = pneg %p252
      $region38: #{srnet_forward.1} parent=5 // pred_check_branch
        %255 = sbr.rel (%p253) target = $region40
      $region39: #{srnet_forward.1} parent=5 // pred_region
        // Predicated region
        $region41: #{srnet_forward.1} parent=39 // pred_check
          %p256 = pneg %p35
        $region42: #{srnet_forward.1} parent=39 // pred_check_branch
          %258 = sbr.rel (%p256) target = $region44
        $region43: #{srnet_forward.1} parent=39 // pred_region
          %p259 = scmp.lt.s32.totalorder %s15, 1
          %s260 = scalar_select %p259, %s15, 1
          %s261 = smul.addr %s260, 32
          %s262 = smul.addr %s261, 8
          %s263 = scalar_lea.vmem %s0, %s262
        $region44: #{srnet_forward.1} parent=39 // pred_fallthru
          _
      $region40: #{srnet_forward.1} parent=5 // pred_fallthru
        _
      %p264 = scmp.le.s32.totalorder 1, %s15
      %p265 = scmp.lt.s32.totalorder %s15, 3
      %p266 = pnand %p264, %p265
      %p267 = pneg %p266
      // Predicated region
      $region45: #{srnet_forward.1} parent=5 // pred_check
        _
      $region46: #{srnet_forward.1} parent=5 // pred_check_branch
        %269 = sbr.rel (%p266) target = $region48
      $region47: #{srnet_forward.1} parent=5 // pred_region
        %s270 = ssub.s32 %s15, 1
        // Predicated region
        $region49: #{srnet_forward.1} parent=47 // pred_check
          %p271 = pneg %p83
        $region50: #{srnet_forward.1} parent=47 // pred_check_branch
          %273 = sbr.rel (%p271) target = $region52
        $region51: #{srnet_forward.1} parent=47 // pred_region
          %274 = dma.done [#allocation4], 16
        $region52: #{srnet_forward.1} parent=47 // pred_fallthru
          _
        // Predicated region
        $region53: #{srnet_forward.1} parent=47 // pred_check
          %p275 = pneg %p146
        $region54: #{srnet_forward.1} parent=47 // pred_check_branch
          %277 = sbr.rel (%p275) target = $region56
        $region55: #{srnet_forward.1} parent=47 // pred_region
          %278 = dma.done [#allocation6], 2304
        $region56: #{srnet_forward.1} parent=47 // pred_fallthru
          _
        // Predicated region
        $region57: #{srnet_forward.1} parent=47 // pred_check
          %p279 = pneg %p167
        $region58: #{srnet_forward.1} parent=47 // pred_check_branch
          %281 = sbr.rel (%p279) target = $region60
        $region59: #{srnet_forward.1} parent=47 // pred_region
          %282 = dma.done [#allocation6], 16
        $region60: #{srnet_forward.1} parent=47 // pred_fallthru
          _
        %p283 = scmp.lt.s32.totalorder %s20, 1
        %s284 = scalar_select %p283, %s20, 1
        %s285 = smul.addr %s284, 32
        %s286 = smul.addr %s285, 8
        %s287 = scalar_lea.vmem %s0, %s286
        %p288 = pneg %p41
        %p289 = pneg %p38
        %p290 = pneg %p62
        %p291 = pneg %p59
        %p292 = pneg %p83
        %p293 = pneg %p80
        %p294 = pneg %p104
        %p295 = pneg %p101
        %p296 = pneg %p125
        %p297 = pneg %p122
        %p298 = pneg %p146
        %p299 = pneg %p143
        %p300 = pneg %p167
        %p301 = pneg %p164
        %p302 = pneg %p193
        %p303 = pneg %p190
        %p304 = scmp.lt.s32.totalorder %s20, 1
        %s305 = scalar_select %p304, %s20, 1
        %s306 = smul.addr %s305, 32
        %s307 = smul.addr %s306, 8
        %s308 = scalar_lea.vmem %s7, %s307
        %p309 = scmp.lt.s32.totalorder %s20, 1
        %s310 = scalar_select %p309, %s20, 1
        %s311 = smul.addr %s310, 32
        %s312 = smul.addr %s311, 8
        %s313 = scalar_lea.vmem %s0, %s312
        %p314 = scmp.lt.s32.totalorder %s20, 1
        %s315 = scalar_select %p314, %s20, 1
        %s316 = smul.addr %s315, 32
        %s317 = smul.addr %s316, 8
        %s318 = scalar_lea.vmem %s7, %s317
        %vm319 = vcmask 130048
        %320 = vst.msk [vmem:[#allocation2] sm:$0xff] %vm319, 0.0
        %321 = vst.msk [vmem:[#allocation2 + $0x8] sm:$0xff] %vm319, 0.0
        %vm322 = vcmask 123904
        %323 = vst.msk [vmem:[#allocation2 + $0x10] sm:$0x3] %vm322, 0.0
        %324 = vst.msk [vmem:[#allocation2 + $0x18] sm:$0xff] %vm319, 0.0
        %325 = vst.msk [vmem:[#allocation2 + $0x20] sm:$0xff] %vm319, 0.0
        %326 = vst.msk [vmem:[#allocation2 + $0x28] sm:$0x3] %vm322, 0.0
        %327 = vst.msk [vmem:[#allocation2 + $0x30] sm:$0xff] %vm319, 0.0
        %328 = vst.msk [vmem:[#allocation2 + $0x38] sm:$0xff] %vm319, 0.0
        %329 = vst.msk [vmem:[#allocation2 + $0x40] sm:$0x3] %vm322, 0.0
        %330 = vst.msk [vmem:[#allocation2 + $0x48] sm:$0xff] %vm319, 0.0
        %331 = vst.msk [vmem:[#allocation2 + $0x50] sm:$0xff] %vm319, 0.0
        %332 = vst.msk [vmem:[#allocation2 + $0x58] sm:$0x3] %vm322, 0.0
        %333 = vst.msk [vmem:[#allocation2 + $0x60] sm:$0xff] %vm319, 0.0
        %334 = vst.msk [vmem:[#allocation2 + $0x68] sm:$0xff] %vm319, 0.0
        %335 = vst.msk [vmem:[#allocation2 + $0x70] sm:$0x3] %vm322, 0.0
        %336 = vst.msk [vmem:[#allocation2 + $0x78] sm:$0xff] %vm319, 0.0
        %337 = vst.msk [vmem:[#allocation2 + $0x80] sm:$0xff] %vm319, 0.0
        %338 = vst.msk [vmem:[#allocation2 + $0x88] sm:$0x3] %vm322, 0.0
        %339 = vst.msk [vmem:[#allocation2 + $0x90] sm:$0xff] %vm319, 0.0
        %340 = vst.msk [vmem:[#allocation2 + $0x98] sm:$0xff] %vm319, 0.0
        %341 = vst.msk [vmem:[#allocation2 + $0xa0] sm:$0x3] %vm322, 0.0
        %342 = vst.msk [vmem:[#allocation2 + $0xa8] sm:$0xff] %vm319, 0.0
        %343 = vst.msk [vmem:[#allocation2 + $0xb0] sm:$0xff] %vm319, 0.0
        %344 = vst.msk [vmem:[#allocation2 + $0xb8] sm:$0x3] %vm322, 0.0
        %345 = vst.msk [vmem:[#allocation2 + $0xc0] sm:$0xff] %vm319, 0.0
        %346 = vst.msk [vmem:[#allocation2 + $0xc8] sm:$0xff] %vm319, 0.0
        %347 = vst.msk [vmem:[#allocation2 + $0xd0] sm:$0x3] %vm322, 0.0
        %348 = vst.msk [vmem:[#allocation2 + $0xd8] sm:$0xff] %vm319, 0.0
        %349 = vst.msk [vmem:[#allocation2 + $0xe0] sm:$0xff] %vm319, 0.0
        %350 = vst.msk [vmem:[#allocation2 + $0xe8] sm:$0x3] %vm322, 0.0
        %351 = vst.msk [vmem:[#allocation2 + $0xf0] sm:$0xff] %vm319, 0.0
        %352 = vst.msk [vmem:[#allocation2 + $0xf8] sm:$0xff] %vm319, 0.0
        %353 = vst.msk [vmem:[#allocation2 + $0x100] sm:$0x3] %vm322, 0.0
        %354 = vst.msk [vmem:[#allocation2 + $0x108] sm:$0xff] %vm319, 0.0
        %355 = vst.msk [vmem:[#allocation2 + $0x110] sm:$0xff] %vm319, 0.0
        %356 = vst.msk [vmem:[#allocation2 + $0x118] sm:$0x3] %vm322, 0.0
        %357 = vst.msk [vmem:[#allocation2 + $0x120] sm:$0xff] %vm319, 0.0
        %358 = vst.msk [vmem:[#allocation2 + $0x128] sm:$0xff] %vm319, 0.0
        %359 = vst.msk [vmem:[#allocation2 + $0x130] sm:$0x3] %vm322, 0.0
        %360 = vst.msk [vmem:[#allocation2 + $0x138] sm:$0xff] %vm319, 0.0
        %361 = vst.msk [vmem:[#allocation2 + $0x140] sm:$0xff] %vm319, 0.0
        %362 = vst.msk [vmem:[#allocation2 + $0x148] sm:$0x3] %vm322, 0.0
        %363 = vst.msk [vmem:[#allocation2 + $0x150] sm:$0xff] %vm319, 0.0
        %364 = vst.msk [vmem:[#allocation2 + $0x158] sm:$0xff] %vm319, 0.0
        %365 = vst.msk [vmem:[#allocation2 + $0x160] sm:$0x3] %vm322, 0.0
        %366 = vst.msk [vmem:[#allocation2 + $0x168] sm:$0xff] %vm319, 0.0
        %367 = vst.msk [vmem:[#allocation2 + $0x170] sm:$0xff] %vm319, 0.0
        %368 = vst.msk [vmem:[#allocation2 + $0x178] sm:$0x3] %vm322, 0.0
        %369 = vst.msk [vmem:[#allocation2 + $0x180] sm:$0xff] %vm319, 0.0
        %370 = vst.msk [vmem:[#allocation2 + $0x188] sm:$0xff] %vm319, 0.0
        %371 = vst.msk [vmem:[#allocation2 + $0x190] sm:$0x3] %vm322, 0.0
        %372 = vst.msk [vmem:[#allocation2 + $0x198] sm:$0xff] %vm319, 0.0
        %373 = vst.msk [vmem:[#allocation2 + $0x1a0] sm:$0xff] %vm319, 0.0
        %374 = vst.msk [vmem:[#allocation2 + $0x1a8] sm:$0x3] %vm322, 0.0
        %v375 = vld [vmem:[%s313] sm:$0xff]
        %v376 = vld [vmem:[%s313 + $0x8] sm:$0xff]
        %v377 = vld [vmem:[%s313 + $0x10] sm:$0xff]
        %v378 = vld [vmem:[%s313 + $0x18] sm:$0xff]
        %v379 = vld [vmem:[%s313 + $0x20] sm:$0xff]
        %v380 = vld [vmem:[%s313 + $0x28] sm:$0xff]
        %v381 = vld [vmem:[%s313 + $0x30] sm:$0xff]
        %v382 = vld [vmem:[%s313 + $0x38] sm:$0xff]
        %v383 = vld [vmem:[%s313 + $0x40] sm:$0xff]
        %v384 = vld [vmem:[%s313 + $0x48] sm:$0xff]
        %v385 = vld [vmem:[%s313 + $0x50] sm:$0xff]
        %v386 = vld [vmem:[%s313 + $0x58] sm:$0xff]
        %v387 = vld [vmem:[%s313 + $0x60] sm:$0xff]
        %v388 = vld [vmem:[%s313 + $0x68] sm:$0xff]
        %v389 = vld [vmem:[%s313 + $0x70] sm:$0xff]
        %v390 = vld [vmem:[%s313 + $0x78] sm:$0xff]
        %v391 = vld [vmem:[%s313 + $0x80] sm:$0xff]
        %v392 = vld [vmem:[%s313 + $0x88] sm:$0xff]
        %v393 = vld [vmem:[%s313 + $0x90] sm:$0xff]
        %v394 = vld [vmem:[%s313 + $0x98] sm:$0xff]
        %v395 = vld [vmem:[%s313 + $0xa0] sm:$0xff]
        %v396 = vld [vmem:[%s313 + $0xa8] sm:$0xff]
        %v397 = vld [vmem:[%s313 + $0xb0] sm:$0xff]
        %v398 = vld [vmem:[%s313 + $0xb8] sm:$0xff]
        %v399 = vld [vmem:[%s313 + $0xc0] sm:$0xff]
        %v400 = vld [vmem:[%s313 + $0xc8] sm:$0xff]
        %v401 = vld [vmem:[%s313 + $0xd0] sm:$0xff]
        %v402 = vld [vmem:[%s313 + $0xd8] sm:$0xff]
        %v403 = vld [vmem:[%s313 + $0xe0] sm:$0xff]
        %v404 = vld [vmem:[%s313 + $0xe8] sm:$0xff]
        %v405 = vld [vmem:[%s313 + $0xf0] sm:$0xff]
        %v406 = vld [vmem:[%s313 + $0xf8] sm:$0xff]
        %s407 = scalar_lea.vmem [#allocation2], 24
        %408 = vst.msk [vmem:[%s407 + $0x1] sm:$0xff] %vm319, %v375
        %409 = vst.msk [vmem:[%s407 + $0x9] sm:$0xff] %vm319, %v376
        %410 = vst.msk [vmem:[%s407 + $0x19] sm:$0xff] %vm319, %v377
        %411 = vst.msk [vmem:[%s407 + $0x21] sm:$0xff] %vm319, %v378
        %412 = vst.msk [vmem:[%s407 + $0x31] sm:$0xff] %vm319, %v379
        %413 = vst.msk [vmem:[%s407 + $0x39] sm:$0xff] %vm319, %v380
        %414 = vst.msk [vmem:[%s407 + $0x49] sm:$0xff] %vm319, %v381
        %415 = vst.msk [vmem:[%s407 + $0x51] sm:$0xff] %vm319, %v382
        %416 = vst.msk [vmem:[%s407 + $0x61] sm:$0xff] %vm319, %v383
        %417 = vst.msk [vmem:[%s407 + $0x69] sm:$0xff] %vm319, %v384
        %418 = vst.msk [vmem:[%s407 + $0x79] sm:$0xff] %vm319, %v385
        %419 = vst.msk [vmem:[%s407 + $0x81] sm:$0xff] %vm319, %v386
        %420 = vst.msk [vmem:[%s407 + $0x91] sm:$0xff] %vm319, %v387
        %421 = vst.msk [vmem:[%s407 + $0x99] sm:$0xff] %vm319, %v388
        %422 = vst.msk [vmem:[%s407 + $0xa9] sm:$0xff] %vm319, %v389
        %423 = vst.msk [vmem:[%s407 + $0xb1] sm:$0xff] %vm319, %v390
        %424 = vst.msk [vmem:[%s407 + $0xc1] sm:$0xff] %vm319, %v391
        %425 = vst.msk [vmem:[%s407 + $0xc9] sm:$0xff] %vm319, %v392
        %426 = vst.msk [vmem:[%s407 + $0xd9] sm:$0xff] %vm319, %v393
        %427 = vst.msk [vmem:[%s407 + $0xe1] sm:$0xff] %vm319, %v394
        %428 = vst.msk [vmem:[%s407 + $0xf1] sm:$0xff] %vm319, %v395
        %429 = vst.msk [vmem:[%s407 + $0xf9] sm:$0xff] %vm319, %v396
        %430 = vst.msk [vmem:[%s407 + $0x109] sm:$0xff] %vm319, %v397
        %431 = vst.msk [vmem:[%s407 + $0x111] sm:$0xff] %vm319, %v398
        %432 = vst.msk [vmem:[%s407 + $0x121] sm:$0xff] %vm319, %v399
        %433 = vst.msk [vmem:[%s407 + $0x129] sm:$0xff] %vm319, %v400
        %434 = vst.msk [vmem:[%s407 + $0x139] sm:$0xff] %vm319, %v401
        %435 = vst.msk [vmem:[%s407 + $0x141] sm:$0xff] %vm319, %v402
        %436 = vst.msk [vmem:[%s407 + $0x151] sm:$0xff] %vm319, %v403
        %437 = vst.msk [vmem:[%s407 + $0x159] sm:$0xff] %vm319, %v404
        %438 = vst.msk [vmem:[%s407 + $0x169] sm:$0xff] %vm319, %v405
        %439 = vst.msk [vmem:[%s407 + $0x171] sm:$0xff] %vm319, %v406
        %v440 = vld [vmem:[%s1] sm:$0xff]
        %v441 = vld [vmem:[%s1 + $0x8] sm:$0xff]
        %v442 = vld [vmem:[%s1 + $0x10] sm:$0xff]
        %v443 = vld [vmem:[%s1 + $0x18] sm:$0xff]
        %v444 = vld [vmem:[%s1 + $0x20] sm:$0xff]
        %v445 = vld [vmem:[%s1 + $0x28] sm:$0xff]
        %v446 = vld [vmem:[%s1 + $0x30] sm:$0xff]
        %v447 = vld [vmem:[%s1 + $0x38] sm:$0xff]
        %v448 = vld [vmem:[%s1 + $0x40] sm:$0xff]
        %v449 = vld [vmem:[%s1 + $0x48] sm:$0xff]
        %v450 = vld [vmem:[%s1 + $0x50] sm:$0xff]
        %v451 = vld [vmem:[%s1 + $0x58] sm:$0xff]
        %v452 = vld [vmem:[%s1 + $0x60] sm:$0xff]
        %v453 = vld [vmem:[%s1 + $0x68] sm:$0xff]
        %v454 = vld [vmem:[%s1 + $0x70] sm:$0xff]
        %v455 = vld [vmem:[%s1 + $0x78] sm:$0xff]
        %v456 = vld [vmem:[%s1 + $0x80] sm:$0xff]
        %v457 = vld [vmem:[%s1 + $0x88] sm:$0xff]
        %v458 = vld [vmem:[#allocation3] sm:$0x1]
        %v459 = vld [vmem:[#allocation2] sm:$0xff]
        %v460 = vld [vmem:[#allocation2 + $0x8] sm:$0xff]
        %v461 = vld [vmem:[#allocation2 + $0x10] sm:$0x3]
        %v462 = vld [vmem:[#allocation2 + $0x18] sm:$0xff]
        %v463 = vld [vmem:[#allocation2 + $0x20] sm:$0xff]
        %v464 = vld [vmem:[#allocation2 + $0x28] sm:$0x3]
        %v465 = vld [vmem:[#allocation2 + $0x30] sm:$0xff]
        %v466 = vld [vmem:[#allocation2 + $0x38] sm:$0xff]
        %v467 = vld [vmem:[#allocation2 + $0x40] sm:$0x3]
        %v468 = vld [vmem:[#allocation2 + $0x48] sm:$0xff]
        %v469 = vld [vmem:[#allocation2 + $0x50] sm:$0xff]
        %v470 = vld [vmem:[#allocation2 + $0x58] sm:$0x3]
        %v471 = vld [vmem:[#allocation2 + $0x60] sm:$0xff]
        %v472 = vld [vmem:[#allocation2 + $0x68] sm:$0xff]
        %v473 = vld [vmem:[#allocation2 + $0x70] sm:$0x3]
        %v474 = vld [vmem:[#allocation2 + $0x78] sm:$0xff]
        %v475 = vld [vmem:[#allocation2 + $0x80] sm:$0xff]
        %v476 = vld [vmem:[#allocation2 + $0x88] sm:$0x3]
        %v477 = vld [vmem:[#allocation2 + $0x90] sm:$0xff]
        %v478 = vld [vmem:[#allocation2 + $0x98] sm:$0xff]
        %v479 = vld [vmem:[#allocation2 + $0xa0] sm:$0x3]
        %v480 = vld [vmem:[#allocation2 + $0xa8] sm:$0xff]
        %v481 = vld [vmem:[#allocation2 + $0xb0] sm:$0xff]
        %v482 = vld [vmem:[#allocation2 + $0xb8] sm:$0x3]
        %v483 = vld [vmem:[#allocation2 + $0xc0] sm:$0xff]
        %v484 = vld [vmem:[#allocation2 + $0xc8] sm:$0xff]
        %v485 = vld [vmem:[#allocation2 + $0xd0] sm:$0x3]
        %v486 = vld [vmem:[#allocation2 + $0xd8] sm:$0xff]
        %v487 = vld [vmem:[#allocation2 + $0xe0] sm:$0xff]
        %v488 = vld [vmem:[#allocation2 + $0xe8] sm:$0x3]
        %v489 = vld [vmem:[#allocation2 + $0xf0] sm:$0xff]
        %v490 = vld [vmem:[#allocation2 + $0xf8] sm:$0xff]
        %v491 = vld [vmem:[#allocation2 + $0x100] sm:$0x3]
        %v492 = vld [vmem:[#allocation2 + $0x108] sm:$0xff]
        %v493 = vld [vmem:[#allocation2 + $0x110] sm:$0xff]
        %v494 = vld [vmem:[#allocation2 + $0x118] sm:$0x3]
        %v495 = vld [vmem:[#allocation2 + $0x120] sm:$0xff]
        %v496 = vld [vmem:[#allocation2 + $0x128] sm:$0xff]
        %v497 = vld [vmem:[#allocation2 + $0x130] sm:$0x3]
        %v498 = vld [vmem:[#allocation2 + $0x138] sm:$0xff]
        %v499 = vld [vmem:[#allocation2 + $0x140] sm:$0xff]
        %v500 = vld [vmem:[#allocation2 + $0x148] sm:$0x3]
        %v501 = vld [vmem:[#allocation2 + $0x150] sm:$0xff]
        %v502 = vld [vmem:[#allocation2 + $0x158] sm:$0xff]
        %v503 = vld [vmem:[#allocation2 + $0x160] sm:$0x3]
        %v504 = vld [vmem:[#allocation2 + $0x168] sm:$0xff]
        %v505 = vld [vmem:[#allocation2 + $0x170] sm:$0xff]
        %v506 = vld [vmem:[#allocation2 + $0x178] sm:$0x3]
        %v507 = vld [vmem:[#allocation2 + $0x180] sm:$0xff]
        %v508 = vld [vmem:[#allocation2 + $0x188] sm:$0xff]
        %v509 = vld [vmem:[#allocation2 + $0x190] sm:$0x3]
        %v510 = vld [vmem:[#allocation2 + $0x198] sm:$0xff]
        %v511 = vld [vmem:[#allocation2 + $0x1a0] sm:$0xff]
        %v512 = vld [vmem:[#allocation2 + $0x1a8] sm:$0x3]
        %vm561 = vcmask 1046528
        %v562 = vrot.slane %v459, 1
        %v563 = vrot.slane %v460, 1
        %v564 = vsel %vm561, %v562, %v563
        %v565 = vrot.slane %v461, 1
        %v566 = vsel %vm561, %v563, %v565
        %v567 = vrot.slane %v462, 1
        %v568 = vrot.slane %v463, 1
        %v569 = vsel %vm561, %v567, %v568
        %v570 = vrot.slane %v464, 1
        %v571 = vsel %vm561, %v568, %v570
        %v572 = vrot.slane %v465, 1
        %v573 = vrot.slane %v466, 1
        %v574 = vsel %vm561, %v572, %v573
        %v575 = vrot.slane %v467, 1
        %v576 = vsel %vm561, %v573, %v575
        %v577 = vrot.slane %v468, 1
        %v578 = vrot.slane %v469, 1
        %v579 = vsel %vm561, %v577, %v578
        %v580 = vrot.slane %v470, 1
        %v581 = vsel %vm561, %v578, %v580
        %v582 = vrot.slane %v471, 1
        %v583 = vrot.slane %v472, 1
        %v584 = vsel %vm561, %v582, %v583
        %v585 = vrot.slane %v473, 1
        %v586 = vsel %vm561, %v583, %v585
        %v587 = vrot.slane %v474, 1
        %v588 = vrot.slane %v475, 1
        %v589 = vsel %vm561, %v587, %v588
        %v590 = vrot.slane %v476, 1
        %v591 = vsel %vm561, %v588, %v590
        %v592 = vrot.slane %v477, 1
        %v593 = vrot.slane %v478, 1
        %v594 = vsel %vm561, %v592, %v593
        %v595 = vrot.slane %v479, 1
        %v596 = vsel %vm561, %v593, %v595
        %v597 = vrot.slane %v480, 1
        %v598 = vrot.slane %v481, 1
        %v599 = vsel %vm561, %v597, %v598
        %v600 = vrot.slane %v482, 1
        %v601 = vsel %vm561, %v598, %v600
        %v602 = vrot.slane %v483, 1
        %v603 = vrot.slane %v484, 1
        %v604 = vsel %vm561, %v602, %v603
        %v605 = vrot.slane %v485, 1
        %v606 = vsel %vm561, %v603, %v605
        %v607 = vrot.slane %v486, 1
        %v608 = vrot.slane %v487, 1
        %v609 = vsel %vm561, %v607, %v608
        %v610 = vrot.slane %v488, 1
        %v611 = vsel %vm561, %v608, %v610
        %v612 = vrot.slane %v489, 1
        %v613 = vrot.slane %v490, 1
        %v614 = vsel %vm561, %v612, %v613
        %v615 = vrot.slane %v491, 1
        %v616 = vsel %vm561, %v613, %v615
        %v617 = vrot.slane %v492, 1
        %v618 = vrot.slane %v493, 1
        %v619 = vsel %vm561, %v617, %v618
        %v620 = vrot.slane %v494, 1
        %v621 = vsel %vm561, %v618, %v620
        %v622 = vrot.slane %v495, 1
        %v623 = vrot.slane %v496, 1
        %v624 = vsel %vm561, %v622, %v623
        %v625 = vrot.slane %v497, 1
        %v626 = vsel %vm561, %v623, %v625
        %v627 = vrot.slane %v498, 1
        %v628 = vrot.slane %v499, 1
        %v629 = vsel %vm561, %v627, %v628
        %v630 = vrot.slane %v500, 1
        %v631 = vsel %vm561, %v628, %v630
        %v632 = vrot.slane %v501, 1
        %v633 = vrot.slane %v502, 1
        %v634 = vsel %vm561, %v632, %v633
        %v635 = vrot.slane %v503, 1
        %v636 = vsel %vm561, %v633, %v635
        %v637 = vrot.slane %v504, 1
        %v638 = vrot.slane %v505, 1
        %v639 = vsel %vm561, %v637, %v638
        %v640 = vrot.slane %v506, 1
        %v641 = vsel %vm561, %v638, %v640
        %vm642 = vcmask 1045504
        %v643 = vrot.slane %v459, 2
        %v644 = vrot.slane %v460, 2
        %v645 = vsel %vm642, %v643, %v644
        %v646 = vrot.slane %v461, 2
        %v647 = vsel %vm642, %v644, %v646
        %v648 = vrot.slane %v462, 2
        %v649 = vrot.slane %v463, 2
        %v650 = vsel %vm642, %v648, %v649
        %v651 = vrot.slane %v464, 2
        %v652 = vsel %vm642, %v649, %v651
        %v653 = vrot.slane %v465, 2
        %v654 = vrot.slane %v466, 2
        %v655 = vsel %vm642, %v653, %v654
        %v656 = vrot.slane %v467, 2
        %v657 = vsel %vm642, %v654, %v656
        %v658 = vrot.slane %v468, 2
        %v659 = vrot.slane %v469, 2
        %v660 = vsel %vm642, %v658, %v659
        %v661 = vrot.slane %v470, 2
        %v662 = vsel %vm642, %v659, %v661
        %v663 = vrot.slane %v471, 2
        %v664 = vrot.slane %v472, 2
        %v665 = vsel %vm642, %v663, %v664
        %v666 = vrot.slane %v473, 2
        %v667 = vsel %vm642, %v664, %v666
        %v668 = vrot.slane %v474, 2
        %v669 = vrot.slane %v475, 2
        %v670 = vsel %vm642, %v668, %v669
        %v671 = vrot.slane %v476, 2
        %v672 = vsel %vm642, %v669, %v671
        %v673 = vrot.slane %v477, 2
        %v674 = vrot.slane %v478, 2
        %v675 = vsel %vm642, %v673, %v674
        %v676 = vrot.slane %v479, 2
        %v677 = vsel %vm642, %v674, %v676
        %v678 = vrot.slane %v480, 2
        %v679 = vrot.slane %v481, 2
        %v680 = vsel %vm642, %v678, %v679
        %v681 = vrot.slane %v482, 2
        %v682 = vsel %vm642, %v679, %v681
        %v683 = vrot.slane %v483, 2
        %v684 = vrot.slane %v484, 2
        %v685 = vsel %vm642, %v683, %v684
        %v686 = vrot.slane %v485, 2
        %v687 = vsel %vm642, %v684, %v686
        %v688 = vrot.slane %v486, 2
        %v689 = vrot.slane %v487, 2
        %v690 = vsel %vm642, %v688, %v689
        %v691 = vrot.slane %v488, 2
        %v692 = vsel %vm642, %v689, %v691
        %v693 = vrot.slane %v489, 2
        %v694 = vrot.slane %v490, 2
        %v695 = vsel %vm642, %v693, %v694
        %v696 = vrot.slane %v491, 2
        %v697 = vsel %vm642, %v694, %v696
        %v698 = vrot.slane %v492, 2
        %v699 = vrot.slane %v493, 2
        %v700 = vsel %vm642, %v698, %v699
        %v701 = vrot.slane %v494, 2
        %v702 = vsel %vm642, %v699, %v701
        %v703 = vrot.slane %v495, 2
        %v704 = vrot.slane %v496, 2
        %v705 = vsel %vm642, %v703, %v704
        %v706 = vrot.slane %v497, 2
        %v707 = vsel %vm642, %v704, %v706
        %v708 = vrot.slane %v498, 2
        %v709 = vrot.slane %v499, 2
        %v710 = vsel %vm642, %v708, %v709
        %v711 = vrot.slane %v500, 2
        %v712 = vsel %vm642, %v709, %v711
        %v713 = vrot.slane %v501, 2
        %v714 = vrot.slane %v502, 2
        %v715 = vsel %vm642, %v713, %v714
        %v716 = vrot.slane %v503, 2
        %v717 = vsel %vm642, %v714, %v716
        %v718 = vrot.slane %v504, 2
        %v719 = vrot.slane %v505, 2
        %v720 = vsel %vm642, %v718, %v719
        %v721 = vrot.slane %v506, 2
        %v722 = vsel %vm642, %v719, %v721
        %v726 = vrot.slane %v507, 1
        %v727 = vrot.slane %v508, 1
        %v728 = vsel %vm561, %v726, %v727
        %v729 = vrot.slane %v509, 1
        %v730 = vsel %vm561, %v727, %v729
        %v731 = vrot.slane %v507, 2
        %v732 = vrot.slane %v508, 2
        %v733 = vsel %vm642, %v731, %v732
        %v734 = vrot.slane %v509, 2
        %v735 = vsel %vm642, %v732, %v734
        %v739 = vrot.slane %v510, 1
        %v740 = vrot.slane %v511, 1
        %v741 = vsel %vm561, %v739, %v740
        %v742 = vrot.slane %v512, 1
        %v743 = vsel %vm561, %v740, %v742
        %v744 = vrot.slane %v510, 2
        %v745 = vrot.slane %v511, 2
        %v746 = vsel %vm642, %v744, %v745
        %v747 = vrot.slane %v512, 2
        %v748 = vsel %vm642, %v745, %v747
        %749 = vrot.lane.b32.xlu0 %v564, 16
        %v750 = vpop.permute.xlu0 %749
        %751 = vrot.lane.b32.xlu0 %v566, 16
        %v752 = vpop.permute.xlu0 %751
        %753 = vrot.lane.b32.xlu0 %v569, 16
        %v754 = vpop.permute.xlu0 %753
        %755 = vrot.lane.b32.xlu0 %v571, 16
        %v756 = vpop.permute.xlu0 %755
        %757 = vrot.lane.b32.xlu0 %v574, 16
        %v758 = vpop.permute.xlu0 %757
        %759 = vrot.lane.b32.xlu0 %v576, 16
        %v760 = vpop.permute.xlu0 %759
        %761 = vrot.lane.b32.xlu0 %v579, 16
        %v762 = vpop.permute.xlu0 %761
        %763 = vrot.lane.b32.xlu0 %v581, 16
        %v764 = vpop.permute.xlu0 %763
        %765 = vrot.lane.b32.xlu0 %v584, 16
        %v766 = vpop.permute.xlu0 %765
        %767 = vrot.lane.b32.xlu0 %v586, 16
        %v768 = vpop.permute.xlu0 %767
        %769 = vrot.lane.b32.xlu0 %v589, 16
        %v770 = vpop.permute.xlu0 %769
        %771 = vrot.lane.b32.xlu0 %v591, 16
        %v772 = vpop.permute.xlu0 %771
        %773 = vrot.lane.b32.xlu0 %v594, 16
        %v774 = vpop.permute.xlu0 %773
        %775 = vrot.lane.b32.xlu0 %v596, 16
        %v776 = vpop.permute.xlu0 %775
        %777 = vrot.lane.b32.xlu0 %v599, 16
        %v778 = vpop.permute.xlu0 %777
        %779 = vrot.lane.b32.xlu0 %v601, 16
        %v780 = vpop.permute.xlu0 %779
        %781 = vrot.lane.b32.xlu0 %v604, 16
        %v782 = vpop.permute.xlu0 %781
        %783 = vrot.lane.b32.xlu0 %v606, 16
        %v784 = vpop.permute.xlu0 %783
        %785 = vrot.lane.b32.xlu0 %v609, 16
        %v786 = vpop.permute.xlu0 %785
        %787 = vrot.lane.b32.xlu0 %v611, 16
        %v788 = vpop.permute.xlu0 %787
        %789 = vrot.lane.b32.xlu0 %v614, 16
        %v790 = vpop.permute.xlu0 %789
        %791 = vrot.lane.b32.xlu0 %v616, 16
        %v792 = vpop.permute.xlu0 %791
        %793 = vrot.lane.b32.xlu0 %v619, 16
        %v794 = vpop.permute.xlu0 %793
        %795 = vrot.lane.b32.xlu0 %v621, 16
        %v796 = vpop.permute.xlu0 %795
        %797 = vrot.lane.b32.xlu0 %v624, 16
        %v798 = vpop.permute.xlu0 %797
        %799 = vrot.lane.b32.xlu0 %v626, 16
        %v800 = vpop.permute.xlu0 %799
        %801 = vrot.lane.b32.xlu0 %v629, 16
        %v802 = vpop.permute.xlu0 %801
        %803 = vrot.lane.b32.xlu0 %v631, 16
        %v804 = vpop.permute.xlu0 %803
        %805 = vrot.lane.b32.xlu0 %v634, 16
        %v806 = vpop.permute.xlu0 %805
        %807 = vrot.lane.b32.xlu0 %v636, 16
        %v808 = vpop.permute.xlu0 %807
        %809 = vrot.lane.b32.xlu0 %v639, 16
        %v810 = vpop.permute.xlu0 %809
        %811 = vrot.lane.b32.xlu0 %v641, 16
        %v812 = vpop.permute.xlu0 %811
        %845 = vrot.lane.b32.xlu0 %v645, 32
        %v846 = vpop.permute.xlu0 %845
        %847 = vrot.lane.b32.xlu0 %v647, 32
        %v848 = vpop.permute.xlu0 %847
        %849 = vrot.lane.b32.xlu0 %v650, 32
        %v850 = vpop.permute.xlu0 %849
        %851 = vrot.lane.b32.xlu0 %v652, 32
        %v852 = vpop.permute.xlu0 %851
        %853 = vrot.lane.b32.xlu0 %v655, 32
        %v854 = vpop.permute.xlu0 %853
        %855 = vrot.lane.b32.xlu0 %v657, 32
        %v856 = vpop.permute.xlu0 %855
        %857 = vrot.lane.b32.xlu0 %v660, 32
        %v858 = vpop.permute.xlu0 %857
        %859 = vrot.lane.b32.xlu0 %v662, 32
        %v860 = vpop.permute.xlu0 %859
        %861 = vrot.lane.b32.xlu0 %v665, 32
        %v862 = vpop.permute.xlu0 %861
        %863 = vrot.lane.b32.xlu0 %v667, 32
        %v864 = vpop.permute.xlu0 %863
        %865 = vrot.lane.b32.xlu0 %v670, 32
        %v866 = vpop.permute.xlu0 %865
        %867 = vrot.lane.b32.xlu0 %v672, 32
        %v868 = vpop.permute.xlu0 %867
        %869 = vrot.lane.b32.xlu0 %v675, 32
        %v870 = vpop.permute.xlu0 %869
        %871 = vrot.lane.b32.xlu0 %v677, 32
        %v872 = vpop.permute.xlu0 %871
        %873 = vrot.lane.b32.xlu0 %v680, 32
        %v874 = vpop.permute.xlu0 %873
        %875 = vrot.lane.b32.xlu0 %v682, 32
        %v876 = vpop.permute.xlu0 %875
        %877 = vrot.lane.b32.xlu0 %v685, 32
        %v878 = vpop.permute.xlu0 %877
        %879 = vrot.lane.b32.xlu0 %v687, 32
        %v880 = vpop.permute.xlu0 %879
        %881 = vrot.lane.b32.xlu0 %v690, 32
        %v882 = vpop.permute.xlu0 %881
        %883 = vrot.lane.b32.xlu0 %v692, 32
        %v884 = vpop.permute.xlu0 %883
        %885 = vrot.lane.b32.xlu0 %v695, 32
        %v886 = vpop.permute.xlu0 %885
        %887 = vrot.lane.b32.xlu0 %v697, 32
        %v888 = vpop.permute.xlu0 %887
        %889 = vrot.lane.b32.xlu0 %v700, 32
        %v890 = vpop.permute.xlu0 %889
        %891 = vrot.lane.b32.xlu0 %v702, 32
        %v892 = vpop.permute.xlu0 %891
        %893 = vrot.lane.b32.xlu0 %v705, 32
        %v894 = vpop.permute.xlu0 %893
        %895 = vrot.lane.b32.xlu0 %v707, 32
        %v896 = vpop.permute.xlu0 %895
        %897 = vrot.lane.b32.xlu0 %v710, 32
        %v898 = vpop.permute.xlu0 %897
        %899 = vrot.lane.b32.xlu0 %v712, 32
        %v900 = vpop.permute.xlu0 %899
        %901 = vrot.lane.b32.xlu0 %v715, 32
        %v902 = vpop.permute.xlu0 %901
        %903 = vrot.lane.b32.xlu0 %v717, 32
        %v904 = vpop.permute.xlu0 %903
        %905 = vrot.lane.b32.xlu0 %v720, 32
        %v906 = vpop.permute.xlu0 %905
        %907 = vrot.lane.b32.xlu0 %v722, 32
        %v908 = vpop.permute.xlu0 %907
        %941 = vrot.lane.b32.xlu0 %v462, 48
        %v942 = vpop.permute.xlu0 %941
        %943 = vrot.lane.b32.xlu0 %v463, 48
        %v944 = vpop.permute.xlu0 %943
        %945 = vrot.lane.b32.xlu0 %v465, 48
        %v946 = vpop.permute.xlu0 %945
        %947 = vrot.lane.b32.xlu0 %v466, 48
        %v948 = vpop.permute.xlu0 %947
        %949 = vrot.lane.b32.xlu0 %v468, 48
        %v950 = vpop.permute.xlu0 %949
        %951 = vrot.lane.b32.xlu0 %v469, 48
        %v952 = vpop.permute.xlu0 %951
        %953 = vrot.lane.b32.xlu0 %v471, 48
        %v954 = vpop.permute.xlu0 %953
        %955 = vrot.lane.b32.xlu0 %v472, 48
        %v956 = vpop.permute.xlu0 %955
        %957 = vrot.lane.b32.xlu0 %v474, 48
        %v958 = vpop.permute.xlu0 %957
        %959 = vrot.lane.b32.xlu0 %v475, 48
        %v960 = vpop.permute.xlu0 %959
        %961 = vrot.lane.b32.xlu0 %v477, 48
        %v962 = vpop.permute.xlu0 %961
        %963 = vrot.lane.b32.xlu0 %v478, 48
        %v964 = vpop.permute.xlu0 %963
        %965 = vrot.lane.b32.xlu0 %v480, 48
        %v966 = vpop.permute.xlu0 %965
        %967 = vrot.lane.b32.xlu0 %v481, 48
        %v968 = vpop.permute.xlu0 %967
        %969 = vrot.lane.b32.xlu0 %v483, 48
        %v970 = vpop.permute.xlu0 %969
        %971 = vrot.lane.b32.xlu0 %v484, 48
        %v972 = vpop.permute.xlu0 %971
        %973 = vrot.lane.b32.xlu0 %v486, 48
        %v974 = vpop.permute.xlu0 %973
        %975 = vrot.lane.b32.xlu0 %v487, 48
        %v976 = vpop.permute.xlu0 %975
        %977 = vrot.lane.b32.xlu0 %v489, 48
        %v978 = vpop.permute.xlu0 %977
        %979 = vrot.lane.b32.xlu0 %v490, 48
        %v980 = vpop.permute.xlu0 %979
        %981 = vrot.lane.b32.xlu0 %v492, 48
        %v982 = vpop.permute.xlu0 %981
        %983 = vrot.lane.b32.xlu0 %v493, 48
        %v984 = vpop.permute.xlu0 %983
        %985 = vrot.lane.b32.xlu0 %v495, 48
        %v986 = vpop.permute.xlu0 %985
        %987 = vrot.lane.b32.xlu0 %v496, 48
        %v988 = vpop.permute.xlu0 %987
        %989 = vrot.lane.b32.xlu0 %v498, 48
        %v990 = vpop.permute.xlu0 %989
        %991 = vrot.lane.b32.xlu0 %v499, 48
        %v992 = vpop.permute.xlu0 %991
        %993 = vrot.lane.b32.xlu0 %v501, 48
        %v994 = vpop.permute.xlu0 %993
        %995 = vrot.lane.b32.xlu0 %v502, 48
        %v996 = vpop.permute.xlu0 %995
        %997 = vrot.lane.b32.xlu0 %v504, 48
        %v998 = vpop.permute.xlu0 %997
        %999 = vrot.lane.b32.xlu0 %v505, 48
        %v1000 = vpop.permute.xlu0 %999
        %1001 = vrot.lane.b32.xlu0 %v507, 48
        %v1002 = vpop.permute.xlu0 %1001
        %1003 = vrot.lane.b32.xlu0 %v508, 48
        %v1004 = vpop.permute.xlu0 %1003
        %1037 = vrot.lane.b32.xlu0 %v569, 64
        %v1038 = vpop.permute.xlu0 %1037
        %1039 = vrot.lane.b32.xlu0 %v571, 64
        %v1040 = vpop.permute.xlu0 %1039
        %1041 = vrot.lane.b32.xlu0 %v574, 64
        %v1042 = vpop.permute.xlu0 %1041
        %1043 = vrot.lane.b32.xlu0 %v576, 64
        %v1044 = vpop.permute.xlu0 %1043
        %1045 = vrot.lane.b32.xlu0 %v579, 64
        %v1046 = vpop.permute.xlu0 %1045
        %1047 = vrot.lane.b32.xlu0 %v581, 64
        %v1048 = vpop.permute.xlu0 %1047
        %1049 = vrot.lane.b32.xlu0 %v584, 64
        %v1050 = vpop.permute.xlu0 %1049
        %1051 = vrot.lane.b32.xlu0 %v586, 64
        %v1052 = vpop.permute.xlu0 %1051
        %1053 = vrot.lane.b32.xlu0 %v589, 64
        %v1054 = vpop.permute.xlu0 %1053
        %1055 = vrot.lane.b32.xlu0 %v591, 64
        %v1056 = vpop.permute.xlu0 %1055
        %1057 = vrot.lane.b32.xlu0 %v594, 64
        %v1058 = vpop.permute.xlu0 %1057
        %1059 = vrot.lane.b32.xlu0 %v596, 64
        %v1060 = vpop.permute.xlu0 %1059
        %1061 = vrot.lane.b32.xlu0 %v599, 64
        %v1062 = vpop.permute.xlu0 %1061
        %1063 = vrot.lane.b32.xlu0 %v601, 64
        %v1064 = vpop.permute.xlu0 %1063
        %1065 = vrot.lane.b32.xlu0 %v604, 64
        %v1066 = vpop.permute.xlu0 %1065
        %1067 = vrot.lane.b32.xlu0 %v606, 64
        %v1068 = vpop.permute.xlu0 %1067
        %1069 = vrot.lane.b32.xlu0 %v609, 64
        %v1070 = vpop.permute.xlu0 %1069
        %1071 = vrot.lane.b32.xlu0 %v611, 64
        %v1072 = vpop.permute.xlu0 %1071
        %1073 = vrot.lane.b32.xlu0 %v614, 64
        %v1074 = vpop.permute.xlu0 %1073
        %1075 = vrot.lane.b32.xlu0 %v616, 64
        %v1076 = vpop.permute.xlu0 %1075
        %1077 = vrot.lane.b32.xlu0 %v619, 64
        %v1078 = vpop.permute.xlu0 %1077
        %1079 = vrot.lane.b32.xlu0 %v621, 64
        %v1080 = vpop.permute.xlu0 %1079
        %1081 = vrot.lane.b32.xlu0 %v624, 64
        %v1082 = vpop.permute.xlu0 %1081
        %1083 = vrot.lane.b32.xlu0 %v626, 64
        %v1084 = vpop.permute.xlu0 %1083
        %1085 = vrot.lane.b32.xlu0 %v629, 64
        %v1086 = vpop.permute.xlu0 %1085
        %1087 = vrot.lane.b32.xlu0 %v631, 64
        %v1088 = vpop.permute.xlu0 %1087
        %1089 = vrot.lane.b32.xlu0 %v634, 64
        %v1090 = vpop.permute.xlu0 %1089
        %1091 = vrot.lane.b32.xlu0 %v636, 64
        %v1092 = vpop.permute.xlu0 %1091
        %1093 = vrot.lane.b32.xlu0 %v639, 64
        %v1094 = vpop.permute.xlu0 %1093
        %1095 = vrot.lane.b32.xlu0 %v641, 64
        %v1096 = vpop.permute.xlu0 %1095
        %1097 = vrot.lane.b32.xlu0 %v728, 64
        %v1098 = vpop.permute.xlu0 %1097
        %1099 = vrot.lane.b32.xlu0 %v730, 64
        %v1100 = vpop.permute.xlu0 %1099
        %1133 = vrot.lane.b32.xlu0 %v650, 80
        %v1134 = vpop.permute.xlu0 %1133
        %1135 = vrot.lane.b32.xlu0 %v652, 80
        %v1136 = vpop.permute.xlu0 %1135
        %1137 = vrot.lane.b32.xlu0 %v655, 80
        %v1138 = vpop.permute.xlu0 %1137
        %1139 = vrot.lane.b32.xlu0 %v657, 80
        %v1140 = vpop.permute.xlu0 %1139
        %1141 = vrot.lane.b32.xlu0 %v660, 80
        %v1142 = vpop.permute.xlu0 %1141
        %1143 = vrot.lane.b32.xlu0 %v662, 80
        %v1144 = vpop.permute.xlu0 %1143
        %1145 = vrot.lane.b32.xlu0 %v665, 80
        %v1146 = vpop.permute.xlu0 %1145
        %1147 = vrot.lane.b32.xlu0 %v667, 80
        %v1148 = vpop.permute.xlu0 %1147
        %1149 = vrot.lane.b32.xlu0 %v670, 80
        %v1150 = vpop.permute.xlu0 %1149
        %1151 = vrot.lane.b32.xlu0 %v672, 80
        %v1152 = vpop.permute.xlu0 %1151
        %1153 = vrot.lane.b32.xlu0 %v675, 80
        %v1154 = vpop.permute.xlu0 %1153
        %1155 = vrot.lane.b32.xlu0 %v677, 80
        %v1156 = vpop.permute.xlu0 %1155
        %1157 = vrot.lane.b32.xlu0 %v680, 80
        %v1158 = vpop.permute.xlu0 %1157
        %1159 = vrot.lane.b32.xlu0 %v682, 80
        %v1160 = vpop.permute.xlu0 %1159
        %1161 = vrot.lane.b32.xlu0 %v685, 80
        %v1162 = vpop.permute.xlu0 %1161
        %1163 = vrot.lane.b32.xlu0 %v687, 80
        %v1164 = vpop.permute.xlu0 %1163
        %1165 = vrot.lane.b32.xlu0 %v690, 80
        %v1166 = vpop.permute.xlu0 %1165
        %1167 = vrot.lane.b32.xlu0 %v692, 80
        %v1168 = vpop.permute.xlu0 %1167
        %1169 = vrot.lane.b32.xlu0 %v695, 80
        %v1170 = vpop.permute.xlu0 %1169
        %1171 = vrot.lane.b32.xlu0 %v697, 80
        %v1172 = vpop.permute.xlu0 %1171
        %1173 = vrot.lane.b32.xlu0 %v700, 80
        %v1174 = vpop.permute.xlu0 %1173
        %1175 = vrot.lane.b32.xlu0 %v702, 80
        %v1176 = vpop.permute.xlu0 %1175
        %1177 = vrot.lane.b32.xlu0 %v705, 80
        %v1178 = vpop.permute.xlu0 %1177
        %1179 = vrot.lane.b32.xlu0 %v707, 80
        %v1180 = vpop.permute.xlu0 %1179
        %1181 = vrot.lane.b32.xlu0 %v710, 80
        %v1182 = vpop.permute.xlu0 %1181
        %1183 = vrot.lane.b32.xlu0 %v712, 80
        %v1184 = vpop.permute.xlu0 %1183
        %1185 = vrot.lane.b32.xlu0 %v715, 80
        %v1186 = vpop.permute.xlu0 %1185
        %1187 = vrot.lane.b32.xlu0 %v717, 80
        %v1188 = vpop.permute.xlu0 %1187
        %1189 = vrot.lane.b32.xlu0 %v720, 80
        %v1190 = vpop.permute.xlu0 %1189
        %1191 = vrot.lane.b32.xlu0 %v722, 80
        %v1192 = vpop.permute.xlu0 %1191
        %1193 = vrot.lane.b32.xlu0 %v733, 80
        %v1194 = vpop.permute.xlu0 %1193
        %1195 = vrot.lane.b32.xlu0 %v735, 80
        %v1196 = vpop.permute.xlu0 %1195
        %1229 = vrot.lane.b32.xlu0 %v465, 96
        %v1230 = vpop.permute.xlu0 %1229
        %1231 = vrot.lane.b32.xlu0 %v466, 96
        %v1232 = vpop.permute.xlu0 %1231
        %1233 = vrot.lane.b32.xlu0 %v468, 96
        %v1234 = vpop.permute.xlu0 %1233
        %1235 = vrot.lane.b32.xlu0 %v469, 96
        %v1236 = vpop.permute.xlu0 %1235
        %1237 = vrot.lane.b32.xlu0 %v471, 96
        %v1238 = vpop.permute.xlu0 %1237
        %1239 = vrot.lane.b32.xlu0 %v472, 96
        %v1240 = vpop.permute.xlu0 %1239
        %1241 = vrot.lane.b32.xlu0 %v474, 96
        %v1242 = vpop.permute.xlu0 %1241
        %1243 = vrot.lane.b32.xlu0 %v475, 96
        %v1244 = vpop.permute.xlu0 %1243
        %1245 = vrot.lane.b32.xlu0 %v477, 96
        %v1246 = vpop.permute.xlu0 %1245
        %1247 = vrot.lane.b32.xlu0 %v478, 96
        %v1248 = vpop.permute.xlu0 %1247
        %1249 = vrot.lane.b32.xlu0 %v480, 96
        %v1250 = vpop.permute.xlu0 %1249
        %1251 = vrot.lane.b32.xlu0 %v481, 96
        %v1252 = vpop.permute.xlu0 %1251
        %1253 = vrot.lane.b32.xlu0 %v483, 96
        %v1254 = vpop.permute.xlu0 %1253
        %1255 = vrot.lane.b32.xlu0 %v484, 96
        %v1256 = vpop.permute.xlu0 %1255
        %1257 = vrot.lane.b32.xlu0 %v486, 96
        %v1258 = vpop.permute.xlu0 %1257
        %1259 = vrot.lane.b32.xlu0 %v487, 96
        %v1260 = vpop.permute.xlu0 %1259
        %1261 = vrot.lane.b32.xlu0 %v489, 96
        %v1262 = vpop.permute.xlu0 %1261
        %1263 = vrot.lane.b32.xlu0 %v490, 96
        %v1264 = vpop.permute.xlu0 %1263
        %1265 = vrot.lane.b32.xlu0 %v492, 96
        %v1266 = vpop.permute.xlu0 %1265
        %1267 = vrot.lane.b32.xlu0 %v493, 96
        %v1268 = vpop.permute.xlu0 %1267
        %1269 = vrot.lane.b32.xlu0 %v495, 96
        %v1270 = vpop.permute.xlu0 %1269
        %1271 = vrot.lane.b32.xlu0 %v496, 96
        %v1272 = vpop.permute.xlu0 %1271
        %1273 = vrot.lane.b32.xlu0 %v498, 96
        %v1274 = vpop.permute.xlu0 %1273
        %1275 = vrot.lane.b32.xlu0 %v499, 96
        %v1276 = vpop.permute.xlu0 %1275
        %1277 = vrot.lane.b32.xlu0 %v501, 96
        %v1278 = vpop.permute.xlu0 %1277
        %1279 = vrot.lane.b32.xlu0 %v502, 96
        %v1280 = vpop.permute.xlu0 %1279
        %1281 = vrot.lane.b32.xlu0 %v504, 96
        %v1282 = vpop.permute.xlu0 %1281
        %1283 = vrot.lane.b32.xlu0 %v505, 96
        %v1284 = vpop.permute.xlu0 %1283
        %1285 = vrot.lane.b32.xlu0 %v507, 96
        %v1286 = vpop.permute.xlu0 %1285
        %1287 = vrot.lane.b32.xlu0 %v508, 96
        %v1288 = vpop.permute.xlu0 %1287
        %1289 = vrot.lane.b32.xlu0 %v510, 96
        %v1290 = vpop.permute.xlu0 %1289
        %1291 = vrot.lane.b32.xlu0 %v511, 96
        %v1292 = vpop.permute.xlu0 %1291
        %1325 = vrot.lane.b32.xlu0 %v574, 112
        %v1326 = vpop.permute.xlu0 %1325
        %1327 = vrot.lane.b32.xlu0 %v576, 112
        %v1328 = vpop.permute.xlu0 %1327
        %1329 = vrot.lane.b32.xlu0 %v579, 112
        %v1330 = vpop.permute.xlu0 %1329
        %1331 = vrot.lane.b32.xlu0 %v581, 112
        %v1332 = vpop.permute.xlu0 %1331
        %1333 = vrot.lane.b32.xlu0 %v584, 112
        %v1334 = vpop.permute.xlu0 %1333
        %1335 = vrot.lane.b32.xlu0 %v586, 112
        %v1336 = vpop.permute.xlu0 %1335
        %1337 = vrot.lane.b32.xlu0 %v589, 112
        %v1338 = vpop.permute.xlu0 %1337
        %1339 = vrot.lane.b32.xlu0 %v591, 112
        %v1340 = vpop.permute.xlu0 %1339
        %1341 = vrot.lane.b32.xlu0 %v594, 112
        %v1342 = vpop.permute.xlu0 %1341
        %1343 = vrot.lane.b32.xlu0 %v596, 112
        %v1344 = vpop.permute.xlu0 %1343
        %1345 = vrot.lane.b32.xlu0 %v599, 112
        %v1346 = vpop.permute.xlu0 %1345
        %1347 = vrot.lane.b32.xlu0 %v601, 112
        %v1348 = vpop.permute.xlu0 %1347
        %1349 = vrot.lane.b32.xlu0 %v604, 112
        %v1350 = vpop.permute.xlu0 %1349
        %1351 = vrot.lane.b32.xlu0 %v606, 112
        %v1352 = vpop.permute.xlu0 %1351
        %1353 = vrot.lane.b32.xlu0 %v609, 112
        %v1354 = vpop.permute.xlu0 %1353
        %1355 = vrot.lane.b32.xlu0 %v611, 112
        %v1356 = vpop.permute.xlu0 %1355
        %1357 = vrot.lane.b32.xlu0 %v614, 112
        %v1358 = vpop.permute.xlu0 %1357
        %1359 = vrot.lane.b32.xlu0 %v616, 112
        %v1360 = vpop.permute.xlu0 %1359
        %1361 = vrot.lane.b32.xlu0 %v619, 112
        %v1362 = vpop.permute.xlu0 %1361
        %1363 = vrot.lane.b32.xlu0 %v621, 112
        %v1364 = vpop.permute.xlu0 %1363
        %1365 = vrot.lane.b32.xlu0 %v624, 112
        %v1366 = vpop.permute.xlu0 %1365
        %1367 = vrot.lane.b32.xlu0 %v626, 112
        %v1368 = vpop.permute.xlu0 %1367
        %1369 = vrot.lane.b32.xlu0 %v629, 112
        %v1370 = vpop.permute.xlu0 %1369
        %1371 = vrot.lane.b32.xlu0 %v631, 112
        %v1372 = vpop.permute.xlu0 %1371
        %1373 = vrot.lane.b32.xlu0 %v634, 112
        %v1374 = vpop.permute.xlu0 %1373
        %1375 = vrot.lane.b32.xlu0 %v636, 112
        %v1376 = vpop.permute.xlu0 %1375
        %1377 = vrot.lane.b32.xlu0 %v639, 112
        %v1378 = vpop.permute.xlu0 %1377
        %1379 = vrot.lane.b32.xlu0 %v641, 112
        %v1380 = vpop.permute.xlu0 %1379
        %1381 = vrot.lane.b32.xlu0 %v728, 112
        %v1382 = vpop.permute.xlu0 %1381
        %1383 = vrot.lane.b32.xlu0 %v730, 112
        %v1384 = vpop.permute.xlu0 %1383
        %1385 = vrot.lane.b32.xlu0 %v741, 112
        %v1386 = vpop.permute.xlu0 %1385
        %1387 = vrot.lane.b32.xlu0 %v743, 112
        %v1388 = vpop.permute.xlu0 %1387
        %v1421 = vsel %vm319, %v459, %v750
        %v1422 = vsel %vm319, %v460, %v752
        %v1423 = vsel %vm319, %v462, %v754
        %v1424 = vsel %vm319, %v463, %v756
        %v1425 = vsel %vm319, %v465, %v758
        %v1426 = vsel %vm319, %v466, %v760
        %v1427 = vsel %vm319, %v468, %v762
        %v1428 = vsel %vm319, %v469, %v764
        %v1429 = vsel %vm319, %v471, %v766
        %v1430 = vsel %vm319, %v472, %v768
        %v1431 = vsel %vm319, %v474, %v770
        %v1432 = vsel %vm319, %v475, %v772
        %v1433 = vsel %vm319, %v477, %v774
        %v1434 = vsel %vm319, %v478, %v776
        %v1435 = vsel %vm319, %v480, %v778
        %v1436 = vsel %vm319, %v481, %v780
        %v1437 = vsel %vm319, %v483, %v782
        %v1438 = vsel %vm319, %v484, %v784
        %v1439 = vsel %vm319, %v486, %v786
        %v1440 = vsel %vm319, %v487, %v788
        %v1441 = vsel %vm319, %v489, %v790
        %v1442 = vsel %vm319, %v490, %v792
        %v1443 = vsel %vm319, %v492, %v794
        %v1444 = vsel %vm319, %v493, %v796
        %v1445 = vsel %vm319, %v495, %v798
        %v1446 = vsel %vm319, %v496, %v800
        %v1447 = vsel %vm319, %v498, %v802
        %v1448 = vsel %vm319, %v499, %v804
        %v1449 = vsel %vm319, %v501, %v806
        %v1450 = vsel %vm319, %v502, %v808
        %v1451 = vsel %vm319, %v504, %v810
        %v1452 = vsel %vm319, %v505, %v812
        %vm1453 = vcmask 261120
        %v1454 = vsel %vm1453, %v1421, %v846
        %v1455 = vsel %vm1453, %v1422, %v848
        %v1456 = vsel %vm1453, %v1423, %v850
        %v1457 = vsel %vm1453, %v1424, %v852
        %v1458 = vsel %vm1453, %v1425, %v854
        %v1459 = vsel %vm1453, %v1426, %v856
        %v1460 = vsel %vm1453, %v1427, %v858
        %v1461 = vsel %vm1453, %v1428, %v860
        %v1462 = vsel %vm1453, %v1429, %v862
        %v1463 = vsel %vm1453, %v1430, %v864
        %v1464 = vsel %vm1453, %v1431, %v866
        %v1465 = vsel %vm1453, %v1432, %v868
        %v1466 = vsel %vm1453, %v1433, %v870
        %v1467 = vsel %vm1453, %v1434, %v872
        %v1468 = vsel %vm1453, %v1435, %v874
        %v1469 = vsel %vm1453, %v1436, %v876
        %v1470 = vsel %vm1453, %v1437, %v878
        %v1471 = vsel %vm1453, %v1438, %v880
        %v1472 = vsel %vm1453, %v1439, %v882
        %v1473 = vsel %vm1453, %v1440, %v884
        %v1474 = vsel %vm1453, %v1441, %v886
        %v1475 = vsel %vm1453, %v1442, %v888
        %v1476 = vsel %vm1453, %v1443, %v890
        %v1477 = vsel %vm1453, %v1444, %v892
        %v1478 = vsel %vm1453, %v1445, %v894
        %v1479 = vsel %vm1453, %v1446, %v896
        %v1480 = vsel %vm1453, %v1447, %v898
        %v1481 = vsel %vm1453, %v1448, %v900
        %v1482 = vsel %vm1453, %v1449, %v902
        %v1483 = vsel %vm1453, %v1450, %v904
        %v1484 = vsel %vm1453, %v1451, %v906
        %v1485 = vsel %vm1453, %v1452, %v908
        %vm1486 = vcmask 392192
        %v1487 = vsel %vm1486, %v1454, %v942
        %v1488 = vsel %vm1486, %v1455, %v944
        %v1489 = vsel %vm1486, %v1456, %v946
        %v1490 = vsel %vm1486, %v1457, %v948
        %v1491 = vsel %vm1486, %v1458, %v950
        %v1492 = vsel %vm1486, %v1459, %v952
        %v1493 = vsel %vm1486, %v1460, %v954
        %v1494 = vsel %vm1486, %v1461, %v956
        %v1495 = vsel %vm1486, %v1462, %v958
        %v1496 = vsel %vm1486, %v1463, %v960
        %v1497 = vsel %vm1486, %v1464, %v962
        %v1498 = vsel %vm1486, %v1465, %v964
        %v1499 = vsel %vm1486, %v1466, %v966
        %v1500 = vsel %vm1486, %v1467, %v968
        %v1501 = vsel %vm1486, %v1468, %v970
        %v1502 = vsel %vm1486, %v1469, %v972
        %v1503 = vsel %vm1486, %v1470, %v974
        %v1504 = vsel %vm1486, %v1471, %v976
        %v1505 = vsel %vm1486, %v1472, %v978
        %v1506 = vsel %vm1486, %v1473, %v980
        %v1507 = vsel %vm1486, %v1474, %v982
        %v1508 = vsel %vm1486, %v1475, %v984
        %v1509 = vsel %vm1486, %v1476, %v986
        %v1510 = vsel %vm1486, %v1477, %v988
        %v1511 = vsel %vm1486, %v1478, %v990
        %v1512 = vsel %vm1486, %v1479, %v992
        %v1513 = vsel %vm1486, %v1480, %v994
        %v1514 = vsel %vm1486, %v1481, %v996
        %v1515 = vsel %vm1486, %v1482, %v998
        %v1516 = vsel %vm1486, %v1483, %v1000
        %v1517 = vsel %vm1486, %v1484, %v1002
        %v1518 = vsel %vm1486, %v1485, %v1004
        %vm1519 = vcmask 523264
        %v1520 = vsel %vm1519, %v1487, %v1038
        %v1521 = vsel %vm1519, %v1488, %v1040
        %v1522 = vsel %vm1519, %v1489, %v1042
        %v1523 = vsel %vm1519, %v1490, %v1044
        %v1524 = vsel %vm1519, %v1491, %v1046
        %v1525 = vsel %vm1519, %v1492, %v1048
        %v1526 = vsel %vm1519, %v1493, %v1050
        %v1527 = vsel %vm1519, %v1494, %v1052
        %v1528 = vsel %vm1519, %v1495, %v1054
        %v1529 = vsel %vm1519, %v1496, %v1056
        %v1530 = vsel %vm1519, %v1497, %v1058
        %v1531 = vsel %vm1519, %v1498, %v1060
        %v1532 = vsel %vm1519, %v1499, %v1062
        %v1533 = vsel %vm1519, %v1500, %v1064
        %v1534 = vsel %vm1519, %v1501, %v1066
        %v1535 = vsel %vm1519, %v1502, %v1068
        %v1536 = vsel %vm1519, %v1503, %v1070
        %v1537 = vsel %vm1519, %v1504, %v1072
        %v1538 = vsel %vm1519, %v1505, %v1074
        %v1539 = vsel %vm1519, %v1506, %v1076
        %v1540 = vsel %vm1519, %v1507, %v1078
        %v1541 = vsel %vm1519, %v1508, %v1080
        %v1542 = vsel %vm1519, %v1509, %v1082
        %v1543 = vsel %vm1519, %v1510, %v1084
        %v1544 = vsel %vm1519, %v1511, %v1086
        %v1545 = vsel %vm1519, %v1512, %v1088
        %v1546 = vsel %vm1519, %v1513, %v1090
        %v1547 = vsel %vm1519, %v1514, %v1092
        %v1548 = vsel %vm1519, %v1515, %v1094
        %v1549 = vsel %vm1519, %v1516, %v1096
        %v1550 = vsel %vm1519, %v1517, %v1098
        %v1551 = vsel %vm1519, %v1518, %v1100
        %vm1552 = vcmask 654336
        %v1553 = vsel %vm1552, %v1520, %v1134
        %v1554 = vsel %vm1552, %v1521, %v1136
        %v1555 = vsel %vm1552, %v1522, %v1138
        %v1556 = vsel %vm1552, %v1523, %v1140
        %v1557 = vsel %vm1552, %v1524, %v1142
        %v1558 = vsel %vm1552, %v1525, %v1144
        %v1559 = vsel %vm1552, %v1526, %v1146
        %v1560 = vsel %vm1552, %v1527, %v1148
        %v1561 = vsel %vm1552, %v1528, %v1150
        %v1562 = vsel %vm1552, %v1529, %v1152
        %v1563 = vsel %vm1552, %v1530, %v1154
        %v1564 = vsel %vm1552, %v1531, %v1156
        %v1565 = vsel %vm1552, %v1532, %v1158
        %v1566 = vsel %vm1552, %v1533, %v1160
        %v1567 = vsel %vm1552, %v1534, %v1162
        %v1568 = vsel %vm1552, %v1535, %v1164
        %v1569 = vsel %vm1552, %v1536, %v1166
        %v1570 = vsel %vm1552, %v1537, %v1168
        %v1571 = vsel %vm1552, %v1538, %v1170
        %v1572 = vsel %vm1552, %v1539, %v1172
        %v1573 = vsel %vm1552, %v1540, %v1174
        %v1574 = vsel %vm1552, %v1541, %v1176
        %v1575 = vsel %vm1552, %v1542, %v1178
        %v1576 = vsel %vm1552, %v1543, %v1180
        %v1577 = vsel %vm1552, %v1544, %v1182
        %v1578 = vsel %vm1552, %v1545, %v1184
        %v1579 = vsel %vm1552, %v1546, %v1186
        %v1580 = vsel %vm1552, %v1547, %v1188
        %v1581 = vsel %vm1552, %v1548, %v1190
        %v1582 = vsel %vm1552, %v1549, %v1192
        %v1583 = vsel %vm1552, %v1550, %v1194
        %v1584 = vsel %vm1552, %v1551, %v1196
        %vm1585 = vcmask 785408
        %v1586 = vsel %vm1585, %v1553, %v1230
        %v1587 = vsel %vm1585, %v1554, %v1232
        %v1588 = vsel %vm1585, %v1555, %v1234
        %v1589 = vsel %vm1585, %v1556, %v1236
        %v1590 = vsel %vm1585, %v1557, %v1238
        %v1591 = vsel %vm1585, %v1558, %v1240
        %v1592 = vsel %vm1585, %v1559, %v1242
        %v1593 = vsel %vm1585, %v1560, %v1244
        %v1594 = vsel %vm1585, %v1561, %v1246
        %v1595 = vsel %vm1585, %v1562, %v1248
        %v1596 = vsel %vm1585, %v1563, %v1250
        %v1597 = vsel %vm1585, %v1564, %v1252
        %v1598 = vsel %vm1585, %v1565, %v1254
        %v1599 = vsel %vm1585, %v1566, %v1256
        %v1600 = vsel %vm1585, %v1567, %v1258
        %v1601 = vsel %vm1585, %v1568, %v1260
        %v1602 = vsel %vm1585, %v1569, %v1262
        %v1603 = vsel %vm1585, %v1570, %v1264
        %v1604 = vsel %vm1585, %v1571, %v1266
        %v1605 = vsel %vm1585, %v1572, %v1268
        %v1606 = vsel %vm1585, %v1573, %v1270
        %v1607 = vsel %vm1585, %v1574, %v1272
        %v1608 = vsel %vm1585, %v1575, %v1274
        %v1609 = vsel %vm1585, %v1576, %v1276
        %v1610 = vsel %vm1585, %v1577, %v1278
        %v1611 = vsel %vm1585, %v1578, %v1280
        %v1612 = vsel %vm1585, %v1579, %v1282
        %v1613 = vsel %vm1585, %v1580, %v1284
        %v1614 = vsel %vm1585, %v1581, %v1286
        %v1615 = vsel %vm1585, %v1582, %v1288
        %v1616 = vsel %vm1585, %v1583, %v1290
        %v1617 = vsel %vm1585, %v1584, %v1292
        %vm1618 = vcmask 916480
        %v1619 = vsel %vm1618, %v1586, %v1326
        %v1620 = vsel %vm1618, %v1587, %v1328
        %v1621 = vsel %vm1618, %v1588, %v1330
        %v1622 = vsel %vm1618, %v1589, %v1332
        %v1623 = vsel %vm1618, %v1590, %v1334
        %v1624 = vsel %vm1618, %v1591, %v1336
        %v1625 = vsel %vm1618, %v1592, %v1338
        %v1626 = vsel %vm1618, %v1593, %v1340
        %v1627 = vsel %vm1618, %v1594, %v1342
        %v1628 = vsel %vm1618, %v1595, %v1344
        %v1629 = vsel %vm1618, %v1596, %v1346
        %v1630 = vsel %vm1618, %v1597, %v1348
        %v1631 = vsel %vm1618, %v1598, %v1350
        %v1632 = vsel %vm1618, %v1599, %v1352
        %v1633 = vsel %vm1618, %v1600, %v1354
        %v1634 = vsel %vm1618, %v1601, %v1356
        %v1635 = vsel %vm1618, %v1602, %v1358
        %v1636 = vsel %vm1618, %v1603, %v1360
        %v1637 = vsel %vm1618, %v1604, %v1362
        %v1638 = vsel %vm1618, %v1605, %v1364
        %v1639 = vsel %vm1618, %v1606, %v1366
        %v1640 = vsel %vm1618, %v1607, %v1368
        %v1641 = vsel %vm1618, %v1608, %v1370
        %v1642 = vsel %vm1618, %v1609, %v1372
        %v1643 = vsel %vm1618, %v1610, %v1374
        %v1644 = vsel %vm1618, %v1611, %v1376
        %v1645 = vsel %vm1618, %v1612, %v1378
        %v1646 = vsel %vm1618, %v1613, %v1380
        %v1647 = vsel %vm1618, %v1614, %v1382
        %v1648 = vsel %vm1618, %v1615, %v1384
        %v1649 = vsel %vm1618, %v1616, %v1386
        %v1650 = vsel %vm1618, %v1617, %v1388
        %v1652 = vlaneseq
        %v1653 = vshrl.u32 %v1652, 7
        %v1654 = vsub.s32 0, %v1653
        %v1655 = vrot.slane %v458, %v1654
        %v1657 = vsel %vm319, %v655, 0
        %v1659 = vsel %vm319, %v657, 0
        %v1661 = vsel %vm319, %v660, 0
        %v1663 = vsel %vm319, %v662, 0
        %v1665 = vsel %vm319, %v665, 0
        %v1667 = vsel %vm319, %v667, 0
        %v1669 = vsel %vm319, %v670, 0
        %v1671 = vsel %vm319, %v672, 0
        %v1673 = vsel %vm319, %v675, 0
        %v1675 = vsel %vm319, %v677, 0
        %v1677 = vsel %vm319, %v680, 0
        %v1679 = vsel %vm319, %v682, 0
        %v1681 = vsel %vm319, %v685, 0
        %v1683 = vsel %vm319, %v687, 0
        %v1685 = vsel %vm319, %v690, 0
        %v1687 = vsel %vm319, %v692, 0
        %v1689 = vsel %vm319, %v695, 0
        %v1691 = vsel %vm319, %v697, 0
        %v1693 = vsel %vm319, %v700, 0
        %v1695 = vsel %vm319, %v702, 0
        %v1697 = vsel %vm319, %v705, 0
        %v1699 = vsel %vm319, %v707, 0
        %v1701 = vsel %vm319, %v710, 0
        %v1703 = vsel %vm319, %v712, 0
        %v1705 = vsel %vm319, %v715, 0
        %v1707 = vsel %vm319, %v717, 0
        %v1709 = vsel %vm319, %v720, 0
        %v1711 = vsel %vm319, %v722, 0
        %v1713 = vsel %vm319, %v733, 0
        %v1715 = vsel %vm319, %v735, 0
        %v1717 = vsel %vm319, %v746, 0
        %v1719 = vsel %vm319, %v748, 0
        %1721 = vmatprep.subr.mxu0 0.0
        %1722 = vmatpush1.msra.mxu0 %v440
        %1723 = vmatprep.subr.mxu0 0.0
        %1724 = vmatpush1.msra.mxu0 %v441
        %1725 = vmatprep.subr.mxu0 0.0
        %1726 = vmatpush1.msra.mxu0 %v442
        %1727 = vmatprep.subr.mxu0 0.0
        %1728 = vmatpush1.msra.mxu0 %v443
        %1729 = vmatprep.subr.mxu0 0.0
        %1730 = vmatpush1.msra.mxu0 %v444
        %1731 = vmatprep.subr.mxu0 0.0
        %1732 = vmatpush1.msra.mxu0 %v445
        %1733 = vmatprep.subr.mxu0 0.0
        %1734 = vmatpush1.msra.mxu0 %v446
        %1735 = vmatprep.subr.mxu0 0.0
        %1736 = vmatpush1.msra.mxu0 %v447
        %1737 = vmatprep.subr.mxu0 0.0
        %1738 = vmatpush1.msra.mxu0 %v448
        %1739 = vmatprep.subr.mxu0 0.0
        %1740 = vmatpush1.msra.mxu0 %v449
        %1741 = vmatprep.subr.mxu0 0.0
        %1742 = vmatpush1.msra.mxu0 %v450
        %1743 = vmatprep.subr.mxu0 0.0
        %1744 = vmatpush1.msra.mxu0 %v451
        %1745 = vmatprep.subr.mxu0 0.0
        %1746 = vmatpush1.msra.mxu0 %v452
        %1747 = vmatprep.subr.mxu0 0.0
        %1748 = vmatpush1.msra.mxu0 %v453
        %1749 = vmatprep.subr.mxu0 0.0
        %1750 = vmatpush1.msra.mxu0 %v454
        %1751 = vmatprep.subr.mxu0 0.0
        %1752 = vmatpush1.msra.mxu0 %v455
        %1753 = vmatprep.subr.mxu0 0.0
        %1754 = vmatpush1.msra.mxu0 %v456
        %1755 = vmatprep.subr.mxu0 0.0
        %1756 = vmatpush1.msra.mxu0 %v457
        %1757 = vmatprep.subr.mxu0 0.0
        %1758 = vmatpush1.msra.mxu0 0.0
        %1759 = vmatprep.subr.mxu0 0.0
        %1760 = vmatpush1.msra.mxu0 0.0
        %1761 = vmatprep.subr.mxu0 0.0
        %1762 = vmatpush1.msra.mxu0 0.0
        %1763 = vmatprep.subr.mxu0 0.0
        %1764 = vmatpush1.msra.mxu0 0.0
        %1765 = vmatprep.subr.mxu0 0.0
        %1766 = vmatpush1.msra.mxu0 0.0
        %1767 = vmatprep.subr.mxu0 0.0
        %1768 = vmatpush1.msra.mxu0 0.0
        %1769 = vmatprep.subr.mxu0 0.0
        %1770 = vmatpush1.msra.mxu0 0.0
        %1771 = vmatprep.subr.mxu0 0.0
        %1772 = vmatpush1.msra.mxu0 0.0
        %1773 = vmatprep.subr.mxu0 0.0
        %1774 = vmatpush1.msra.mxu0 0.0
        %1775 = vmatprep.subr.mxu0 0.0
        %1776 = vmatpush1.msra.mxu0 0.0
        %1777 = vmatprep.subr.mxu0 0.0
        %1778 = vmatpush1.msra.mxu0 0.0
        %1779 = vmatprep.subr.mxu0 0.0
        %1780 = vmatpush1.msra.mxu0 0.0
        %1781 = vmatprep.subr.mxu0 0.0
        %1782 = vmatpush1.msra.mxu0 0.0
        %1783 = vmatprep.subr.mxu0 0.0
        %1784 = vmatpush1.msra.mxu0 0.0
        %1785 = vmatprep.mubr.f32.mxu0 %v1657
        %1786 = vmatmul.mubr.f32.gmra.mrb[0].mxu0 %v1619
        %v1787 = vpop.f32.mrb[0].mxu0
        %v1788 = vadd.f32 %v1655, %v1787
        %v1789 = vpop.f32.mrb[0].mxu0
        %1790 = vmatprep.mubr.f32.mxu0 %v1659
        %1791 = vmatmul.mubr.f32.gmra.mrb[0].mxu0 %v1620
        %v1792 = vpop.f32.mrb[0].mxu0
        %v1793 = vadd.f32 %v1655, %v1792
        %v1794 = vpop.f32.mrb[0].mxu0
        %1795 = vmatprep.mubr.f32.mxu0 %v1661
        %1796 = vmatmul.mubr.f32.gmra.mrb[0].mxu0 %v1621
        %v1797 = vpop.f32.mrb[0].mxu0
        %v1798 = vadd.f32 %v1655, %v1797
        %v1799 = vpop.f32.mrb[0].mxu0
        %1800 = vmatprep.mubr.f32.mxu0 %v1663
        %1801 = vmatmul.mubr.f32.gmra.mrb[0].mxu0 %v1622
        %v1802 = vpop.f32.mrb[0].mxu0
        %v1803 = vadd.f32 %v1655, %v1802
        %v1804 = vpop.f32.mrb[0].mxu0
        %1805 = vmatprep.mubr.f32.mxu0 %v1665
        %1806 = vmatmul.mubr.f32.gmra.mrb[0].mxu0 %v1623
        %v1807 = vpop.f32.mrb[0].mxu0
        %v1808 = vadd.f32 %v1655, %v1807
        %v1809 = vpop.f32.mrb[0].mxu0
        %1810 = vmatprep.mubr.f32.mxu0 %v1667
        %1811 = vmatmul.mubr.f32.gmra.mrb[0].mxu0 %v1624
        %v1812 = vpop.f32.mrb[0].mxu0
        %v1813 = vadd.f32 %v1655, %v1812
        %v1814 = vpop.f32.mrb[0].mxu0
        %1815 = vmatprep.mubr.f32.mxu0 %v1669
        %1816 = vmatmul.mubr.f32.gmra.mrb[0].mxu0 %v1625
        %v1817 = vpop.f32.mrb[0].mxu0
        %v1818 = vadd.f32 %v1655, %v1817
        %v1819 = vpop.f32.mrb[0].mxu0
        %1820 = vmatprep.mubr.f32.mxu0 %v1671
        %1821 = vmatmul.mubr.f32.gmra.mrb[0].mxu0 %v1626
        %v1822 = vpop.f32.mrb[0].mxu0
        %v1823 = vadd.f32 %v1655, %v1822
        %v1824 = vpop.f32.mrb[0].mxu0
        %1825 = vmatprep.mubr.f32.mxu0 %v1673
        %1826 = vmatmul.mubr.f32.gmra.mrb[0].mxu0 %v1627
        %v1827 = vpop.f32.mrb[0].mxu0
        %v1828 = vadd.f32 %v1655, %v1827
        %v1829 = vpop.f32.mrb[0].mxu0
        %1830 = vmatprep.mubr.f32.mxu0 %v1675
        %1831 = vmatmul.mubr.f32.gmra.mrb[0].mxu0 %v1628
        %v1832 = vpop.f32.mrb[0].mxu0
        %v1833 = vadd.f32 %v1655, %v1832
        %v1834 = vpop.f32.mrb[0].mxu0
        %1835 = vmatprep.mubr.f32.mxu0 %v1677
        %1836 = vmatmul.mubr.f32.gmra.mrb[0].mxu0 %v1629
        %v1837 = vpop.f32.mrb[0].mxu0
        %v1838 = vadd.f32 %v1655, %v1837
        %v1839 = vpop.f32.mrb[0].mxu0
        %1840 = vmatprep.mubr.f32.mxu0 %v1679
        %1841 = vmatmul.mubr.f32.gmra.mrb[0].mxu0 %v1630
        %v1842 = vpop.f32.mrb[0].mxu0
        %v1843 = vadd.f32 %v1655, %v1842
        %v1844 = vpop.f32.mrb[0].mxu0
        %1845 = vmatprep.mubr.f32.mxu0 %v1681
        %1846 = vmatmul.mubr.f32.gmra.mrb[0].mxu0 %v1631
        %v1847 = vpop.f32.mrb[0].mxu0
        %v1848 = vadd.f32 %v1655, %v1847
        %v1849 = vpop.f32.mrb[0].mxu0
        %1850 = vmatprep.mubr.f32.mxu0 %v1683
        %1851 = vmatmul.mubr.f32.gmra.mrb[0].mxu0 %v1632
        %v1852 = vpop.f32.mrb[0].mxu0
        %v1853 = vadd.f32 %v1655, %v1852
        %v1854 = vpop.f32.mrb[0].mxu0
        %1855 = vmatprep.mubr.f32.mxu0 %v1685
        %1856 = vmatmul.mubr.f32.gmra.mrb[0].mxu0 %v1633
        %v1857 = vpop.f32.mrb[0].mxu0
        %v1858 = vadd.f32 %v1655, %v1857
        %v1859 = vpop.f32.mrb[0].mxu0
        %1860 = vmatprep.mubr.f32.mxu0 %v1687
        %1861 = vmatmul.mubr.f32.gmra.mrb[0].mxu0 %v1634
        %v1862 = vpop.f32.mrb[0].mxu0
        %v1863 = vadd.f32 %v1655, %v1862
        %v1864 = vpop.f32.mrb[0].mxu0
        %1865 = vmatprep.mubr.f32.mxu0 %v1689
        %1866 = vmatmul.mubr.f32.gmra.mrb[0].mxu0 %v1635
        %v1867 = vpop.f32.mrb[0].mxu0
        %v1868 = vadd.f32 %v1655, %v1867
        %v1869 = vpop.f32.mrb[0].mxu0
        %1870 = vmatprep.mubr.f32.mxu0 %v1691
        %1871 = vmatmul.mubr.f32.gmra.mrb[0].mxu0 %v1636
        %v1872 = vpop.f32.mrb[0].mxu0
        %v1873 = vadd.f32 %v1655, %v1872
        %v1874 = vpop.f32.mrb[0].mxu0
        %1875 = vmatprep.mubr.f32.mxu0 %v1693
        %1876 = vmatmul.mubr.f32.gmra.mrb[0].mxu0 %v1637
        %v1877 = vpop.f32.mrb[0].mxu0
        %v1878 = vadd.f32 %v1655, %v1877
        %v1879 = vpop.f32.mrb[0].mxu0
        %1880 = vmatprep.mubr.f32.mxu0 %v1695
        %1881 = vmatmul.mubr.f32.gmra.mrb[0].mxu0 %v1638
        %v1882 = vpop.f32.mrb[0].mxu0
        %v1883 = vadd.f32 %v1655, %v1882
        %v1884 = vpop.f32.mrb[0].mxu0
        %1885 = vmatprep.mubr.f32.mxu0 %v1697
        %1886 = vmatmul.mubr.f32.gmra.mrb[0].mxu0 %v1639
        %v1887 = vpop.f32.mrb[0].mxu0
        %v1888 = vadd.f32 %v1655, %v1887
        %v1889 = vpop.f32.mrb[0].mxu0
        %1890 = vmatprep.mubr.f32.mxu0 %v1699
        %1891 = vmatmul.mubr.f32.gmra.mrb[0].mxu0 %v1640
        %v1892 = vpop.f32.mrb[0].mxu0
        %v1893 = vadd.f32 %v1655, %v1892
        %v1894 = vpop.f32.mrb[0].mxu0
        %1895 = vmatprep.mubr.f32.mxu0 %v1701
        %1896 = vmatmul.mubr.f32.gmra.mrb[0].mxu0 %v1641
        %v1897 = vpop.f32.mrb[0].mxu0
        %v1898 = vadd.f32 %v1655, %v1897
        %v1899 = vpop.f32.mrb[0].mxu0
        %1900 = vmatprep.mubr.f32.mxu0 %v1703
        %1901 = vmatmul.mubr.f32.gmra.mrb[0].mxu0 %v1642
        %v1902 = vpop.f32.mrb[0].mxu0
        %v1903 = vadd.f32 %v1655, %v1902
        %v1904 = vpop.f32.mrb[0].mxu0
        %1905 = vmatprep.mubr.f32.mxu0 %v1705
        %1906 = vmatmul.mubr.f32.gmra.mrb[0].mxu0 %v1643
        %v1907 = vpop.f32.mrb[0].mxu0
        %v1908 = vadd.f32 %v1655, %v1907
        %v1909 = vpop.f32.mrb[0].mxu0
        %1910 = vmatprep.mubr.f32.mxu0 %v1707
        %1911 = vmatmul.mubr.f32.gmra.mrb[0].mxu0 %v1644
        %v1912 = vpop.f32.mrb[0].mxu0
        %v1913 = vadd.f32 %v1655, %v1912
        %v1914 = vpop.f32.mrb[0].mxu0
        %1915 = vmatprep.mubr.f32.mxu0 %v1709
        %1916 = vmatmul.mubr.f32.gmra.mrb[0].mxu0 %v1645
        %v1917 = vpop.f32.mrb[0].mxu0
        %v1918 = vadd.f32 %v1655, %v1917
        %v1919 = vpop.f32.mrb[0].mxu0
        %1920 = vmatprep.mubr.f32.mxu0 %v1711
        %1921 = vmatmul.mubr.f32.gmra.mrb[0].mxu0 %v1646
        %v1922 = vpop.f32.mrb[0].mxu0
        %v1923 = vadd.f32 %v1655, %v1922
        %v1924 = vpop.f32.mrb[0].mxu0
        %1925 = vmatprep.mubr.f32.mxu0 %v1713
        %1926 = vmatmul.mubr.f32.gmra.mrb[0].mxu0 %v1647
        %v1927 = vpop.f32.mrb[0].mxu0
        %v1928 = vadd.f32 %v1655, %v1927
        %v1929 = vpop.f32.mrb[0].mxu0
        %1930 = vmatprep.mubr.f32.mxu0 %v1715
        %1931 = vmatmul.mubr.f32.gmra.mrb[0].mxu0 %v1648
        %v1932 = vpop.f32.mrb[0].mxu0
        %v1933 = vadd.f32 %v1655, %v1932
        %v1934 = vpop.f32.mrb[0].mxu0
        %1935 = vmatprep.mubr.f32.mxu0 %v1717
        %1936 = vmatmul.mubr.f32.gmra.mrb[0].mxu0 %v1649
        %v1937 = vpop.f32.mrb[0].mxu0
        %v1938 = vadd.f32 %v1655, %v1937
        %v1939 = vpop.f32.mrb[0].mxu0
        %1940 = vmatprep.mubr.f32.mxu0 %v1719
        %1941 = vmatmul.mubr.f32.gmra.mrb[0].mxu0 %v1650
        %v1942 = vpop.f32.mrb[0].mxu0
        %v1943 = vadd.f32 %v1655, %v1942
        %v1944 = vpop.f32.mrb[0].mxu0
        %1945 = vdwg.mxu0
        %1946 = vst.msk [vmem:[%s407 + $0x1] sm:$0xff] %vm319, %v1788
        %1947 = vst.msk [vmem:[%s407 + $0x9] sm:$0xff] %vm319, %v1793
        %1948 = vst.msk [vmem:[%s407 + $0x19] sm:$0xff] %vm319, %v1798
        %1949 = vst.msk [vmem:[%s407 + $0x21] sm:$0xff] %vm319, %v1803
        %1950 = vst.msk [vmem:[%s407 + $0x31] sm:$0xff] %vm319, %v1808
        %1951 = vst.msk [vmem:[%s407 + $0x39] sm:$0xff] %vm319, %v1813
        %1952 = vst.msk [vmem:[%s407 + $0x49] sm:$0xff] %vm319, %v1818
        %1953 = vst.msk [vmem:[%s407 + $0x51] sm:$0xff] %vm319, %v1823
        %1954 = vst.msk [vmem:[%s407 + $0x61] sm:$0xff] %vm319, %v1828
        %1955 = vst.msk [vmem:[%s407 + $0x69] sm:$0xff] %vm319, %v1833
        %1956 = vst.msk [vmem:[%s407 + $0x79] sm:$0xff] %vm319, %v1838
        %1957 = vst.msk [vmem:[%s407 + $0x81] sm:$0xff] %vm319, %v1843
        %1958 = vst.msk [vmem:[%s407 + $0x91] sm:$0xff] %vm319, %v1848
        %1959 = vst.msk [vmem:[%s407 + $0x99] sm:$0xff] %vm319, %v1853
        %1960 = vst.msk [vmem:[%s407 + $0xa9] sm:$0xff] %vm319, %v1858
        %1961 = vst.msk [vmem:[%s407 + $0xb1] sm:$0xff] %vm319, %v1863
        %1962 = vst.msk [vmem:[%s407 + $0xc1] sm:$0xff] %vm319, %v1868
        %1963 = vst.msk [vmem:[%s407 + $0xc9] sm:$0xff] %vm319, %v1873
        %1964 = vst.msk [vmem:[%s407 + $0xd9] sm:$0xff] %vm319, %v1878
        %1965 = vst.msk [vmem:[%s407 + $0xe1] sm:$0xff] %vm319, %v1883
        %1966 = vst.msk [vmem:[%s407 + $0xf1] sm:$0xff] %vm319, %v1888
        %1967 = vst.msk [vmem:[%s407 + $0xf9] sm:$0xff] %vm319, %v1893
        %1968 = vst.msk [vmem:[%s407 + $0x109] sm:$0xff] %vm319, %v1898
        %1969 = vst.msk [vmem:[%s407 + $0x111] sm:$0xff] %vm319, %v1903
        %1970 = vst.msk [vmem:[%s407 + $0x121] sm:$0xff] %vm319, %v1908
        %1971 = vst.msk [vmem:[%s407 + $0x129] sm:$0xff] %vm319, %v1913
        %1972 = vst.msk [vmem:[%s407 + $0x139] sm:$0xff] %vm319, %v1918
        %1973 = vst.msk [vmem:[%s407 + $0x141] sm:$0xff] %vm319, %v1923
        %1974 = vst.msk [vmem:[%s407 + $0x151] sm:$0xff] %vm319, %v1928
        %1975 = vst.msk [vmem:[%s407 + $0x159] sm:$0xff] %vm319, %v1933
        %1976 = vst.msk [vmem:[%s407 + $0x169] sm:$0xff] %vm319, %v1938
        %1977 = vst.msk [vmem:[%s407 + $0x171] sm:$0xff] %vm319, %v1943
        %v1978 = vld [vmem:[%s3] sm:$0xff]
        %v1979 = vld [vmem:[%s3 + $0x8] sm:$0xff]
        %v1980 = vld [vmem:[%s3 + $0x10] sm:$0xff]
        %v1981 = vld [vmem:[%s3 + $0x18] sm:$0xff]
        %v1982 = vld [vmem:[%s3 + $0x20] sm:$0xff]
        %v1983 = vld [vmem:[%s3 + $0x28] sm:$0xff]
        %v1984 = vld [vmem:[%s3 + $0x30] sm:$0xff]
        %v1985 = vld [vmem:[%s3 + $0x38] sm:$0xff]
        %v1986 = vld [vmem:[%s3 + $0x40] sm:$0xff]
        %v1987 = vld [vmem:[%s3 + $0x48] sm:$0xff]
        %v1988 = vld [vmem:[%s3 + $0x50] sm:$0xff]
        %v1989 = vld [vmem:[%s3 + $0x58] sm:$0xff]
        %v1990 = vld [vmem:[%s3 + $0x60] sm:$0xff]
        %v1991 = vld [vmem:[%s3 + $0x68] sm:$0xff]
        %v1992 = vld [vmem:[%s3 + $0x70] sm:$0xff]
        %v1993 = vld [vmem:[%s3 + $0x78] sm:$0xff]
        %v1994 = vld [vmem:[%s3 + $0x80] sm:$0xff]
        %v1995 = vld [vmem:[%s3 + $0x88] sm:$0xff]
        %v1996 = vld [vmem:[%s4] sm:$0x1]
        %v1997 = vld [vmem:[#allocation2] sm:$0xff]
        %v1998 = vld [vmem:[#allocation2 + $0x8] sm:$0xff]
        %v1999 = vld [vmem:[#allocation2 + $0x10] sm:$0x3]
        %v2000 = vld [vmem:[#allocation2 + $0x18] sm:$0xff]
        %v2001 = vld [vmem:[#allocation2 + $0x20] sm:$0xff]
        %v2002 = vld [vmem:[#allocation2 + $0x28] sm:$0x3]
        %v2003 = vld [vmem:[#allocation2 + $0x30] sm:$0xff]
        %v2004 = vld [vmem:[#allocation2 + $0x38] sm:$0xff]
        %v2005 = vld [vmem:[#allocation2 + $0x40] sm:$0x3]
        %v2006 = vld [vmem:[#allocation2 + $0x48] sm:$0xff]
        %v2007 = vld [vmem:[#allocation2 + $0x50] sm:$0xff]
        %v2008 = vld [vmem:[#allocation2 + $0x58] sm:$0x3]
        %v2009 = vld [vmem:[#allocation2 + $0x60] sm:$0xff]
        %v2010 = vld [vmem:[#allocation2 + $0x68] sm:$0xff]
        %v2011 = vld [vmem:[#allocation2 + $0x70] sm:$0x3]
        %v2012 = vld [vmem:[#allocation2 + $0x78] sm:$0xff]
        %v2013 = vld [vmem:[#allocation2 + $0x80] sm:$0xff]
        %v2014 = vld [vmem:[#allocation2 + $0x88] sm:$0x3]
        %v2015 = vld [vmem:[#allocation2 + $0x90] sm:$0xff]
        %v2016 = vld [vmem:[#allocation2 + $0x98] sm:$0xff]
        %v2017 = vld [vmem:[#allocation2 + $0xa0] sm:$0x3]
        %v2018 = vld [vmem:[#allocation2 + $0xa8] sm:$0xff]
        %v2019 = vld [vmem:[#allocation2 + $0xb0] sm:$0xff]
        %v2020 = vld [vmem:[#allocation2 + $0xb8] sm:$0x3]
        %v2021 = vld [vmem:[#allocation2 + $0xc0] sm:$0xff]
        %v2022 = vld [vmem:[#allocation2 + $0xc8] sm:$0xff]
        %v2023 = vld [vmem:[#allocation2 + $0xd0] sm:$0x3]
        %v2024 = vld [vmem:[#allocation2 + $0xd8] sm:$0xff]
        %v2025 = vld [vmem:[#allocation2 + $0xe0] sm:$0xff]
        %v2026 = vld [vmem:[#allocation2 + $0xe8] sm:$0x3]
        %v2027 = vld [vmem:[#allocation2 + $0xf0] sm:$0xff]
        %v2028 = vld [vmem:[#allocation2 + $0xf8] sm:$0xff]
        %v2029 = vld [vmem:[#allocation2 + $0x100] sm:$0x3]
        %v2030 = vld [vmem:[#allocation2 + $0x108] sm:$0xff]
        %v2031 = vld [vmem:[#allocation2 + $0x110] sm:$0xff]
        %v2032 = vld [vmem:[#allocation2 + $0x118] sm:$0x3]
        %v2033 = vld [vmem:[#allocation2 + $0x120] sm:$0xff]
        %v2034 = vld [vmem:[#allocation2 + $0x128] sm:$0xff]
        %v2035 = vld [vmem:[#allocation2 + $0x130] sm:$0x3]
        %v2036 = vld [vmem:[#allocation2 + $0x138] sm:$0xff]
        %v2037 = vld [vmem:[#allocation2 + $0x140] sm:$0xff]
        %v2038 = vld [vmem:[#allocation2 + $0x148] sm:$0x3]
        %v2039 = vld [vmem:[#allocation2 + $0x150] sm:$0xff]
        %v2040 = vld [vmem:[#allocation2 + $0x158] sm:$0xff]
        %v2041 = vld [vmem:[#allocation2 + $0x160] sm:$0x3]
        %v2042 = vld [vmem:[#allocation2 + $0x168] sm:$0xff]
        %v2043 = vld [vmem:[#allocation2 + $0x170] sm:$0xff]
        %v2044 = vld [vmem:[#allocation2 + $0x178] sm:$0x3]
        %v2045 = vld [vmem:[#allocation2 + $0x180] sm:$0xff]
        %v2046 = vld [vmem:[#allocation2 + $0x188] sm:$0xff]
        %v2047 = vld [vmem:[#allocation2 + $0x190] sm:$0x3]
        %v2048 = vld [vmem:[#allocation2 + $0x198] sm:$0xff]
        %v2049 = vld [vmem:[#allocation2 + $0x1a0] sm:$0xff]
        %v2050 = vld [vmem:[#allocation2 + $0x1a8] sm:$0x3]
        %v2099 = vrot.slane %v1997, 1
        %v2100 = vrot.slane %v1998, 1
        %v2101 = vsel %vm561, %v2099, %v2100
        %v2102 = vrot.slane %v1999, 1
        %v2103 = vsel %vm561, %v2100, %v2102
        %v2104 = vrot.slane %v2000, 1
        %v2105 = vrot.slane %v2001, 1
        %v2106 = vsel %vm561, %v2104, %v2105
        %v2107 = vrot.slane %v2002, 1
        %v2108 = vsel %vm561, %v2105, %v2107
        %v2109 = vrot.slane %v2003, 1
        %v2110 = vrot.slane %v2004, 1
        %v2111 = vsel %vm561, %v2109, %v2110
        %v2112 = vrot.slane %v2005, 1
        %v2113 = vsel %vm561, %v2110, %v2112
        %v2114 = vrot.slane %v2006, 1
        %v2115 = vrot.slane %v2007, 1
        %v2116 = vsel %vm561, %v2114, %v2115
        %v2117 = vrot.slane %v2008, 1
        %v2118 = vsel %vm561, %v2115, %v2117
        %v2119 = vrot.slane %v2009, 1
        %v2120 = vrot.slane %v2010, 1
        %v2121 = vsel %vm561, %v2119, %v2120
        %v2122 = vrot.slane %v2011, 1
        %v2123 = vsel %vm561, %v2120, %v2122
        %v2124 = vrot.slane %v2012, 1
        %v2125 = vrot.slane %v2013, 1
        %v2126 = vsel %vm561, %v2124, %v2125
        %v2127 = vrot.slane %v2014, 1
        %v2128 = vsel %vm561, %v2125, %v2127
        %v2129 = vrot.slane %v2015, 1
        %v2130 = vrot.slane %v2016, 1
        %v2131 = vsel %vm561, %v2129, %v2130
        %v2132 = vrot.slane %v2017, 1
        %v2133 = vsel %vm561, %v2130, %v2132
        %v2134 = vrot.slane %v2018, 1
        %v2135 = vrot.slane %v2019, 1
        %v2136 = vsel %vm561, %v2134, %v2135
        %v2137 = vrot.slane %v2020, 1
        %v2138 = vsel %vm561, %v2135, %v2137
        %v2139 = vrot.slane %v2021, 1
        %v2140 = vrot.slane %v2022, 1
        %v2141 = vsel %vm561, %v2139, %v2140
        %v2142 = vrot.slane %v2023, 1
        %v2143 = vsel %vm561, %v2140, %v2142
        %v2144 = vrot.slane %v2024, 1
        %v2145 = vrot.slane %v2025, 1
        %v2146 = vsel %vm561, %v2144, %v2145
        %v2147 = vrot.slane %v2026, 1
        %v2148 = vsel %vm561, %v2145, %v2147
        %v2149 = vrot.slane %v2027, 1
        %v2150 = vrot.slane %v2028, 1
        %v2151 = vsel %vm561, %v2149, %v2150
        %v2152 = vrot.slane %v2029, 1
        %v2153 = vsel %vm561, %v2150, %v2152
        %v2154 = vrot.slane %v2030, 1
        %v2155 = vrot.slane %v2031, 1
        %v2156 = vsel %vm561, %v2154, %v2155
        %v2157 = vrot.slane %v2032, 1
        %v2158 = vsel %vm561, %v2155, %v2157
        %v2159 = vrot.slane %v2033, 1
        %v2160 = vrot.slane %v2034, 1
        %v2161 = vsel %vm561, %v2159, %v2160
        %v2162 = vrot.slane %v2035, 1
        %v2163 = vsel %vm561, %v2160, %v2162
        %v2164 = vrot.slane %v2036, 1
        %v2165 = vrot.slane %v2037, 1
        %v2166 = vsel %vm561, %v2164, %v2165
        %v2167 = vrot.slane %v2038, 1
        %v2168 = vsel %vm561, %v2165, %v2167
        %v2169 = vrot.slane %v2039, 1
        %v2170 = vrot.slane %v2040, 1
        %v2171 = vsel %vm561, %v2169, %v2170
        %v2172 = vrot.slane %v2041, 1
        %v2173 = vsel %vm561, %v2170, %v2172
        %v2174 = vrot.slane %v2042, 1
        %v2175 = vrot.slane %v2043, 1
        %v2176 = vsel %vm561, %v2174, %v2175
        %v2177 = vrot.slane %v2044, 1
        %v2178 = vsel %vm561, %v2175, %v2177
        %v2179 = vrot.slane %v1997, 2
        %v2180 = vrot.slane %v1998, 2
        %v2181 = vsel %vm642, %v2179, %v2180
        %v2182 = vrot.slane %v1999, 2
        %v2183 = vsel %vm642, %v2180, %v2182
        %v2184 = vrot.slane %v2000, 2
        %v2185 = vrot.slane %v2001, 2
        %v2186 = vsel %vm642, %v2184, %v2185
        %v2187 = vrot.slane %v2002, 2
        %v2188 = vsel %vm642, %v2185, %v2187
        %v2189 = vrot.slane %v2003, 2
        %v2190 = vrot.slane %v2004, 2
        %v2191 = vsel %vm642, %v2189, %v2190
        %v2192 = vrot.slane %v2005, 2
        %v2193 = vsel %vm642, %v2190, %v2192
        %v2194 = vrot.slane %v2006, 2
        %v2195 = vrot.slane %v2007, 2
        %v2196 = vsel %vm642, %v2194, %v2195
        %v2197 = vrot.slane %v2008, 2
        %v2198 = vsel %vm642, %v2195, %v2197
        %v2199 = vrot.slane %v2009, 2
        %v2200 = vrot.slane %v2010, 2
        %v2201 = vsel %vm642, %v2199, %v2200
        %v2202 = vrot.slane %v2011, 2
        %v2203 = vsel %vm642, %v2200, %v2202
        %v2204 = vrot.slane %v2012, 2
        %v2205 = vrot.slane %v2013, 2
        %v2206 = vsel %vm642, %v2204, %v2205
        %v2207 = vrot.slane %v2014, 2
        %v2208 = vsel %vm642, %v2205, %v2207
        %v2209 = vrot.slane %v2015, 2
        %v2210 = vrot.slane %v2016, 2
        %v2211 = vsel %vm642, %v2209, %v2210
        %v2212 = vrot.slane %v2017, 2
        %v2213 = vsel %vm642, %v2210, %v2212
        %v2214 = vrot.slane %v2018, 2
        %v2215 = vrot.slane %v2019, 2
        %v2216 = vsel %vm642, %v2214, %v2215
        %v2217 = vrot.slane %v2020, 2
        %v2218 = vsel %vm642, %v2215, %v2217
        %v2219 = vrot.slane %v2021, 2
        %v2220 = vrot.slane %v2022, 2
        %v2221 = vsel %vm642, %v2219, %v2220
        %v2222 = vrot.slane %v2023, 2
        %v2223 = vsel %vm642, %v2220, %v2222
        %v2224 = vrot.slane %v2024, 2
        %v2225 = vrot.slane %v2025, 2
        %v2226 = vsel %vm642, %v2224, %v2225
        %v2227 = vrot.slane %v2026, 2
        %v2228 = vsel %vm642, %v2225, %v2227
        %v2229 = vrot.slane %v2027, 2
        %v2230 = vrot.slane %v2028, 2
        %v2231 = vsel %vm642, %v2229, %v2230
        %v2232 = vrot.slane %v2029, 2
        %v2233 = vsel %vm642, %v2230, %v2232
        %v2234 = vrot.slane %v2030, 2
        %v2235 = vrot.slane %v2031, 2
        %v2236 = vsel %vm642, %v2234, %v2235
        %v2237 = vrot.slane %v2032, 2
        %v2238 = vsel %vm642, %v2235, %v2237
        %v2239 = vrot.slane %v2033, 2
        %v2240 = vrot.slane %v2034, 2
        %v2241 = vsel %vm642, %v2239, %v2240
        %v2242 = vrot.slane %v2035, 2
        %v2243 = vsel %vm642, %v2240, %v2242
        %v2244 = vrot.slane %v2036, 2
        %v2245 = vrot.slane %v2037, 2
        %v2246 = vsel %vm642, %v2244, %v2245
        %v2247 = vrot.slane %v2038, 2
        %v2248 = vsel %vm642, %v2245, %v2247
        %v2249 = vrot.slane %v2039, 2
        %v2250 = vrot.slane %v2040, 2
        %v2251 = vsel %vm642, %v2249, %v2250
        %v2252 = vrot.slane %v2041, 2
        %v2253 = vsel %vm642, %v2250, %v2252
        %v2254 = vrot.slane %v2042, 2
        %v2255 = vrot.slane %v2043, 2
        %v2256 = vsel %vm642, %v2254, %v2255
        %v2257 = vrot.slane %v2044, 2
        %v2258 = vsel %vm642, %v2255, %v2257
        %v2262 = vrot.slane %v2045, 1
        %v2263 = vrot.slane %v2046, 1
        %v2264 = vsel %vm561, %v2262, %v2263
        %v2265 = vrot.slane %v2047, 1
        %v2266 = vsel %vm561, %v2263, %v2265
        %v2267 = vrot.slane %v2045, 2
        %v2268 = vrot.slane %v2046, 2
        %v2269 = vsel %vm642, %v2267, %v2268
        %v2270 = vrot.slane %v2047, 2
        %v2271 = vsel %vm642, %v2268, %v2270
        %v2275 = vrot.slane %v2048, 1
        %v2276 = vrot.slane %v2049, 1
        %v2277 = vsel %vm561, %v2275, %v2276
        %v2278 = vrot.slane %v2050, 1
        %v2279 = vsel %vm561, %v2276, %v2278
        %v2280 = vrot.slane %v2048, 2
        %v2281 = vrot.slane %v2049, 2
        %v2282 = vsel %vm642, %v2280, %v2281
        %v2283 = vrot.slane %v2050, 2
        %v2284 = vsel %vm642, %v2281, %v2283
        %2285 = vrot.lane.b32.xlu0 %v2101, 16
        %v2286 = vpop.permute.xlu0 %2285
        %2287 = vrot.lane.b32.xlu0 %v2103, 16
        %v2288 = vpop.permute.xlu0 %2287
        %2289 = vrot.lane.b32.xlu0 %v2106, 16
        %v2290 = vpop.permute.xlu0 %2289
        %2291 = vrot.lane.b32.xlu0 %v2108, 16
        %v2292 = vpop.permute.xlu0 %2291
        %2293 = vrot.lane.b32.xlu0 %v2111, 16
        %v2294 = vpop.permute.xlu0 %2293
        %2295 = vrot.lane.b32.xlu0 %v2113, 16
        %v2296 = vpop.permute.xlu0 %2295
        %2297 = vrot.lane.b32.xlu0 %v2116, 16
        %v2298 = vpop.permute.xlu0 %2297
        %2299 = vrot.lane.b32.xlu0 %v2118, 16
        %v2300 = vpop.permute.xlu0 %2299
        %2301 = vrot.lane.b32.xlu0 %v2121, 16
        %v2302 = vpop.permute.xlu0 %2301
        %2303 = vrot.lane.b32.xlu0 %v2123, 16
        %v2304 = vpop.permute.xlu0 %2303
        %2305 = vrot.lane.b32.xlu0 %v2126, 16
        %v2306 = vpop.permute.xlu0 %2305
        %2307 = vrot.lane.b32.xlu0 %v2128, 16
        %v2308 = vpop.permute.xlu0 %2307
        %2309 = vrot.lane.b32.xlu0 %v2131, 16
        %v2310 = vpop.permute.xlu0 %2309
        %2311 = vrot.lane.b32.xlu0 %v2133, 16
        %v2312 = vpop.permute.xlu0 %2311
        %2313 = vrot.lane.b32.xlu0 %v2136, 16
        %v2314 = vpop.permute.xlu0 %2313
        %2315 = vrot.lane.b32.xlu0 %v2138, 16
        %v2316 = vpop.permute.xlu0 %2315
        %2317 = vrot.lane.b32.xlu0 %v2141, 16
        %v2318 = vpop.permute.xlu0 %2317
        %2319 = vrot.lane.b32.xlu0 %v2143, 16
        %v2320 = vpop.permute.xlu0 %2319
        %2321 = vrot.lane.b32.xlu0 %v2146, 16
        %v2322 = vpop.permute.xlu0 %2321
        %2323 = vrot.lane.b32.xlu0 %v2148, 16
        %v2324 = vpop.permute.xlu0 %2323
        %2325 = vrot.lane.b32.xlu0 %v2151, 16
        %v2326 = vpop.permute.xlu0 %2325
        %2327 = vrot.lane.b32.xlu0 %v2153, 16
        %v2328 = vpop.permute.xlu0 %2327
        %2329 = vrot.lane.b32.xlu0 %v2156, 16
        %v2330 = vpop.permute.xlu0 %2329
        %2331 = vrot.lane.b32.xlu0 %v2158, 16
        %v2332 = vpop.permute.xlu0 %2331
        %2333 = vrot.lane.b32.xlu0 %v2161, 16
        %v2334 = vpop.permute.xlu0 %2333
        %2335 = vrot.lane.b32.xlu0 %v2163, 16
        %v2336 = vpop.permute.xlu0 %2335
        %2337 = vrot.lane.b32.xlu0 %v2166, 16
        %v2338 = vpop.permute.xlu0 %2337
        %2339 = vrot.lane.b32.xlu0 %v2168, 16
        %v2340 = vpop.permute.xlu0 %2339
        %2341 = vrot.lane.b32.xlu0 %v2171, 16
        %v2342 = vpop.permute.xlu0 %2341
        %2343 = vrot.lane.b32.xlu0 %v2173, 16
        %v2344 = vpop.permute.xlu0 %2343
        %2345 = vrot.lane.b32.xlu0 %v2176, 16
        %v2346 = vpop.permute.xlu0 %2345
        %2347 = vrot.lane.b32.xlu0 %v2178, 16
        %v2348 = vpop.permute.xlu0 %2347
        %2381 = vrot.lane.b32.xlu0 %v2181, 32
        %v2382 = vpop.permute.xlu0 %2381
        %2383 = vrot.lane.b32.xlu0 %v2183, 32
        %v2384 = vpop.permute.xlu0 %2383
        %2385 = vrot.lane.b32.xlu0 %v2186, 32
        %v2386 = vpop.permute.xlu0 %2385
        %2387 = vrot.lane.b32.xlu0 %v2188, 32
        %v2388 = vpop.permute.xlu0 %2387
        %2389 = vrot.lane.b32.xlu0 %v2191, 32
        %v2390 = vpop.permute.xlu0 %2389
        %2391 = vrot.lane.b32.xlu0 %v2193, 32
        %v2392 = vpop.permute.xlu0 %2391
        %2393 = vrot.lane.b32.xlu0 %v2196, 32
        %v2394 = vpop.permute.xlu0 %2393
        %2395 = vrot.lane.b32.xlu0 %v2198, 32
        %v2396 = vpop.permute.xlu0 %2395
        %2397 = vrot.lane.b32.xlu0 %v2201, 32
        %v2398 = vpop.permute.xlu0 %2397
        %2399 = vrot.lane.b32.xlu0 %v2203, 32
        %v2400 = vpop.permute.xlu0 %2399
        %2401 = vrot.lane.b32.xlu0 %v2206, 32
        %v2402 = vpop.permute.xlu0 %2401
        %2403 = vrot.lane.b32.xlu0 %v2208, 32
        %v2404 = vpop.permute.xlu0 %2403
        %2405 = vrot.lane.b32.xlu0 %v2211, 32
        %v2406 = vpop.permute.xlu0 %2405
        %2407 = vrot.lane.b32.xlu0 %v2213, 32
        %v2408 = vpop.permute.xlu0 %2407
        %2409 = vrot.lane.b32.xlu0 %v2216, 32
        %v2410 = vpop.permute.xlu0 %2409
        %2411 = vrot.lane.b32.xlu0 %v2218, 32
        %v2412 = vpop.permute.xlu0 %2411
        %2413 = vrot.lane.b32.xlu0 %v2221, 32
        %v2414 = vpop.permute.xlu0 %2413
        %2415 = vrot.lane.b32.xlu0 %v2223, 32
        %v2416 = vpop.permute.xlu0 %2415
        %2417 = vrot.lane.b32.xlu0 %v2226, 32
        %v2418 = vpop.permute.xlu0 %2417
        %2419 = vrot.lane.b32.xlu0 %v2228, 32
        %v2420 = vpop.permute.xlu0 %2419
        %2421 = vrot.lane.b32.xlu0 %v2231, 32
        %v2422 = vpop.permute.xlu0 %2421
        %2423 = vrot.lane.b32.xlu0 %v2233, 32
        %v2424 = vpop.permute.xlu0 %2423
        %2425 = vrot.lane.b32.xlu0 %v2236, 32
        %v2426 = vpop.permute.xlu0 %2425
        %2427 = vrot.lane.b32.xlu0 %v2238, 32
        %v2428 = vpop.permute.xlu0 %2427
        %2429 = vrot.lane.b32.xlu0 %v2241, 32
        %v2430 = vpop.permute.xlu0 %2429
        %2431 = vrot.lane.b32.xlu0 %v2243, 32
        %v2432 = vpop.permute.xlu0 %2431
        %2433 = vrot.lane.b32.xlu0 %v2246, 32
        %v2434 = vpop.permute.xlu0 %2433
        %2435 = vrot.lane.b32.xlu0 %v2248, 32
        %v2436 = vpop.permute.xlu0 %2435
        %2437 = vrot.lane.b32.xlu0 %v2251, 32
        %v2438 = vpop.permute.xlu0 %2437
        %2439 = vrot.lane.b32.xlu0 %v2253, 32
        %v2440 = vpop.permute.xlu0 %2439
        %2441 = vrot.lane.b32.xlu0 %v2256, 32
        %v2442 = vpop.permute.xlu0 %2441
        %2443 = vrot.lane.b32.xlu0 %v2258, 32
        %v2444 = vpop.permute.xlu0 %2443
        %2477 = vrot.lane.b32.xlu0 %v2000, 48
        %v2478 = vpop.permute.xlu0 %2477
        %2479 = vrot.lane.b32.xlu0 %v2001, 48
        %v2480 = vpop.permute.xlu0 %2479
        %2481 = vrot.lane.b32.xlu0 %v2003, 48
        %v2482 = vpop.permute.xlu0 %2481
        %2483 = vrot.lane.b32.xlu0 %v2004, 48
        %v2484 = vpop.permute.xlu0 %2483
        %2485 = vrot.lane.b32.xlu0 %v2006, 48
        %v2486 = vpop.permute.xlu0 %2485
        %2487 = vrot.lane.b32.xlu0 %v2007, 48
        %v2488 = vpop.permute.xlu0 %2487
        %2489 = vrot.lane.b32.xlu0 %v2009, 48
        %v2490 = vpop.permute.xlu0 %2489
        %2491 = vrot.lane.b32.xlu0 %v2010, 48
        %v2492 = vpop.permute.xlu0 %2491
        %2493 = vrot.lane.b32.xlu0 %v2012, 48
        %v2494 = vpop.permute.xlu0 %2493
        %2495 = vrot.lane.b32.xlu0 %v2013, 48
        %v2496 = vpop.permute.xlu0 %2495
        %2497 = vrot.lane.b32.xlu0 %v2015, 48
        %v2498 = vpop.permute.xlu0 %2497
        %2499 = vrot.lane.b32.xlu0 %v2016, 48
        %v2500 = vpop.permute.xlu0 %2499
        %2501 = vrot.lane.b32.xlu0 %v2018, 48
        %v2502 = vpop.permute.xlu0 %2501
        %2503 = vrot.lane.b32.xlu0 %v2019, 48
        %v2504 = vpop.permute.xlu0 %2503
        %2505 = vrot.lane.b32.xlu0 %v2021, 48
        %v2506 = vpop.permute.xlu0 %2505
        %2507 = vrot.lane.b32.xlu0 %v2022, 48
        %v2508 = vpop.permute.xlu0 %2507
        %2509 = vrot.lane.b32.xlu0 %v2024, 48
        %v2510 = vpop.permute.xlu0 %2509
        %2511 = vrot.lane.b32.xlu0 %v2025, 48
        %v2512 = vpop.permute.xlu0 %2511
        %2513 = vrot.lane.b32.xlu0 %v2027, 48
        %v2514 = vpop.permute.xlu0 %2513
        %2515 = vrot.lane.b32.xlu0 %v2028, 48
        %v2516 = vpop.permute.xlu0 %2515
        %2517 = vrot.lane.b32.xlu0 %v2030, 48
        %v2518 = vpop.permute.xlu0 %2517
        %2519 = vrot.lane.b32.xlu0 %v2031, 48
        %v2520 = vpop.permute.xlu0 %2519
        %2521 = vrot.lane.b32.xlu0 %v2033, 48
        %v2522 = vpop.permute.xlu0 %2521
        %2523 = vrot.lane.b32.xlu0 %v2034, 48
        %v2524 = vpop.permute.xlu0 %2523
        %2525 = vrot.lane.b32.xlu0 %v2036, 48
        %v2526 = vpop.permute.xlu0 %2525
        %2527 = vrot.lane.b32.xlu0 %v2037, 48
        %v2528 = vpop.permute.xlu0 %2527
        %2529 = vrot.lane.b32.xlu0 %v2039, 48
        %v2530 = vpop.permute.xlu0 %2529
        %2531 = vrot.lane.b32.xlu0 %v2040, 48
        %v2532 = vpop.permute.xlu0 %2531
        %2533 = vrot.lane.b32.xlu0 %v2042, 48
        %v2534 = vpop.permute.xlu0 %2533
        %2535 = vrot.lane.b32.xlu0 %v2043, 48
        %v2536 = vpop.permute.xlu0 %2535
        %2537 = vrot.lane.b32.xlu0 %v2045, 48
        %v2538 = vpop.permute.xlu0 %2537
        %2539 = vrot.lane.b32.xlu0 %v2046, 48
        %v2540 = vpop.permute.xlu0 %2539
        %2573 = vrot.lane.b32.xlu0 %v2106, 64
        %v2574 = vpop.permute.xlu0 %2573
        %2575 = vrot.lane.b32.xlu0 %v2108, 64
        %v2576 = vpop.permute.xlu0 %2575
        %2577 = vrot.lane.b32.xlu0 %v2111, 64
        %v2578 = vpop.permute.xlu0 %2577
        %2579 = vrot.lane.b32.xlu0 %v2113, 64
        %v2580 = vpop.permute.xlu0 %2579
        %2581 = vrot.lane.b32.xlu0 %v2116, 64
        %v2582 = vpop.permute.xlu0 %2581
        %2583 = vrot.lane.b32.xlu0 %v2118, 64
        %v2584 = vpop.permute.xlu0 %2583
        %2585 = vrot.lane.b32.xlu0 %v2121, 64
        %v2586 = vpop.permute.xlu0 %2585
        %2587 = vrot.lane.b32.xlu0 %v2123, 64
        %v2588 = vpop.permute.xlu0 %2587
        %2589 = vrot.lane.b32.xlu0 %v2126, 64
        %v2590 = vpop.permute.xlu0 %2589
        %2591 = vrot.lane.b32.xlu0 %v2128, 64
        %v2592 = vpop.permute.xlu0 %2591
        %2593 = vrot.lane.b32.xlu0 %v2131, 64
        %v2594 = vpop.permute.xlu0 %2593
        %2595 = vrot.lane.b32.xlu0 %v2133, 64
        %v2596 = vpop.permute.xlu0 %2595
        %2597 = vrot.lane.b32.xlu0 %v2136, 64
        %v2598 = vpop.permute.xlu0 %2597
        %2599 = vrot.lane.b32.xlu0 %v2138, 64
        %v2600 = vpop.permute.xlu0 %2599
        %2601 = vrot.lane.b32.xlu0 %v2141, 64
        %v2602 = vpop.permute.xlu0 %2601
        %2603 = vrot.lane.b32.xlu0 %v2143, 64
        %v2604 = vpop.permute.xlu0 %2603
        %2605 = vrot.lane.b32.xlu0 %v2146, 64
        %v2606 = vpop.permute.xlu0 %2605
        %2607 = vrot.lane.b32.xlu0 %v2148, 64
        %v2608 = vpop.permute.xlu0 %2607
        %2609 = vrot.lane.b32.xlu0 %v2151, 64
        %v2610 = vpop.permute.xlu0 %2609
        %2611 = vrot.lane.b32.xlu0 %v2153, 64
        %v2612 = vpop.permute.xlu0 %2611
        %2613 = vrot.lane.b32.xlu0 %v2156, 64
        %v2614 = vpop.permute.xlu0 %2613
        %2615 = vrot.lane.b32.xlu0 %v2158, 64
        %v2616 = vpop.permute.xlu0 %2615
        %2617 = vrot.lane.b32.xlu0 %v2161, 64
        %v2618 = vpop.permute.xlu0 %2617
        %2619 = vrot.lane.b32.xlu0 %v2163, 64
        %v2620 = vpop.permute.xlu0 %2619
        %2621 = vrot.lane.b32.xlu0 %v2166, 64
        %v2622 = vpop.permute.xlu0 %2621
        %2623 = vrot.lane.b32.xlu0 %v2168, 64
        %v2624 = vpop.permute.xlu0 %2623
        %2625 = vrot.lane.b32.xlu0 %v2171, 64
        %v2626 = vpop.permute.xlu0 %2625
        %2627 = vrot.lane.b32.xlu0 %v2173, 64
        %v2628 = vpop.permute.xlu0 %2627
        %2629 = vrot.lane.b32.xlu0 %v2176, 64
        %v2630 = vpop.permute.xlu0 %2629
        %2631 = vrot.lane.b32.xlu0 %v2178, 64
        %v2632 = vpop.permute.xlu0 %2631
        %2633 = vrot.lane.b32.xlu0 %v2264, 64
        %v2634 = vpop.permute.xlu0 %2633
        %2635 = vrot.lane.b32.xlu0 %v2266, 64
        %v2636 = vpop.permute.xlu0 %2635
        %2669 = vrot.lane.b32.xlu0 %v2186, 80
        %v2670 = vpop.permute.xlu0 %2669
        %2671 = vrot.lane.b32.xlu0 %v2188, 80
        %v2672 = vpop.permute.xlu0 %2671
        %2673 = vrot.lane.b32.xlu0 %v2191, 80
        %v2674 = vpop.permute.xlu0 %2673
        %2675 = vrot.lane.b32.xlu0 %v2193, 80
        %v2676 = vpop.permute.xlu0 %2675
        %2677 = vrot.lane.b32.xlu0 %v2196, 80
        %v2678 = vpop.permute.xlu0 %2677
        %2679 = vrot.lane.b32.xlu0 %v2198, 80
        %v2680 = vpop.permute.xlu0 %2679
        %2681 = vrot.lane.b32.xlu0 %v2201, 80
        %v2682 = vpop.permute.xlu0 %2681
        %2683 = vrot.lane.b32.xlu0 %v2203, 80
        %v2684 = vpop.permute.xlu0 %2683
        %2685 = vrot.lane.b32.xlu0 %v2206, 80
        %v2686 = vpop.permute.xlu0 %2685
        %2687 = vrot.lane.b32.xlu0 %v2208, 80
        %v2688 = vpop.permute.xlu0 %2687
        %2689 = vrot.lane.b32.xlu0 %v2211, 80
        %v2690 = vpop.permute.xlu0 %2689
        %2691 = vrot.lane.b32.xlu0 %v2213, 80
        %v2692 = vpop.permute.xlu0 %2691
        %2693 = vrot.lane.b32.xlu0 %v2216, 80
        %v2694 = vpop.permute.xlu0 %2693
        %2695 = vrot.lane.b32.xlu0 %v2218, 80
        %v2696 = vpop.permute.xlu0 %2695
        %2697 = vrot.lane.b32.xlu0 %v2221, 80
        %v2698 = vpop.permute.xlu0 %2697
        %2699 = vrot.lane.b32.xlu0 %v2223, 80
        %v2700 = vpop.permute.xlu0 %2699
        %2701 = vrot.lane.b32.xlu0 %v2226, 80
        %v2702 = vpop.permute.xlu0 %2701
        %2703 = vrot.lane.b32.xlu0 %v2228, 80
        %v2704 = vpop.permute.xlu0 %2703
        %2705 = vrot.lane.b32.xlu0 %v2231, 80
        %v2706 = vpop.permute.xlu0 %2705
        %2707 = vrot.lane.b32.xlu0 %v2233, 80
        %v2708 = vpop.permute.xlu0 %2707
        %2709 = vrot.lane.b32.xlu0 %v2236, 80
        %v2710 = vpop.permute.xlu0 %2709
        %2711 = vrot.lane.b32.xlu0 %v2238, 80
        %v2712 = vpop.permute.xlu0 %2711
        %2713 = vrot.lane.b32.xlu0 %v2241, 80
        %v2714 = vpop.permute.xlu0 %2713
        %2715 = vrot.lane.b32.xlu0 %v2243, 80
        %v2716 = vpop.permute.xlu0 %2715
        %2717 = vrot.lane.b32.xlu0 %v2246, 80
        %v2718 = vpop.permute.xlu0 %2717
        %2719 = vrot.lane.b32.xlu0 %v2248, 80
        %v2720 = vpop.permute.xlu0 %2719
        %2721 = vrot.lane.b32.xlu0 %v2251, 80
        %v2722 = vpop.permute.xlu0 %2721
        %2723 = vrot.lane.b32.xlu0 %v2253, 80
        %v2724 = vpop.permute.xlu0 %2723
        %2725 = vrot.lane.b32.xlu0 %v2256, 80
        %v2726 = vpop.permute.xlu0 %2725
        %2727 = vrot.lane.b32.xlu0 %v2258, 80
        %v2728 = vpop.permute.xlu0 %2727
        %2729 = vrot.lane.b32.xlu0 %v2269, 80
        %v2730 = vpop.permute.xlu0 %2729
        %2731 = vrot.lane.b32.xlu0 %v2271, 80
        %v2732 = vpop.permute.xlu0 %2731
        %2765 = vrot.lane.b32.xlu0 %v2003, 96
        %v2766 = vpop.permute.xlu0 %2765
        %2767 = vrot.lane.b32.xlu0 %v2004, 96
        %v2768 = vpop.permute.xlu0 %2767
        %2769 = vrot.lane.b32.xlu0 %v2006, 96
        %v2770 = vpop.permute.xlu0 %2769
        %2771 = vrot.lane.b32.xlu0 %v2007, 96
        %v2772 = vpop.permute.xlu0 %2771
        %2773 = vrot.lane.b32.xlu0 %v2009, 96
        %v2774 = vpop.permute.xlu0 %2773
        %2775 = vrot.lane.b32.xlu0 %v2010, 96
        %v2776 = vpop.permute.xlu0 %2775
        %2777 = vrot.lane.b32.xlu0 %v2012, 96
        %v2778 = vpop.permute.xlu0 %2777
        %2779 = vrot.lane.b32.xlu0 %v2013, 96
        %v2780 = vpop.permute.xlu0 %2779
        %2781 = vrot.lane.b32.xlu0 %v2015, 96
        %v2782 = vpop.permute.xlu0 %2781
        %2783 = vrot.lane.b32.xlu0 %v2016, 96
        %v2784 = vpop.permute.xlu0 %2783
        %2785 = vrot.lane.b32.xlu0 %v2018, 96
        %v2786 = vpop.permute.xlu0 %2785
        %2787 = vrot.lane.b32.xlu0 %v2019, 96
        %v2788 = vpop.permute.xlu0 %2787
        %2789 = vrot.lane.b32.xlu0 %v2021, 96
        %v2790 = vpop.permute.xlu0 %2789
        %2791 = vrot.lane.b32.xlu0 %v2022, 96
        %v2792 = vpop.permute.xlu0 %2791
        %2793 = vrot.lane.b32.xlu0 %v2024, 96
        %v2794 = vpop.permute.xlu0 %2793
        %2795 = vrot.lane.b32.xlu0 %v2025, 96
        %v2796 = vpop.permute.xlu0 %2795
        %2797 = vrot.lane.b32.xlu0 %v2027, 96
        %v2798 = vpop.permute.xlu0 %2797
        %2799 = vrot.lane.b32.xlu0 %v2028, 96
        %v2800 = vpop.permute.xlu0 %2799
        %2801 = vrot.lane.b32.xlu0 %v2030, 96
        %v2802 = vpop.permute.xlu0 %2801
        %2803 = vrot.lane.b32.xlu0 %v2031, 96
        %v2804 = vpop.permute.xlu0 %2803
        %2805 = vrot.lane.b32.xlu0 %v2033, 96
        %v2806 = vpop.permute.xlu0 %2805
        %2807 = vrot.lane.b32.xlu0 %v2034, 96
        %v2808 = vpop.permute.xlu0 %2807
        %2809 = vrot.lane.b32.xlu0 %v2036, 96
        %v2810 = vpop.permute.xlu0 %2809
        %2811 = vrot.lane.b32.xlu0 %v2037, 96
        %v2812 = vpop.permute.xlu0 %2811
        %2813 = vrot.lane.b32.xlu0 %v2039, 96
        %v2814 = vpop.permute.xlu0 %2813
        %2815 = vrot.lane.b32.xlu0 %v2040, 96
        %v2816 = vpop.permute.xlu0 %2815
        %2817 = vrot.lane.b32.xlu0 %v2042, 96
        %v2818 = vpop.permute.xlu0 %2817
        %2819 = vrot.lane.b32.xlu0 %v2043, 96
        %v2820 = vpop.permute.xlu0 %2819
        %2821 = vrot.lane.b32.xlu0 %v2045, 96
        %v2822 = vpop.permute.xlu0 %2821
        %2823 = vrot.lane.b32.xlu0 %v2046, 96
        %v2824 = vpop.permute.xlu0 %2823
        %2825 = vrot.lane.b32.xlu0 %v2048, 96
        %v2826 = vpop.permute.xlu0 %2825
        %2827 = vrot.lane.b32.xlu0 %v2049, 96
        %v2828 = vpop.permute.xlu0 %2827
        %2861 = vrot.lane.b32.xlu0 %v2111, 112
        %v2862 = vpop.permute.xlu0 %2861
        %2863 = vrot.lane.b32.xlu0 %v2113, 112
        %v2864 = vpop.permute.xlu0 %2863
        %2865 = vrot.lane.b32.xlu0 %v2116, 112
        %v2866 = vpop.permute.xlu0 %2865
        %2867 = vrot.lane.b32.xlu0 %v2118, 112
        %v2868 = vpop.permute.xlu0 %2867
        %2869 = vrot.lane.b32.xlu0 %v2121, 112
        %v2870 = vpop.permute.xlu0 %2869
        %2871 = vrot.lane.b32.xlu0 %v2123, 112
        %v2872 = vpop.permute.xlu0 %2871
        %2873 = vrot.lane.b32.xlu0 %v2126, 112
        %v2874 = vpop.permute.xlu0 %2873
        %2875 = vrot.lane.b32.xlu0 %v2128, 112
        %v2876 = vpop.permute.xlu0 %2875
        %2877 = vrot.lane.b32.xlu0 %v2131, 112
        %v2878 = vpop.permute.xlu0 %2877
        %2879 = vrot.lane.b32.xlu0 %v2133, 112
        %v2880 = vpop.permute.xlu0 %2879
        %2881 = vrot.lane.b32.xlu0 %v2136, 112
        %v2882 = vpop.permute.xlu0 %2881
        %2883 = vrot.lane.b32.xlu0 %v2138, 112
        %v2884 = vpop.permute.xlu0 %2883
        %2885 = vrot.lane.b32.xlu0 %v2141, 112
        %v2886 = vpop.permute.xlu0 %2885
        %2887 = vrot.lane.b32.xlu0 %v2143, 112
        %v2888 = vpop.permute.xlu0 %2887
        %2889 = vrot.lane.b32.xlu0 %v2146, 112
        %v2890 = vpop.permute.xlu0 %2889
        %2891 = vrot.lane.b32.xlu0 %v2148, 112
        %v2892 = vpop.permute.xlu0 %2891
        %2893 = vrot.lane.b32.xlu0 %v2151, 112
        %v2894 = vpop.permute.xlu0 %2893
        %2895 = vrot.lane.b32.xlu0 %v2153, 112
        %v2896 = vpop.permute.xlu0 %2895
        %2897 = vrot.lane.b32.xlu0 %v2156, 112
        %v2898 = vpop.permute.xlu0 %2897
        %2899 = vrot.lane.b32.xlu0 %v2158, 112
        %v2900 = vpop.permute.xlu0 %2899
        %2901 = vrot.lane.b32.xlu0 %v2161, 112
        %v2902 = vpop.permute.xlu0 %2901
        %2903 = vrot.lane.b32.xlu0 %v2163, 112
        %v2904 = vpop.permute.xlu0 %2903
        %2905 = vrot.lane.b32.xlu0 %v2166, 112
        %v2906 = vpop.permute.xlu0 %2905
        %2907 = vrot.lane.b32.xlu0 %v2168, 112
        %v2908 = vpop.permute.xlu0 %2907
        %2909 = vrot.lane.b32.xlu0 %v2171, 112
        %v2910 = vpop.permute.xlu0 %2909
        %2911 = vrot.lane.b32.xlu0 %v2173, 112
        %v2912 = vpop.permute.xlu0 %2911
        %2913 = vrot.lane.b32.xlu0 %v2176, 112
        %v2914 = vpop.permute.xlu0 %2913
        %2915 = vrot.lane.b32.xlu0 %v2178, 112
        %v2916 = vpop.permute.xlu0 %2915
        %2917 = vrot.lane.b32.xlu0 %v2264, 112
        %v2918 = vpop.permute.xlu0 %2917
        %2919 = vrot.lane.b32.xlu0 %v2266, 112
        %v2920 = vpop.permute.xlu0 %2919
        %2921 = vrot.lane.b32.xlu0 %v2277, 112
        %v2922 = vpop.permute.xlu0 %2921
        %2923 = vrot.lane.b32.xlu0 %v2279, 112
        %v2924 = vpop.permute.xlu0 %2923
        %v2957 = vsel %vm319, %v1997, %v2286
        %v2958 = vsel %vm319, %v1998, %v2288
        %v2959 = vsel %vm319, %v2000, %v2290
        %v2960 = vsel %vm319, %v2001, %v2292
        %v2961 = vsel %vm319, %v2003, %v2294
        %v2962 = vsel %vm319, %v2004, %v2296
        %v2963 = vsel %vm319, %v2006, %v2298
        %v2964 = vsel %vm319, %v2007, %v2300
        %v2965 = vsel %vm319, %v2009, %v2302
        %v2966 = vsel %vm319, %v2010, %v2304
        %v2967 = vsel %vm319, %v2012, %v2306
        %v2968 = vsel %vm319, %v2013, %v2308
        %v2969 = vsel %vm319, %v2015, %v2310
        %v2970 = vsel %vm319, %v2016, %v2312
        %v2971 = vsel %vm319, %v2018, %v2314
        %v2972 = vsel %vm319, %v2019, %v2316
        %v2973 = vsel %vm319, %v2021, %v2318
        %v2974 = vsel %vm319, %v2022, %v2320
        %v2975 = vsel %vm319, %v2024, %v2322
        %v2976 = vsel %vm319, %v2025, %v2324
        %v2977 = vsel %vm319, %v2027, %v2326
        %v2978 = vsel %vm319, %v2028, %v2328
        %v2979 = vsel %vm319, %v2030, %v2330
        %v2980 = vsel %vm319, %v2031, %v2332
        %v2981 = vsel %vm319, %v2033, %v2334
        %v2982 = vsel %vm319, %v2034, %v2336
        %v2983 = vsel %vm319, %v2036, %v2338
        %v2984 = vsel %vm319, %v2037, %v2340
        %v2985 = vsel %vm319, %v2039, %v2342
        %v2986 = vsel %vm319, %v2040, %v2344
        %v2987 = vsel %vm319, %v2042, %v2346
        %v2988 = vsel %vm319, %v2043, %v2348
        %v2989 = vsel %vm1453, %v2957, %v2382
        %v2990 = vsel %vm1453, %v2958, %v2384
        %v2991 = vsel %vm1453, %v2959, %v2386
        %v2992 = vsel %vm1453, %v2960, %v2388
        %v2993 = vsel %vm1453, %v2961, %v2390
        %v2994 = vsel %vm1453, %v2962, %v2392
        %v2995 = vsel %vm1453, %v2963, %v2394
        %v2996 = vsel %vm1453, %v2964, %v2396
        %v2997 = vsel %vm1453, %v2965, %v2398
        %v2998 = vsel %vm1453, %v2966, %v2400
        %v2999 = vsel %vm1453, %v2967, %v2402
        %v3000 = vsel %vm1453, %v2968, %v2404
        %v3001 = vsel %vm1453, %v2969, %v2406
        %v3002 = vsel %vm1453, %v2970, %v2408
        %v3003 = vsel %vm1453, %v2971, %v2410
        %v3004 = vsel %vm1453, %v2972, %v2412
        %v3005 = vsel %vm1453, %v2973, %v2414
        %v3006 = vsel %vm1453, %v2974, %v2416
        %v3007 = vsel %vm1453, %v2975, %v2418
        %v3008 = vsel %vm1453, %v2976, %v2420
        %v3009 = vsel %vm1453, %v2977, %v2422
        %v3010 = vsel %vm1453, %v2978, %v2424
        %v3011 = vsel %vm1453, %v2979, %v2426
        %v3012 = vsel %vm1453, %v2980, %v2428
        %v3013 = vsel %vm1453, %v2981, %v2430
        %v3014 = vsel %vm1453, %v2982, %v2432
        %v3015 = vsel %vm1453, %v2983, %v2434
        %v3016 = vsel %vm1453, %v2984, %v2436
        %v3017 = vsel %vm1453, %v2985, %v2438
        %v3018 = vsel %vm1453, %v2986, %v2440
        %v3019 = vsel %vm1453, %v2987, %v2442
        %v3020 = vsel %vm1453, %v2988, %v2444
        %v3021 = vsel %vm1486, %v2989, %v2478
        %v3022 = vsel %vm1486, %v2990, %v2480
        %v3023 = vsel %vm1486, %v2991, %v2482
        %v3024 = vsel %vm1486, %v2992, %v2484
        %v3025 = vsel %vm1486, %v2993, %v2486
        %v3026 = vsel %vm1486, %v2994, %v2488
        %v3027 = vsel %vm1486, %v2995, %v2490
        %v3028 = vsel %vm1486, %v2996, %v2492
        %v3029 = vsel %vm1486, %v2997, %v2494
        %v3030 = vsel %vm1486, %v2998, %v2496
        %v3031 = vsel %vm1486, %v2999, %v2498
        %v3032 = vsel %vm1486, %v3000, %v2500
        %v3033 = vsel %vm1486, %v3001, %v2502
        %v3034 = vsel %vm1486, %v3002, %v2504
        %v3035 = vsel %vm1486, %v3003, %v2506
        %v3036 = vsel %vm1486, %v3004, %v2508
        %v3037 = vsel %vm1486, %v3005, %v2510
        %v3038 = vsel %vm1486, %v3006, %v2512
        %v3039 = vsel %vm1486, %v3007, %v2514
        %v3040 = vsel %vm1486, %v3008, %v2516
        %v3041 = vsel %vm1486, %v3009, %v2518
        %v3042 = vsel %vm1486, %v3010, %v2520
        %v3043 = vsel %vm1486, %v3011, %v2522
        %v3044 = vsel %vm1486, %v3012, %v2524
        %v3045 = vsel %vm1486, %v3013, %v2526
        %v3046 = vsel %vm1486, %v3014, %v2528
        %v3047 = vsel %vm1486, %v3015, %v2530
        %v3048 = vsel %vm1486, %v3016, %v2532
        %v3049 = vsel %vm1486, %v3017, %v2534
        %v3050 = vsel %vm1486, %v3018, %v2536
        %v3051 = vsel %vm1486, %v3019, %v2538
        %v3052 = vsel %vm1486, %v3020, %v2540
        %v3053 = vsel %vm1519, %v3021, %v2574
        %v3054 = vsel %vm1519, %v3022, %v2576
        %v3055 = vsel %vm1519, %v3023, %v2578
        %v3056 = vsel %vm1519, %v3024, %v2580
        %v3057 = vsel %vm1519, %v3025, %v2582
        %v3058 = vsel %vm1519, %v3026, %v2584
        %v3059 = vsel %vm1519, %v3027, %v2586
        %v3060 = vsel %vm1519, %v3028, %v2588
        %v3061 = vsel %vm1519, %v3029, %v2590
        %v3062 = vsel %vm1519, %v3030, %v2592
        %v3063 = vsel %vm1519, %v3031, %v2594
        %v3064 = vsel %vm1519, %v3032, %v2596
        %v3065 = vsel %vm1519, %v3033, %v2598
        %v3066 = vsel %vm1519, %v3034, %v2600
        %v3067 = vsel %vm1519, %v3035, %v2602
        %v3068 = vsel %vm1519, %v3036, %v2604
        %v3069 = vsel %vm1519, %v3037, %v2606
        %v3070 = vsel %vm1519, %v3038, %v2608
        %v3071 = vsel %vm1519, %v3039, %v2610
        %v3072 = vsel %vm1519, %v3040, %v2612
        %v3073 = vsel %vm1519, %v3041, %v2614
        %v3074 = vsel %vm1519, %v3042, %v2616
        %v3075 = vsel %vm1519, %v3043, %v2618
        %v3076 = vsel %vm1519, %v3044, %v2620
        %v3077 = vsel %vm1519, %v3045, %v2622
        %v3078 = vsel %vm1519, %v3046, %v2624
        %v3079 = vsel %vm1519, %v3047, %v2626
        %v3080 = vsel %vm1519, %v3048, %v2628
        %v3081 = vsel %vm1519, %v3049, %v2630
        %v3082 = vsel %vm1519, %v3050, %v2632
        %v3083 = vsel %vm1519, %v3051, %v2634
        %v3084 = vsel %vm1519, %v3052, %v2636
        %v3085 = vsel %vm1552, %v3053, %v2670
        %v3086 = vsel %vm1552, %v3054, %v2672
        %v3087 = vsel %vm1552, %v3055, %v2674
        %v3088 = vsel %vm1552, %v3056, %v2676
        %v3089 = vsel %vm1552, %v3057, %v2678
        %v3090 = vsel %vm1552, %v3058, %v2680
        %v3091 = vsel %vm1552, %v3059, %v2682
        %v3092 = vsel %vm1552, %v3060, %v2684
        %v3093 = vsel %vm1552, %v3061, %v2686
        %v3094 = vsel %vm1552, %v3062, %v2688
        %v3095 = vsel %vm1552, %v3063, %v2690
        %v3096 = vsel %vm1552, %v3064, %v2692
        %v3097 = vsel %vm1552, %v3065, %v2694
        %v3098 = vsel %vm1552, %v3066, %v2696
        %v3099 = vsel %vm1552, %v3067, %v2698
        %v3100 = vsel %vm1552, %v3068, %v2700
        %v3101 = vsel %vm1552, %v3069, %v2702
        %v3102 = vsel %vm1552, %v3070, %v2704
        %v3103 = vsel %vm1552, %v3071, %v2706
        %v3104 = vsel %vm1552, %v3072, %v2708
        %v3105 = vsel %vm1552, %v3073, %v2710
        %v3106 = vsel %vm1552, %v3074, %v2712
        %v3107 = vsel %vm1552, %v3075, %v2714
        %v3108 = vsel %vm1552, %v3076, %v2716
        %v3109 = vsel %vm1552, %v3077, %v2718
        %v3110 = vsel %vm1552, %v3078, %v2720
        %v3111 = vsel %vm1552, %v3079, %v2722
        %v3112 = vsel %vm1552, %v3080, %v2724
        %v3113 = vsel %vm1552, %v3081, %v2726
        %v3114 = vsel %vm1552, %v3082, %v2728
        %v3115 = vsel %vm1552, %v3083, %v2730
        %v3116 = vsel %vm1552, %v3084, %v2732
        %v3117 = vsel %vm1585, %v3085, %v2766
        %v3118 = vsel %vm1585, %v3086, %v2768
        %v3119 = vsel %vm1585, %v3087, %v2770
        %v3120 = vsel %vm1585, %v3088, %v2772
        %v3121 = vsel %vm1585, %v3089, %v2774
        %v3122 = vsel %vm1585, %v3090, %v2776
        %v3123 = vsel %vm1585, %v3091, %v2778
        %v3124 = vsel %vm1585, %v3092, %v2780
        %v3125 = vsel %vm1585, %v3093, %v2782
        %v3126 = vsel %vm1585, %v3094, %v2784
        %v3127 = vsel %vm1585, %v3095, %v2786
        %v3128 = vsel %vm1585, %v3096, %v2788
        %v3129 = vsel %vm1585, %v3097, %v2790
        %v3130 = vsel %vm1585, %v3098, %v2792
        %v3131 = vsel %vm1585, %v3099, %v2794
        %v3132 = vsel %vm1585, %v3100, %v2796
        %v3133 = vsel %vm1585, %v3101, %v2798
        %v3134 = vsel %vm1585, %v3102, %v2800
        %v3135 = vsel %vm1585, %v3103, %v2802
        %v3136 = vsel %vm1585, %v3104, %v2804
        %v3137 = vsel %vm1585, %v3105, %v2806
        %v3138 = vsel %vm1585, %v3106, %v2808
        %v3139 = vsel %vm1585, %v3107, %v2810
        %v3140 = vsel %vm1585, %v3108, %v2812
        %v3141 = vsel %vm1585, %v3109, %v2814
        %v3142 = vsel %vm1585, %v3110, %v2816
        %v3143 = vsel %vm1585, %v3111, %v2818
        %v3144 = vsel %vm1585, %v3112, %v2820
        %v3145 = vsel %vm1585, %v3113, %v2822
        %v3146 = vsel %vm1585, %v3114, %v2824
        %v3147 = vsel %vm1585, %v3115, %v2826
        %v3148 = vsel %vm1585, %v3116, %v2828
        %v3149 = vsel %vm1618, %v3117, %v2862
        %v3150 = vsel %vm1618, %v3118, %v2864
        %v3151 = vsel %vm1618, %v3119, %v2866
        %v3152 = vsel %vm1618, %v3120, %v2868
        %v3153 = vsel %vm1618, %v3121, %v2870
        %v3154 = vsel %vm1618, %v3122, %v2872
        %v3155 = vsel %vm1618, %v3123, %v2874
        %v3156 = vsel %vm1618, %v3124, %v2876
        %v3157 = vsel %vm1618, %v3125, %v2878
        %v3158 = vsel %vm1618, %v3126, %v2880
        %v3159 = vsel %vm1618, %v3127, %v2882
        %v3160 = vsel %vm1618, %v3128, %v2884
        %v3161 = vsel %vm1618, %v3129, %v2886
        %v3162 = vsel %vm1618, %v3130, %v2888
        %v3163 = vsel %vm1618, %v3131, %v2890
        %v3164 = vsel %vm1618, %v3132, %v2892
        %v3165 = vsel %vm1618, %v3133, %v2894
        %v3166 = vsel %vm1618, %v3134, %v2896
        %v3167 = vsel %vm1618, %v3135, %v2898
        %v3168 = vsel %vm1618, %v3136, %v2900
        %v3169 = vsel %vm1618, %v3137, %v2902
        %v3170 = vsel %vm1618, %v3138, %v2904
        %v3171 = vsel %vm1618, %v3139, %v2906
        %v3172 = vsel %vm1618, %v3140, %v2908
        %v3173 = vsel %vm1618, %v3141, %v2910
        %v3174 = vsel %vm1618, %v3142, %v2912
        %v3175 = vsel %vm1618, %v3143, %v2914
        %v3176 = vsel %vm1618, %v3144, %v2916
        %v3177 = vsel %vm1618, %v3145, %v2918
        %v3178 = vsel %vm1618, %v3146, %v2920
        %v3179 = vsel %vm1618, %v3147, %v2922
        %v3180 = vsel %vm1618, %v3148, %v2924
        %v3182 = vlaneseq
        %v3183 = vshrl.u32 %v3182, 7
        %v3184 = vsub.s32 0, %v3183
        %v3185 = vrot.slane %v1996, %v3184
        %v3187 = vsel %vm319, %v2191, 0
        %v3189 = vsel %vm319, %v2193, 0
        %v3191 = vsel %vm319, %v2196, 0
        %v3193 = vsel %vm319, %v2198, 0
        %v3195 = vsel %vm319, %v2201, 0
        %v3197 = vsel %vm319, %v2203, 0
        %v3199 = vsel %vm319, %v2206, 0
        %v3201 = vsel %vm319, %v2208, 0
        %v3203 = vsel %vm319, %v2211, 0
        %v3205 = vsel %vm319, %v2213, 0
        %v3207 = vsel %vm319, %v2216, 0
        %v3209 = vsel %vm319, %v2218, 0
        %v3211 = vsel %vm319, %v2221, 0
        %v3213 = vsel %vm319, %v2223, 0
        %v3215 = vsel %vm319, %v2226, 0
        %v3217 = vsel %vm319, %v2228, 0
        %v3219 = vsel %vm319, %v2231, 0
        %v3221 = vsel %vm319, %v2233, 0
        %v3223 = vsel %vm319, %v2236, 0
        %v3225 = vsel %vm319, %v2238, 0
        %v3227 = vsel %vm319, %v2241, 0
        %v3229 = vsel %vm319, %v2243, 0
        %v3231 = vsel %vm319, %v2246, 0
        %v3233 = vsel %vm319, %v2248, 0
        %v3235 = vsel %vm319, %v2251, 0
        %v3237 = vsel %vm319, %v2253, 0
        %v3239 = vsel %vm319, %v2256, 0
        %v3241 = vsel %vm319, %v2258, 0
        %v3243 = vsel %vm319, %v2269, 0
        %v3245 = vsel %vm319, %v2271, 0
        %v3247 = vsel %vm319, %v2282, 0
        %v3249 = vsel %vm319, %v2284, 0
        %3251 = vmatprep.subr.mxu0 0.0
        %3252 = vmatpush1.msra.mxu0 %v1978
        %3253 = vmatprep.subr.mxu0 0.0
        %3254 = vmatpush1.msra.mxu0 %v1979
        %3255 = vmatprep.subr.mxu0 0.0
        %3256 = vmatpush1.msra.mxu0 %v1980
        %3257 = vmatprep.subr.mxu0 0.0
        %3258 = vmatpush1.msra.mxu0 %v1981
        %3259 = vmatprep.subr.mxu0 0.0
        %3260 = vmatpush1.msra.mxu0 %v1982
        %3261 = vmatprep.subr.mxu0 0.0
        %3262 = vmatpush1.msra.mxu0 %v1983
        %3263 = vmatprep.subr.mxu0 0.0
        %3264 = vmatpush1.msra.mxu0 %v1984
        %3265 = vmatprep.subr.mxu0 0.0
        %3266 = vmatpush1.msra.mxu0 %v1985
        %3267 = vmatprep.subr.mxu0 0.0
        %3268 = vmatpush1.msra.mxu0 %v1986
        %3269 = vmatprep.subr.mxu0 0.0
        %3270 = vmatpush1.msra.mxu0 %v1987
        %3271 = vmatprep.subr.mxu0 0.0
        %3272 = vmatpush1.msra.mxu0 %v1988
        %3273 = vmatprep.subr.mxu0 0.0
        %3274 = vmatpush1.msra.mxu0 %v1989
        %3275 = vmatprep.subr.mxu0 0.0
        %3276 = vmatpush1.msra.mxu0 %v1990
        %3277 = vmatprep.subr.mxu0 0.0
        %3278 = vmatpush1.msra.mxu0 %v1991
        %3279 = vmatprep.subr.mxu0 0.0
        %3280 = vmatpush1.msra.mxu0 %v1992
        %3281 = vmatprep.subr.mxu0 0.0
        %3282 = vmatpush1.msra.mxu0 %v1993
        %3283 = vmatprep.subr.mxu0 0.0
        %3284 = vmatpush1.msra.mxu0 %v1994
        %3285 = vmatprep.subr.mxu0 0.0
        %3286 = vmatpush1.msra.mxu0 %v1995
        %3287 = vmatprep.subr.mxu0 0.0
        %3288 = vmatpush1.msra.mxu0 0.0
        %3289 = vmatprep.subr.mxu0 0.0
        %3290 = vmatpush1.msra.mxu0 0.0
        %3291 = vmatprep.subr.mxu0 0.0
        %3292 = vmatpush1.msra.mxu0 0.0
        %3293 = vmatprep.subr.mxu0 0.0
        %3294 = vmatpush1.msra.mxu0 0.0
        %3295 = vmatprep.subr.mxu0 0.0
        %3296 = vmatpush1.msra.mxu0 0.0
        %3297 = vmatprep.subr.mxu0 0.0
        %3298 = vmatpush1.msra.mxu0 0.0
        %3299 = vmatprep.subr.mxu0 0.0
        %3300 = vmatpush1.msra.mxu0 0.0
        %3301 = vmatprep.subr.mxu0 0.0
        %3302 = vmatpush1.msra.mxu0 0.0
        %3303 = vmatprep.subr.mxu0 0.0
        %3304 = vmatpush1.msra.mxu0 0.0
        %3305 = vmatprep.subr.mxu0 0.0
        %3306 = vmatpush1.msra.mxu0 0.0
        %3307 = vmatprep.subr.mxu0 0.0
        %3308 = vmatpush1.msra.mxu0 0.0
        %3309 = vmatprep.subr.mxu0 0.0
        %3310 = vmatpush1.msra.mxu0 0.0
        %3311 = vmatprep.subr.mxu0 0.0
        %3312 = vmatpush1.msra.mxu0 0.0
        %3313 = vmatprep.subr.mxu0 0.0
        %3314 = vmatpush1.msra.mxu0 0.0
        %3315 = vmatprep.mubr.f32.mxu0 %v3187
        %3316 = vmatmul.mubr.f32.gmra.mrb[0].mxu0 %v3149
        %v3317 = vpop.f32.mrb[0].mxu0
        %v3318 = vadd.f32 %v3185, %v3317
        %v3319 = vpop.f32.mrb[0].mxu0
        %3320 = vmatprep.mubr.f32.mxu0 %v3189
        %3321 = vmatmul.mubr.f32.gmra.mrb[0].mxu0 %v3150
        %v3322 = vpop.f32.mrb[0].mxu0
        %v3323 = vadd.f32 %v3185, %v3322
        %v3324 = vpop.f32.mrb[0].mxu0
        %3325 = vmatprep.mubr.f32.mxu0 %v3191
        %3326 = vmatmul.mubr.f32.gmra.mrb[0].mxu0 %v3151
        %v3327 = vpop.f32.mrb[0].mxu0
        %v3328 = vadd.f32 %v3185, %v3327
        %v3329 = vpop.f32.mrb[0].mxu0
        %3330 = vmatprep.mubr.f32.mxu0 %v3193
        %3331 = vmatmul.mubr.f32.gmra.mrb[0].mxu0 %v3152
        %v3332 = vpop.f32.mrb[0].mxu0
        %v3333 = vadd.f32 %v3185, %v3332
        %v3334 = vpop.f32.mrb[0].mxu0
        %3335 = vmatprep.mubr.f32.mxu0 %v3195
        %3336 = vmatmul.mubr.f32.gmra.mrb[0].mxu0 %v3153
        %v3337 = vpop.f32.mrb[0].mxu0
        %v3338 = vadd.f32 %v3185, %v3337
        %v3339 = vpop.f32.mrb[0].mxu0
        %3340 = vmatprep.mubr.f32.mxu0 %v3197
        %3341 = vmatmul.mubr.f32.gmra.mrb[0].mxu0 %v3154
        %v3342 = vpop.f32.mrb[0].mxu0
        %v3343 = vadd.f32 %v3185, %v3342
        %v3344 = vpop.f32.mrb[0].mxu0
        %3345 = vmatprep.mubr.f32.mxu0 %v3199
        %3346 = vmatmul.mubr.f32.gmra.mrb[0].mxu0 %v3155
        %v3347 = vpop.f32.mrb[0].mxu0
        %v3348 = vadd.f32 %v3185, %v3347
        %v3349 = vpop.f32.mrb[0].mxu0
        %3350 = vmatprep.mubr.f32.mxu0 %v3201
        %3351 = vmatmul.mubr.f32.gmra.mrb[0].mxu0 %v3156
        %v3352 = vpop.f32.mrb[0].mxu0
        %v3353 = vadd.f32 %v3185, %v3352
        %v3354 = vpop.f32.mrb[0].mxu0
        %3355 = vmatprep.mubr.f32.mxu0 %v3203
        %3356 = vmatmul.mubr.f32.gmra.mrb[0].mxu0 %v3157
        %v3357 = vpop.f32.mrb[0].mxu0
        %v3358 = vadd.f32 %v3185, %v3357
        %v3359 = vpop.f32.mrb[0].mxu0
        %3360 = vmatprep.mubr.f32.mxu0 %v3205
        %3361 = vmatmul.mubr.f32.gmra.mrb[0].mxu0 %v3158
        %v3362 = vpop.f32.mrb[0].mxu0
        %v3363 = vadd.f32 %v3185, %v3362
        %v3364 = vpop.f32.mrb[0].mxu0
        %3365 = vmatprep.mubr.f32.mxu0 %v3207
        %3366 = vmatmul.mubr.f32.gmra.mrb[0].mxu0 %v3159
        %v3367 = vpop.f32.mrb[0].mxu0
        %v3368 = vadd.f32 %v3185, %v3367
        %v3369 = vpop.f32.mrb[0].mxu0
        %3370 = vmatprep.mubr.f32.mxu0 %v3209
        %3371 = vmatmul.mubr.f32.gmra.mrb[0].mxu0 %v3160
        %v3372 = vpop.f32.mrb[0].mxu0
        %v3373 = vadd.f32 %v3185, %v3372
        %v3374 = vpop.f32.mrb[0].mxu0
        %3375 = vmatprep.mubr.f32.mxu0 %v3211
        %3376 = vmatmul.mubr.f32.gmra.mrb[0].mxu0 %v3161
        %v3377 = vpop.f32.mrb[0].mxu0
        %v3378 = vadd.f32 %v3185, %v3377
        %v3379 = vpop.f32.mrb[0].mxu0
        %3380 = vmatprep.mubr.f32.mxu0 %v3213
        %3381 = vmatmul.mubr.f32.gmra.mrb[0].mxu0 %v3162
        %v3382 = vpop.f32.mrb[0].mxu0
        %v3383 = vadd.f32 %v3185, %v3382
        %v3384 = vpop.f32.mrb[0].mxu0
        %3385 = vmatprep.mubr.f32.mxu0 %v3215
        %3386 = vmatmul.mubr.f32.gmra.mrb[0].mxu0 %v3163
        %v3387 = vpop.f32.mrb[0].mxu0
        %v3388 = vadd.f32 %v3185, %v3387
        %v3389 = vpop.f32.mrb[0].mxu0
        %3390 = vmatprep.mubr.f32.mxu0 %v3217
        %3391 = vmatmul.mubr.f32.gmra.mrb[0].mxu0 %v3164
        %v3392 = vpop.f32.mrb[0].mxu0
        %v3393 = vadd.f32 %v3185, %v3392
        %v3394 = vpop.f32.mrb[0].mxu0
        %3395 = vmatprep.mubr.f32.mxu0 %v3219
        %3396 = vmatmul.mubr.f32.gmra.mrb[0].mxu0 %v3165
        %v3397 = vpop.f32.mrb[0].mxu0
        %v3398 = vadd.f32 %v3185, %v3397
        %v3399 = vpop.f32.mrb[0].mxu0
        %3400 = vmatprep.mubr.f32.mxu0 %v3221
        %3401 = vmatmul.mubr.f32.gmra.mrb[0].mxu0 %v3166
        %v3402 = vpop.f32.mrb[0].mxu0
        %v3403 = vadd.f32 %v3185, %v3402
        %v3404 = vpop.f32.mrb[0].mxu0
        %3405 = vmatprep.mubr.f32.mxu0 %v3223
        %3406 = vmatmul.mubr.f32.gmra.mrb[0].mxu0 %v3167
        %v3407 = vpop.f32.mrb[0].mxu0
        %v3408 = vadd.f32 %v3185, %v3407
        %v3409 = vpop.f32.mrb[0].mxu0
        %3410 = vmatprep.mubr.f32.mxu0 %v3225
        %3411 = vmatmul.mubr.f32.gmra.mrb[0].mxu0 %v3168
        %v3412 = vpop.f32.mrb[0].mxu0
        %v3413 = vadd.f32 %v3185, %v3412
        %v3414 = vpop.f32.mrb[0].mxu0
        %3415 = vmatprep.mubr.f32.mxu0 %v3227
        %3416 = vmatmul.mubr.f32.gmra.mrb[0].mxu0 %v3169
        %v3417 = vpop.f32.mrb[0].mxu0
        %v3418 = vadd.f32 %v3185, %v3417
        %v3419 = vpop.f32.mrb[0].mxu0
        %3420 = vmatprep.mubr.f32.mxu0 %v3229
        %3421 = vmatmul.mubr.f32.gmra.mrb[0].mxu0 %v3170
        %v3422 = vpop.f32.mrb[0].mxu0
        %v3423 = vadd.f32 %v3185, %v3422
        %v3424 = vpop.f32.mrb[0].mxu0
        %3425 = vmatprep.mubr.f32.mxu0 %v3231
        %3426 = vmatmul.mubr.f32.gmra.mrb[0].mxu0 %v3171
        %v3427 = vpop.f32.mrb[0].mxu0
        %v3428 = vadd.f32 %v3185, %v3427
        %v3429 = vpop.f32.mrb[0].mxu0
        %3430 = vmatprep.mubr.f32.mxu0 %v3233
        %3431 = vmatmul.mubr.f32.gmra.mrb[0].mxu0 %v3172
        %v3432 = vpop.f32.mrb[0].mxu0
        %v3433 = vadd.f32 %v3185, %v3432
        %v3434 = vpop.f32.mrb[0].mxu0
        %3435 = vmatprep.mubr.f32.mxu0 %v3235
        %3436 = vmatmul.mubr.f32.gmra.mrb[0].mxu0 %v3173
        %v3437 = vpop.f32.mrb[0].mxu0
        %v3438 = vadd.f32 %v3185, %v3437
        %v3439 = vpop.f32.mrb[0].mxu0
        %3440 = vmatprep.mubr.f32.mxu0 %v3237
        %3441 = vmatmul.mubr.f32.gmra.mrb[0].mxu0 %v3174
        %v3442 = vpop.f32.mrb[0].mxu0
        %v3443 = vadd.f32 %v3185, %v3442
        %v3444 = vpop.f32.mrb[0].mxu0
        %3445 = vmatprep.mubr.f32.mxu0 %v3239
        %3446 = vmatmul.mubr.f32.gmra.mrb[0].mxu0 %v3175
        %v3447 = vpop.f32.mrb[0].mxu0
        %v3448 = vadd.f32 %v3185, %v3447
        %v3449 = vpop.f32.mrb[0].mxu0
        %3450 = vmatprep.mubr.f32.mxu0 %v3241
        %3451 = vmatmul.mubr.f32.gmra.mrb[0].mxu0 %v3176
        %v3452 = vpop.f32.mrb[0].mxu0
        %v3453 = vadd.f32 %v3185, %v3452
        %v3454 = vpop.f32.mrb[0].mxu0
        %3455 = vmatprep.mubr.f32.mxu0 %v3243
        %3456 = vmatmul.mubr.f32.gmra.mrb[0].mxu0 %v3177
        %v3457 = vpop.f32.mrb[0].mxu0
        %v3458 = vadd.f32 %v3185, %v3457
        %v3459 = vpop.f32.mrb[0].mxu0
        %3460 = vmatprep.mubr.f32.mxu0 %v3245
        %3461 = vmatmul.mubr.f32.gmra.mrb[0].mxu0 %v3178
        %v3462 = vpop.f32.mrb[0].mxu0
        %v3463 = vadd.f32 %v3185, %v3462
        %v3464 = vpop.f32.mrb[0].mxu0
        %3465 = vmatprep.mubr.f32.mxu0 %v3247
        %3466 = vmatmul.mubr.f32.gmra.mrb[0].mxu0 %v3179
        %v3467 = vpop.f32.mrb[0].mxu0
        %v3468 = vadd.f32 %v3185, %v3467
        %v3469 = vpop.f32.mrb[0].mxu0
        %3470 = vmatprep.mubr.f32.mxu0 %v3249
        %3471 = vmatmul.mubr.f32.gmra.mrb[0].mxu0 %v3180
        %v3472 = vpop.f32.mrb[0].mxu0
        %v3473 = vadd.f32 %v3185, %v3472
        %v3474 = vpop.f32.mrb[0].mxu0
        %3475 = vdwg.mxu0
        %v3476 = vmax.f32 %v3318, 0.0
        %v3477 = vmax.f32 %v3323, 0.0
        %v3478 = vmax.f32 %v3328, 0.0
        %v3479 = vmax.f32 %v3333, 0.0
        %v3480 = vmax.f32 %v3338, 0.0
        %v3481 = vmax.f32 %v3343, 0.0
        %v3482 = vmax.f32 %v3348, 0.0
        %v3483 = vmax.f32 %v3353, 0.0
        %v3484 = vmax.f32 %v3358, 0.0
        %v3485 = vmax.f32 %v3363, 0.0
        %v3486 = vmax.f32 %v3368, 0.0
        %v3487 = vmax.f32 %v3373, 0.0
        %v3488 = vmax.f32 %v3378, 0.0
        %v3489 = vmax.f32 %v3383, 0.0
        %v3490 = vmax.f32 %v3388, 0.0
        %v3491 = vmax.f32 %v3393, 0.0
        %v3492 = vmax.f32 %v3398, 0.0
        %v3493 = vmax.f32 %v3403, 0.0
        %v3494 = vmax.f32 %v3408, 0.0
        %v3495 = vmax.f32 %v3413, 0.0
        %v3496 = vmax.f32 %v3418, 0.0
        %v3497 = vmax.f32 %v3423, 0.0
        %v3498 = vmax.f32 %v3428, 0.0
        %v3499 = vmax.f32 %v3433, 0.0
        %v3500 = vmax.f32 %v3438, 0.0
        %v3501 = vmax.f32 %v3443, 0.0
        %v3502 = vmax.f32 %v3448, 0.0
        %v3503 = vmax.f32 %v3453, 0.0
        %v3504 = vmax.f32 %v3458, 0.0
        %v3505 = vmax.f32 %v3463, 0.0
        %v3506 = vmax.f32 %v3468, 0.0
        %v3507 = vmax.f32 %v3473, 0.0
        %3508 = vst.msk [vmem:[%s407 + $0x1] sm:$0xff] %vm319, %v3476
        %3509 = vst.msk [vmem:[%s407 + $0x9] sm:$0xff] %vm319, %v3477
        %3510 = vst.msk [vmem:[%s407 + $0x19] sm:$0xff] %vm319, %v3478
        %3511 = vst.msk [vmem:[%s407 + $0x21] sm:$0xff] %vm319, %v3479
        %3512 = vst.msk [vmem:[%s407 + $0x31] sm:$0xff] %vm319, %v3480
        %3513 = vst.msk [vmem:[%s407 + $0x39] sm:$0xff] %vm319, %v3481
        %3514 = vst.msk [vmem:[%s407 + $0x49] sm:$0xff] %vm319, %v3482
        %3515 = vst.msk [vmem:[%s407 + $0x51] sm:$0xff] %vm319, %v3483
        %3516 = vst.msk [vmem:[%s407 + $0x61] sm:$0xff] %vm319, %v3484
        %3517 = vst.msk [vmem:[%s407 + $0x69] sm:$0xff] %vm319, %v3485
        %3518 = vst.msk [vmem:[%s407 + $0x79] sm:$0xff] %vm319, %v3486
        %3519 = vst.msk [vmem:[%s407 + $0x81] sm:$0xff] %vm319, %v3487
        %3520 = vst.msk [vmem:[%s407 + $0x91] sm:$0xff] %vm319, %v3488
        %3521 = vst.msk [vmem:[%s407 + $0x99] sm:$0xff] %vm319, %v3489
        %3522 = vst.msk [vmem:[%s407 + $0xa9] sm:$0xff] %vm319, %v3490
        %3523 = vst.msk [vmem:[%s407 + $0xb1] sm:$0xff] %vm319, %v3491
        %3524 = vst.msk [vmem:[%s407 + $0xc1] sm:$0xff] %vm319, %v3492
        %3525 = vst.msk [vmem:[%s407 + $0xc9] sm:$0xff] %vm319, %v3493
        %3526 = vst.msk [vmem:[%s407 + $0xd9] sm:$0xff] %vm319, %v3494
        %3527 = vst.msk [vmem:[%s407 + $0xe1] sm:$0xff] %vm319, %v3495
        %3528 = vst.msk [vmem:[%s407 + $0xf1] sm:$0xff] %vm319, %v3496
        %3529 = vst.msk [vmem:[%s407 + $0xf9] sm:$0xff] %vm319, %v3497
        %3530 = vst.msk [vmem:[%s407 + $0x109] sm:$0xff] %vm319, %v3498
        %3531 = vst.msk [vmem:[%s407 + $0x111] sm:$0xff] %vm319, %v3499
        %3532 = vst.msk [vmem:[%s407 + $0x121] sm:$0xff] %vm319, %v3500
        %3533 = vst.msk [vmem:[%s407 + $0x129] sm:$0xff] %vm319, %v3501
        %3534 = vst.msk [vmem:[%s407 + $0x139] sm:$0xff] %vm319, %v3502
        %3535 = vst.msk [vmem:[%s407 + $0x141] sm:$0xff] %vm319, %v3503
        %3536 = vst.msk [vmem:[%s407 + $0x151] sm:$0xff] %vm319, %v3504
        %3537 = vst.msk [vmem:[%s407 + $0x159] sm:$0xff] %vm319, %v3505
        %3538 = vst.msk [vmem:[%s407 + $0x169] sm:$0xff] %vm319, %v3506
        %3539 = vst.msk [vmem:[%s407 + $0x171] sm:$0xff] %vm319, %v3507
        %s3540 = scalar_lea.vmem %s3, 144
        %v3541 = vld [vmem:[%s3540] sm:$0xff]
        %v3542 = vld [vmem:[%s3540 + $0x8] sm:$0xff]
        %v3543 = vld [vmem:[%s3540 + $0x10] sm:$0xff]
        %v3544 = vld [vmem:[%s3540 + $0x18] sm:$0xff]
        %v3545 = vld [vmem:[%s3540 + $0x20] sm:$0xff]
        %v3546 = vld [vmem:[%s3540 + $0x28] sm:$0xff]
        %v3547 = vld [vmem:[%s3540 + $0x30] sm:$0xff]
        %v3548 = vld [vmem:[%s3540 + $0x38] sm:$0xff]
        %v3549 = vld [vmem:[%s3540 + $0x40] sm:$0xff]
        %v3550 = vld [vmem:[%s3540 + $0x48] sm:$0xff]
        %v3551 = vld [vmem:[%s3540 + $0x50] sm:$0xff]
        %v3552 = vld [vmem:[%s3540 + $0x58] sm:$0xff]
        %v3553 = vld [vmem:[%s3540 + $0x60] sm:$0xff]
        %v3554 = vld [vmem:[%s3540 + $0x68] sm:$0xff]
        %v3555 = vld [vmem:[%s3540 + $0x70] sm:$0xff]
        %v3556 = vld [vmem:[%s3540 + $0x78] sm:$0xff]
        %v3557 = vld [vmem:[%s3540 + $0x80] sm:$0xff]
        %v3558 = vld [vmem:[%s3540 + $0x88] sm:$0xff]
        %s3559 = scalar_lea.vmem %s4, 1
        %v3560 = vld [vmem:[%s3559] sm:$0x1]
        %v3561 = vld [vmem:[#allocation2] sm:$0xff]
        %v3562 = vld [vmem:[#allocation2 + $0x8] sm:$0xff]
        %v3563 = vld [vmem:[#allocation2 + $0x10] sm:$0x3]
        %v3564 = vld [vmem:[#allocation2 + $0x18] sm:$0xff]
        %v3565 = vld [vmem:[#allocation2 + $0x20] sm:$0xff]
        %v3566 = vld [vmem:[#allocation2 + $0x28] sm:$0x3]
        %v3567 = vld [vmem:[#allocation2 + $0x30] sm:$0xff]
        %v3568 = vld [vmem:[#allocation2 + $0x38] sm:$0xff]
        %v3569 = vld [vmem:[#allocation2 + $0x40] sm:$0x3]
        %v3570 = vld [vmem:[#allocation2 + $0x48] sm:$0xff]
        %v3571 = vld [vmem:[#allocation2 + $0x50] sm:$0xff]
        %v3572 = vld [vmem:[#allocation2 + $0x58] sm:$0x3]
        %v3573 = vld [vmem:[#allocation2 + $0x60] sm:$0xff]
        %v3574 = vld [vmem:[#allocation2 + $0x68] sm:$0xff]
        %v3575 = vld [vmem:[#allocation2 + $0x70] sm:$0x3]
        %v3576 = vld [vmem:[#allocation2 + $0x78] sm:$0xff]
        %v3577 = vld [vmem:[#allocation2 + $0x80] sm:$0xff]
        %v3578 = vld [vmem:[#allocation2 + $0x88] sm:$0x3]
        %v3579 = vld [vmem:[#allocation2 + $0x90] sm:$0xff]
        %v3580 = vld [vmem:[#allocation2 + $0x98] sm:$0xff]
        %v3581 = vld [vmem:[#allocation2 + $0xa0] sm:$0x3]
        %v3582 = vld [vmem:[#allocation2 + $0xa8] sm:$0xff]
        %v3583 = vld [vmem:[#allocation2 + $0xb0] sm:$0xff]
        %v3584 = vld [vmem:[#allocation2 + $0xb8] sm:$0x3]
        %v3585 = vld [vmem:[#allocation2 + $0xc0] sm:$0xff]
        %v3586 = vld [vmem:[#allocation2 + $0xc8] sm:$0xff]
        %v3587 = vld [vmem:[#allocation2 + $0xd0] sm:$0x3]
        %v3588 = vld [vmem:[#allocation2 + $0xd8] sm:$0xff]
        %v3589 = vld [vmem:[#allocation2 + $0xe0] sm:$0xff]
        %v3590 = vld [vmem:[#allocation2 + $0xe8] sm:$0x3]
        %v3591 = vld [vmem:[#allocation2 + $0xf0] sm:$0xff]
        %v3592 = vld [vmem:[#allocation2 + $0xf8] sm:$0xff]
        %v3593 = vld [vmem:[#allocation2 + $0x100] sm:$0x3]
        %v3594 = vld [vmem:[#allocation2 + $0x108] sm:$0xff]
        %v3595 = vld [vmem:[#allocation2 + $0x110] sm:$0xff]
        %v3596 = vld [vmem:[#allocation2 + $0x118] sm:$0x3]
        %v3597 = vld [vmem:[#allocation2 + $0x120] sm:$0xff]
        %v3598 = vld [vmem:[#allocation2 + $0x128] sm:$0xff]
        %v3599 = vld [vmem:[#allocation2 + $0x130] sm:$0x3]
        %v3600 = vld [vmem:[#allocation2 + $0x138] sm:$0xff]
        %v3601 = vld [vmem:[#allocation2 + $0x140] sm:$0xff]
        %v3602 = vld [vmem:[#allocation2 + $0x148] sm:$0x3]
        %v3603 = vld [vmem:[#allocation2 + $0x150] sm:$0xff]
        %v3604 = vld [vmem:[#allocation2 + $0x158] sm:$0xff]
        %v3605 = vld [vmem:[#allocation2 + $0x160] sm:$0x3]
        %v3606 = vld [vmem:[#allocation2 + $0x168] sm:$0xff]
        %v3607 = vld [vmem:[#allocation2 + $0x170] sm:$0xff]
        %v3608 = vld [vmem:[#allocation2 + $0x178] sm:$0x3]
        %v3609 = vld [vmem:[#allocation2 + $0x180] sm:$0xff]
        %v3610 = vld [vmem:[#allocation2 + $0x188] sm:$0xff]
        %v3611 = vld [vmem:[#allocation2 + $0x190] sm:$0x3]
        %v3612 = vld [vmem:[#allocation2 + $0x198] sm:$0xff]
        %v3613 = vld [vmem:[#allocation2 + $0x1a0] sm:$0xff]
        %v3614 = vld [vmem:[#allocation2 + $0x1a8] sm:$0x3]
        %v3663 = vrot.slane %v3561, 1
        %v3664 = vrot.slane %v3562, 1
        %v3665 = vsel %vm561, %v3663, %v3664
        %v3666 = vrot.slane %v3563, 1
        %v3667 = vsel %vm561, %v3664, %v3666
        %v3668 = vrot.slane %v3564, 1
        %v3669 = vrot.slane %v3565, 1
        %v3670 = vsel %vm561, %v3668, %v3669
        %v3671 = vrot.slane %v3566, 1
        %v3672 = vsel %vm561, %v3669, %v3671
        %v3673 = vrot.slane %v3567, 1
        %v3674 = vrot.slane %v3568, 1
        %v3675 = vsel %vm561, %v3673, %v3674
        %v3676 = vrot.slane %v3569, 1
        %v3677 = vsel %vm561, %v3674, %v3676
        %v3678 = vrot.slane %v3570, 1
        %v3679 = vrot.slane %v3571, 1
        %v3680 = vsel %vm561, %v3678, %v3679
        %v3681 = vrot.slane %v3572, 1
        %v3682 = vsel %vm561, %v3679, %v3681
        %v3683 = vrot.slane %v3573, 1
        %v3684 = vrot.slane %v3574, 1
        %v3685 = vsel %vm561, %v3683, %v3684
        %v3686 = vrot.slane %v3575, 1
        %v3687 = vsel %vm561, %v3684, %v3686
        %v3688 = vrot.slane %v3576, 1
        %v3689 = vrot.slane %v3577, 1
        %v3690 = vsel %vm561, %v3688, %v3689
        %v3691 = vrot.slane %v3578, 1
        %v3692 = vsel %vm561, %v3689, %v3691
        %v3693 = vrot.slane %v3579, 1
        %v3694 = vrot.slane %v3580, 1
        %v3695 = vsel %vm561, %v3693, %v3694
        %v3696 = vrot.slane %v3581, 1
        %v3697 = vsel %vm561, %v3694, %v3696
        %v3698 = vrot.slane %v3582, 1
        %v3699 = vrot.slane %v3583, 1
        %v3700 = vsel %vm561, %v3698, %v3699
        %v3701 = vrot.slane %v3584, 1
        %v3702 = vsel %vm561, %v3699, %v3701
        %v3703 = vrot.slane %v3585, 1
        %v3704 = vrot.slane %v3586, 1
        %v3705 = vsel %vm561, %v3703, %v3704
        %v3706 = vrot.slane %v3587, 1
        %v3707 = vsel %vm561, %v3704, %v3706
        %v3708 = vrot.slane %v3588, 1
        %v3709 = vrot.slane %v3589, 1
        %v3710 = vsel %vm561, %v3708, %v3709
        %v3711 = vrot.slane %v3590, 1
        %v3712 = vsel %vm561, %v3709, %v3711
        %v3713 = vrot.slane %v3591, 1
        %v3714 = vrot.slane %v3592, 1
        %v3715 = vsel %vm561, %v3713, %v3714
        %v3716 = vrot.slane %v3593, 1
        %v3717 = vsel %vm561, %v3714, %v3716
        %v3718 = vrot.slane %v3594, 1
        %v3719 = vrot.slane %v3595, 1
        %v3720 = vsel %vm561, %v3718, %v3719
        %v3721 = vrot.slane %v3596, 1
        %v3722 = vsel %vm561, %v3719, %v3721
        %v3723 = vrot.slane %v3597, 1
        %v3724 = vrot.slane %v3598, 1
        %v3725 = vsel %vm561, %v3723, %v3724
        %v3726 = vrot.slane %v3599, 1
        %v3727 = vsel %vm561, %v3724, %v3726
        %v3728 = vrot.slane %v3600, 1
        %v3729 = vrot.slane %v3601, 1
        %v3730 = vsel %vm561, %v3728, %v3729
        %v3731 = vrot.slane %v3602, 1
        %v3732 = vsel %vm561, %v3729, %v3731
        %v3733 = vrot.slane %v3603, 1
        %v3734 = vrot.slane %v3604, 1
        %v3735 = vsel %vm561, %v3733, %v3734
        %v3736 = vrot.slane %v3605, 1
        %v3737 = vsel %vm561, %v3734, %v3736
        %v3738 = vrot.slane %v3606, 1
        %v3739 = vrot.slane %v3607, 1
        %v3740 = vsel %vm561, %v3738, %v3739
        %v3741 = vrot.slane %v3608, 1
        %v3742 = vsel %vm561, %v3739, %v3741
        %v3743 = vrot.slane %v3561, 2
        %v3744 = vrot.slane %v3562, 2
        %v3745 = vsel %vm642, %v3743, %v3744
        %v3746 = vrot.slane %v3563, 2
        %v3747 = vsel %vm642, %v3744, %v3746
        %v3748 = vrot.slane %v3564, 2
        %v3749 = vrot.slane %v3565, 2
        %v3750 = vsel %vm642, %v3748, %v3749
        %v3751 = vrot.slane %v3566, 2
        %v3752 = vsel %vm642, %v3749, %v3751
        %v3753 = vrot.slane %v3567, 2
        %v3754 = vrot.slane %v3568, 2
        %v3755 = vsel %vm642, %v3753, %v3754
        %v3756 = vrot.slane %v3569, 2
        %v3757 = vsel %vm642, %v3754, %v3756
        %v3758 = vrot.slane %v3570, 2
        %v3759 = vrot.slane %v3571, 2
        %v3760 = vsel %vm642, %v3758, %v3759
        %v3761 = vrot.slane %v3572, 2
        %v3762 = vsel %vm642, %v3759, %v3761
        %v3763 = vrot.slane %v3573, 2
        %v3764 = vrot.slane %v3574, 2
        %v3765 = vsel %vm642, %v3763, %v3764
        %v3766 = vrot.slane %v3575, 2
        %v3767 = vsel %vm642, %v3764, %v3766
        %v3768 = vrot.slane %v3576, 2
        %v3769 = vrot.slane %v3577, 2
        %v3770 = vsel %vm642, %v3768, %v3769
        %v3771 = vrot.slane %v3578, 2
        %v3772 = vsel %vm642, %v3769, %v3771
        %v3773 = vrot.slane %v3579, 2
        %v3774 = vrot.slane %v3580, 2
        %v3775 = vsel %vm642, %v3773, %v3774
        %v3776 = vrot.slane %v3581, 2
        %v3777 = vsel %vm642, %v3774, %v3776
        %v3778 = vrot.slane %v3582, 2
        %v3779 = vrot.slane %v3583, 2
        %v3780 = vsel %vm642, %v3778, %v3779
        %v3781 = vrot.slane %v3584, 2
        %v3782 = vsel %vm642, %v3779, %v3781
        %v3783 = vrot.slane %v3585, 2
        %v3784 = vrot.slane %v3586, 2
        %v3785 = vsel %vm642, %v3783, %v3784
        %v3786 = vrot.slane %v3587, 2
        %v3787 = vsel %vm642, %v3784, %v3786
        %v3788 = vrot.slane %v3588, 2
        %v3789 = vrot.slane %v3589, 2
        %v3790 = vsel %vm642, %v3788, %v3789
        %v3791 = vrot.slane %v3590, 2
        %v3792 = vsel %vm642, %v3789, %v3791
        %v3793 = vrot.slane %v3591, 2
        %v3794 = vrot.slane %v3592, 2
        %v3795 = vsel %vm642, %v3793, %v3794
        %v3796 = vrot.slane %v3593, 2
        %v3797 = vsel %vm642, %v3794, %v3796
        %v3798 = vrot.slane %v3594, 2
        %v3799 = vrot.slane %v3595, 2
        %v3800 = vsel %vm642, %v3798, %v3799
        %v3801 = vrot.slane %v3596, 2
        %v3802 = vsel %vm642, %v3799, %v3801
        %v3803 = vrot.slane %v3597, 2
        %v3804 = vrot.slane %v3598, 2
        %v3805 = vsel %vm642, %v3803, %v3804
        %v3806 = vrot.slane %v3599, 2
        %v3807 = vsel %vm642, %v3804, %v3806
        %v3808 = vrot.slane %v3600, 2
        %v3809 = vrot.slane %v3601, 2
        %v3810 = vsel %vm642, %v3808, %v3809
        %v3811 = vrot.slane %v3602, 2
        %v3812 = vsel %vm642, %v3809, %v3811
        %v3813 = vrot.slane %v3603, 2
        %v3814 = vrot.slane %v3604, 2
        %v3815 = vsel %vm642, %v3813, %v3814
        %v3816 = vrot.slane %v3605, 2
        %v3817 = vsel %vm642, %v3814, %v3816
        %v3818 = vrot.slane %v3606, 2
        %v3819 = vrot.slane %v3607, 2
        %v3820 = vsel %vm642, %v3818, %v3819
        %v3821 = vrot.slane %v3608, 2
        %v3822 = vsel %vm642, %v3819, %v3821
        %v3826 = vrot.slane %v3609, 1
        %v3827 = vrot.slane %v3610, 1
        %v3828 = vsel %vm561, %v3826, %v3827
        %v3829 = vrot.slane %v3611, 1
        %v3830 = vsel %vm561, %v3827, %v3829
        %v3831 = vrot.slane %v3609, 2
        %v3832 = vrot.slane %v3610, 2
        %v3833 = vsel %vm642, %v3831, %v3832
        %v3834 = vrot.slane %v3611, 2
        %v3835 = vsel %vm642, %v3832, %v3834
        %v3839 = vrot.slane %v3612, 1
        %v3840 = vrot.slane %v3613, 1
        %v3841 = vsel %vm561, %v3839, %v3840
        %v3842 = vrot.slane %v3614, 1
        %v3843 = vsel %vm561, %v3840, %v3842
        %v3844 = vrot.slane %v3612, 2
        %v3845 = vrot.slane %v3613, 2
        %v3846 = vsel %vm642, %v3844, %v3845
        %v3847 = vrot.slane %v3614, 2
        %v3848 = vsel %vm642, %v3845, %v3847
        %3849 = vrot.lane.b32.xlu0 %v3665, 16
        %v3850 = vpop.permute.xlu0 %3849
        %3851 = vrot.lane.b32.xlu0 %v3667, 16
        %v3852 = vpop.permute.xlu0 %3851
        %3853 = vrot.lane.b32.xlu0 %v3670, 16
        %v3854 = vpop.permute.xlu0 %3853
        %3855 = vrot.lane.b32.xlu0 %v3672, 16
        %v3856 = vpop.permute.xlu0 %3855
        %3857 = vrot.lane.b32.xlu0 %v3675, 16
        %v3858 = vpop.permute.xlu0 %3857
        %3859 = vrot.lane.b32.xlu0 %v3677, 16
        %v3860 = vpop.permute.xlu0 %3859
        %3861 = vrot.lane.b32.xlu0 %v3680, 16
        %v3862 = vpop.permute.xlu0 %3861
        %3863 = vrot.lane.b32.xlu0 %v3682, 16
        %v3864 = vpop.permute.xlu0 %3863
        %3865 = vrot.lane.b32.xlu0 %v3685, 16
        %v3866 = vpop.permute.xlu0 %3865
        %3867 = vrot.lane.b32.xlu0 %v3687, 16
        %v3868 = vpop.permute.xlu0 %3867
        %3869 = vrot.lane.b32.xlu0 %v3690, 16
        %v3870 = vpop.permute.xlu0 %3869
        %3871 = vrot.lane.b32.xlu0 %v3692, 16
        %v3872 = vpop.permute.xlu0 %3871
        %3873 = vrot.lane.b32.xlu0 %v3695, 16
        %v3874 = vpop.permute.xlu0 %3873
        %3875 = vrot.lane.b32.xlu0 %v3697, 16
        %v3876 = vpop.permute.xlu0 %3875
        %3877 = vrot.lane.b32.xlu0 %v3700, 16
        %v3878 = vpop.permute.xlu0 %3877
        %3879 = vrot.lane.b32.xlu0 %v3702, 16
        %v3880 = vpop.permute.xlu0 %3879
        %3881 = vrot.lane.b32.xlu0 %v3705, 16
        %v3882 = vpop.permute.xlu0 %3881
        %3883 = vrot.lane.b32.xlu0 %v3707, 16
        %v3884 = vpop.permute.xlu0 %3883
        %3885 = vrot.lane.b32.xlu0 %v3710, 16
        %v3886 = vpop.permute.xlu0 %3885
        %3887 = vrot.lane.b32.xlu0 %v3712, 16
        %v3888 = vpop.permute.xlu0 %3887
        %3889 = vrot.lane.b32.xlu0 %v3715, 16
        %v3890 = vpop.permute.xlu0 %3889
        %3891 = vrot.lane.b32.xlu0 %v3717, 16
        %v3892 = vpop.permute.xlu0 %3891
        %3893 = vrot.lane.b32.xlu0 %v3720, 16
        %v3894 = vpop.permute.xlu0 %3893
        %3895 = vrot.lane.b32.xlu0 %v3722, 16
        %v3896 = vpop.permute.xlu0 %3895
        %3897 = vrot.lane.b32.xlu0 %v3725, 16
        %v3898 = vpop.permute.xlu0 %3897
        %3899 = vrot.lane.b32.xlu0 %v3727, 16
        %v3900 = vpop.permute.xlu0 %3899
        %3901 = vrot.lane.b32.xlu0 %v3730, 16
        %v3902 = vpop.permute.xlu0 %3901
        %3903 = vrot.lane.b32.xlu0 %v3732, 16
        %v3904 = vpop.permute.xlu0 %3903
        %3905 = vrot.lane.b32.xlu0 %v3735, 16
        %v3906 = vpop.permute.xlu0 %3905
        %3907 = vrot.lane.b32.xlu0 %v3737, 16
        %v3908 = vpop.permute.xlu0 %3907
        %3909 = vrot.lane.b32.xlu0 %v3740, 16
        %v3910 = vpop.permute.xlu0 %3909
        %3911 = vrot.lane.b32.xlu0 %v3742, 16
        %v3912 = vpop.permute.xlu0 %3911
        %3945 = vrot.lane.b32.xlu0 %v3745, 32
        %v3946 = vpop.permute.xlu0 %3945
        %3947 = vrot.lane.b32.xlu0 %v3747, 32
        %v3948 = vpop.permute.xlu0 %3947
        %3949 = vrot.lane.b32.xlu0 %v3750, 32
        %v3950 = vpop.permute.xlu0 %3949
        %3951 = vrot.lane.b32.xlu0 %v3752, 32
        %v3952 = vpop.permute.xlu0 %3951
        %3953 = vrot.lane.b32.xlu0 %v3755, 32
        %v3954 = vpop.permute.xlu0 %3953
        %3955 = vrot.lane.b32.xlu0 %v3757, 32
        %v3956 = vpop.permute.xlu0 %3955
        %3957 = vrot.lane.b32.xlu0 %v3760, 32
        %v3958 = vpop.permute.xlu0 %3957
        %3959 = vrot.lane.b32.xlu0 %v3762, 32
        %v3960 = vpop.permute.xlu0 %3959
        %3961 = vrot.lane.b32.xlu0 %v3765, 32
        %v3962 = vpop.permute.xlu0 %3961
        %3963 = vrot.lane.b32.xlu0 %v3767, 32
        %v3964 = vpop.permute.xlu0 %3963
        %3965 = vrot.lane.b32.xlu0 %v3770, 32
        %v3966 = vpop.permute.xlu0 %3965
        %3967 = vrot.lane.b32.xlu0 %v3772, 32
        %v3968 = vpop.permute.xlu0 %3967
        %3969 = vrot.lane.b32.xlu0 %v3775, 32
        %v3970 = vpop.permute.xlu0 %3969
        %3971 = vrot.lane.b32.xlu0 %v3777, 32
        %v3972 = vpop.permute.xlu0 %3971
        %3973 = vrot.lane.b32.xlu0 %v3780, 32
        %v3974 = vpop.permute.xlu0 %3973
        %3975 = vrot.lane.b32.xlu0 %v3782, 32
        %v3976 = vpop.permute.xlu0 %3975
        %3977 = vrot.lane.b32.xlu0 %v3785, 32
        %v3978 = vpop.permute.xlu0 %3977
        %3979 = vrot.lane.b32.xlu0 %v3787, 32
        %v3980 = vpop.permute.xlu0 %3979
        %3981 = vrot.lane.b32.xlu0 %v3790, 32
        %v3982 = vpop.permute.xlu0 %3981
        %3983 = vrot.lane.b32.xlu0 %v3792, 32
        %v3984 = vpop.permute.xlu0 %3983
        %3985 = vrot.lane.b32.xlu0 %v3795, 32
        %v3986 = vpop.permute.xlu0 %3985
        %3987 = vrot.lane.b32.xlu0 %v3797, 32
        %v3988 = vpop.permute.xlu0 %3987
        %3989 = vrot.lane.b32.xlu0 %v3800, 32
        %v3990 = vpop.permute.xlu0 %3989
        %3991 = vrot.lane.b32.xlu0 %v3802, 32
        %v3992 = vpop.permute.xlu0 %3991
        %3993 = vrot.lane.b32.xlu0 %v3805, 32
        %v3994 = vpop.permute.xlu0 %3993
        %3995 = vrot.lane.b32.xlu0 %v3807, 32
        %v3996 = vpop.permute.xlu0 %3995
        %3997 = vrot.lane.b32.xlu0 %v3810, 32
        %v3998 = vpop.permute.xlu0 %3997
        %3999 = vrot.lane.b32.xlu0 %v3812, 32
        %v4000 = vpop.permute.xlu0 %3999
        %4001 = vrot.lane.b32.xlu0 %v3815, 32
        %v4002 = vpop.permute.xlu0 %4001
        %4003 = vrot.lane.b32.xlu0 %v3817, 32
        %v4004 = vpop.permute.xlu0 %4003
        %4005 = vrot.lane.b32.xlu0 %v3820, 32
        %v4006 = vpop.permute.xlu0 %4005
        %4007 = vrot.lane.b32.xlu0 %v3822, 32
        %v4008 = vpop.permute.xlu0 %4007
        %4041 = vrot.lane.b32.xlu0 %v3564, 48
        %v4042 = vpop.permute.xlu0 %4041
        %4043 = vrot.lane.b32.xlu0 %v3565, 48
        %v4044 = vpop.permute.xlu0 %4043
        %4045 = vrot.lane.b32.xlu0 %v3567, 48
        %v4046 = vpop.permute.xlu0 %4045
        %4047 = vrot.lane.b32.xlu0 %v3568, 48
        %v4048 = vpop.permute.xlu0 %4047
        %4049 = vrot.lane.b32.xlu0 %v3570, 48
        %v4050 = vpop.permute.xlu0 %4049
        %4051 = vrot.lane.b32.xlu0 %v3571, 48
        %v4052 = vpop.permute.xlu0 %4051
        %4053 = vrot.lane.b32.xlu0 %v3573, 48
        %v4054 = vpop.permute.xlu0 %4053
        %4055 = vrot.lane.b32.xlu0 %v3574, 48
        %v4056 = vpop.permute.xlu0 %4055
        %4057 = vrot.lane.b32.xlu0 %v3576, 48
        %v4058 = vpop.permute.xlu0 %4057
        %4059 = vrot.lane.b32.xlu0 %v3577, 48
        %v4060 = vpop.permute.xlu0 %4059
        %4061 = vrot.lane.b32.xlu0 %v3579, 48
        %v4062 = vpop.permute.xlu0 %4061
        %4063 = vrot.lane.b32.xlu0 %v3580, 48
        %v4064 = vpop.permute.xlu0 %4063
        %4065 = vrot.lane.b32.xlu0 %v3582, 48
        %v4066 = vpop.permute.xlu0 %4065
        %4067 = vrot.lane.b32.xlu0 %v3583, 48
        %v4068 = vpop.permute.xlu0 %4067
        %4069 = vrot.lane.b32.xlu0 %v3585, 48
        %v4070 = vpop.permute.xlu0 %4069
        %4071 = vrot.lane.b32.xlu0 %v3586, 48
        %v4072 = vpop.permute.xlu0 %4071
        %4073 = vrot.lane.b32.xlu0 %v3588, 48
        %v4074 = vpop.permute.xlu0 %4073
        %4075 = vrot.lane.b32.xlu0 %v3589, 48
        %v4076 = vpop.permute.xlu0 %4075
        %4077 = vrot.lane.b32.xlu0 %v3591, 48
        %v4078 = vpop.permute.xlu0 %4077
        %4079 = vrot.lane.b32.xlu0 %v3592, 48
        %v4080 = vpop.permute.xlu0 %4079
        %4081 = vrot.lane.b32.xlu0 %v3594, 48
        %v4082 = vpop.permute.xlu0 %4081
        %4083 = vrot.lane.b32.xlu0 %v3595, 48
        %v4084 = vpop.permute.xlu0 %4083
        %4085 = vrot.lane.b32.xlu0 %v3597, 48
        %v4086 = vpop.permute.xlu0 %4085
        %4087 = vrot.lane.b32.xlu0 %v3598, 48
        %v4088 = vpop.permute.xlu0 %4087
        %4089 = vrot.lane.b32.xlu0 %v3600, 48
        %v4090 = vpop.permute.xlu0 %4089
        %4091 = vrot.lane.b32.xlu0 %v3601, 48
        %v4092 = vpop.permute.xlu0 %4091
        %4093 = vrot.lane.b32.xlu0 %v3603, 48
        %v4094 = vpop.permute.xlu0 %4093
        %4095 = vrot.lane.b32.xlu0 %v3604, 48
        %v4096 = vpop.permute.xlu0 %4095
        %4097 = vrot.lane.b32.xlu0 %v3606, 48
        %v4098 = vpop.permute.xlu0 %4097
        %4099 = vrot.lane.b32.xlu0 %v3607, 48
        %v4100 = vpop.permute.xlu0 %4099
        %4101 = vrot.lane.b32.xlu0 %v3609, 48
        %v4102 = vpop.permute.xlu0 %4101
        %4103 = vrot.lane.b32.xlu0 %v3610, 48
        %v4104 = vpop.permute.xlu0 %4103
        %4137 = vrot.lane.b32.xlu0 %v3670, 64
        %v4138 = vpop.permute.xlu0 %4137
        %4139 = vrot.lane.b32.xlu0 %v3672, 64
        %v4140 = vpop.permute.xlu0 %4139
        %4141 = vrot.lane.b32.xlu0 %v3675, 64
        %v4142 = vpop.permute.xlu0 %4141
        %4143 = vrot.lane.b32.xlu0 %v3677, 64
        %v4144 = vpop.permute.xlu0 %4143
        %4145 = vrot.lane.b32.xlu0 %v3680, 64
        %v4146 = vpop.permute.xlu0 %4145
        %4147 = vrot.lane.b32.xlu0 %v3682, 64
        %v4148 = vpop.permute.xlu0 %4147
        %4149 = vrot.lane.b32.xlu0 %v3685, 64
        %v4150 = vpop.permute.xlu0 %4149
        %4151 = vrot.lane.b32.xlu0 %v3687, 64
        %v4152 = vpop.permute.xlu0 %4151
        %4153 = vrot.lane.b32.xlu0 %v3690, 64
        %v4154 = vpop.permute.xlu0 %4153
        %4155 = vrot.lane.b32.xlu0 %v3692, 64
        %v4156 = vpop.permute.xlu0 %4155
        %4157 = vrot.lane.b32.xlu0 %v3695, 64
        %v4158 = vpop.permute.xlu0 %4157
        %4159 = vrot.lane.b32.xlu0 %v3697, 64
        %v4160 = vpop.permute.xlu0 %4159
        %4161 = vrot.lane.b32.xlu0 %v3700, 64
        %v4162 = vpop.permute.xlu0 %4161
        %4163 = vrot.lane.b32.xlu0 %v3702, 64
        %v4164 = vpop.permute.xlu0 %4163
        %4165 = vrot.lane.b32.xlu0 %v3705, 64
        %v4166 = vpop.permute.xlu0 %4165
        %4167 = vrot.lane.b32.xlu0 %v3707, 64
        %v4168 = vpop.permute.xlu0 %4167
        %4169 = vrot.lane.b32.xlu0 %v3710, 64
        %v4170 = vpop.permute.xlu0 %4169
        %4171 = vrot.lane.b32.xlu0 %v3712, 64
        %v4172 = vpop.permute.xlu0 %4171
        %4173 = vrot.lane.b32.xlu0 %v3715, 64
        %v4174 = vpop.permute.xlu0 %4173
        %4175 = vrot.lane.b32.xlu0 %v3717, 64
        %v4176 = vpop.permute.xlu0 %4175
        %4177 = vrot.lane.b32.xlu0 %v3720, 64
        %v4178 = vpop.permute.xlu0 %4177
        %4179 = vrot.lane.b32.xlu0 %v3722, 64
        %v4180 = vpop.permute.xlu0 %4179
        %4181 = vrot.lane.b32.xlu0 %v3725, 64
        %v4182 = vpop.permute.xlu0 %4181
        %4183 = vrot.lane.b32.xlu0 %v3727, 64
        %v4184 = vpop.permute.xlu0 %4183
        %4185 = vrot.lane.b32.xlu0 %v3730, 64
        %v4186 = vpop.permute.xlu0 %4185
        %4187 = vrot.lane.b32.xlu0 %v3732, 64
        %v4188 = vpop.permute.xlu0 %4187
        %4189 = vrot.lane.b32.xlu0 %v3735, 64
        %v4190 = vpop.permute.xlu0 %4189
        %4191 = vrot.lane.b32.xlu0 %v3737, 64
        %v4192 = vpop.permute.xlu0 %4191
        %4193 = vrot.lane.b32.xlu0 %v3740, 64
        %v4194 = vpop.permute.xlu0 %4193
        %4195 = vrot.lane.b32.xlu0 %v3742, 64
        %v4196 = vpop.permute.xlu0 %4195
        %4197 = vrot.lane.b32.xlu0 %v3828, 64
        %v4198 = vpop.permute.xlu0 %4197
        %4199 = vrot.lane.b32.xlu0 %v3830, 64
        %v4200 = vpop.permute.xlu0 %4199
        %4233 = vrot.lane.b32.xlu0 %v3750, 80
        %v4234 = vpop.permute.xlu0 %4233
        %4235 = vrot.lane.b32.xlu0 %v3752, 80
        %v4236 = vpop.permute.xlu0 %4235
        %4237 = vrot.lane.b32.xlu0 %v3755, 80
        %v4238 = vpop.permute.xlu0 %4237
        %4239 = vrot.lane.b32.xlu0 %v3757, 80
        %v4240 = vpop.permute.xlu0 %4239
        %4241 = vrot.lane.b32.xlu0 %v3760, 80
        %v4242 = vpop.permute.xlu0 %4241
        %4243 = vrot.lane.b32.xlu0 %v3762, 80
        %v4244 = vpop.permute.xlu0 %4243
        %4245 = vrot.lane.b32.xlu0 %v3765, 80
        %v4246 = vpop.permute.xlu0 %4245
        %4247 = vrot.lane.b32.xlu0 %v3767, 80
        %v4248 = vpop.permute.xlu0 %4247
        %4249 = vrot.lane.b32.xlu0 %v3770, 80
        %v4250 = vpop.permute.xlu0 %4249
        %4251 = vrot.lane.b32.xlu0 %v3772, 80
        %v4252 = vpop.permute.xlu0 %4251
        %4253 = vrot.lane.b32.xlu0 %v3775, 80
        %v4254 = vpop.permute.xlu0 %4253
        %4255 = vrot.lane.b32.xlu0 %v3777, 80
        %v4256 = vpop.permute.xlu0 %4255
        %4257 = vrot.lane.b32.xlu0 %v3780, 80
        %v4258 = vpop.permute.xlu0 %4257
        %4259 = vrot.lane.b32.xlu0 %v3782, 80
        %v4260 = vpop.permute.xlu0 %4259
        %4261 = vrot.lane.b32.xlu0 %v3785, 80
        %v4262 = vpop.permute.xlu0 %4261
        %4263 = vrot.lane.b32.xlu0 %v3787, 80
        %v4264 = vpop.permute.xlu0 %4263
        %4265 = vrot.lane.b32.xlu0 %v3790, 80
        %v4266 = vpop.permute.xlu0 %4265
        %4267 = vrot.lane.b32.xlu0 %v3792, 80
        %v4268 = vpop.permute.xlu0 %4267
        %4269 = vrot.lane.b32.xlu0 %v3795, 80
        %v4270 = vpop.permute.xlu0 %4269
        %4271 = vrot.lane.b32.xlu0 %v3797, 80
        %v4272 = vpop.permute.xlu0 %4271
        %4273 = vrot.lane.b32.xlu0 %v3800, 80
        %v4274 = vpop.permute.xlu0 %4273
        %4275 = vrot.lane.b32.xlu0 %v3802, 80
        %v4276 = vpop.permute.xlu0 %4275
        %4277 = vrot.lane.b32.xlu0 %v3805, 80
        %v4278 = vpop.permute.xlu0 %4277
        %4279 = vrot.lane.b32.xlu0 %v3807, 80
        %v4280 = vpop.permute.xlu0 %4279
        %4281 = vrot.lane.b32.xlu0 %v3810, 80
        %v4282 = vpop.permute.xlu0 %4281
        %4283 = vrot.lane.b32.xlu0 %v3812, 80
        %v4284 = vpop.permute.xlu0 %4283
        %4285 = vrot.lane.b32.xlu0 %v3815, 80
        %v4286 = vpop.permute.xlu0 %4285
        %4287 = vrot.lane.b32.xlu0 %v3817, 80
        %v4288 = vpop.permute.xlu0 %4287
        %4289 = vrot.lane.b32.xlu0 %v3820, 80
        %v4290 = vpop.permute.xlu0 %4289
        %4291 = vrot.lane.b32.xlu0 %v3822, 80
        %v4292 = vpop.permute.xlu0 %4291
        %4293 = vrot.lane.b32.xlu0 %v3833, 80
        %v4294 = vpop.permute.xlu0 %4293
        %4295 = vrot.lane.b32.xlu0 %v3835, 80
        %v4296 = vpop.permute.xlu0 %4295
        %4329 = vrot.lane.b32.xlu0 %v3567, 96
        %v4330 = vpop.permute.xlu0 %4329
        %4331 = vrot.lane.b32.xlu0 %v3568, 96
        %v4332 = vpop.permute.xlu0 %4331
        %4333 = vrot.lane.b32.xlu0 %v3570, 96
        %v4334 = vpop.permute.xlu0 %4333
        %4335 = vrot.lane.b32.xlu0 %v3571, 96
        %v4336 = vpop.permute.xlu0 %4335
        %4337 = vrot.lane.b32.xlu0 %v3573, 96
        %v4338 = vpop.permute.xlu0 %4337
        %4339 = vrot.lane.b32.xlu0 %v3574, 96
        %v4340 = vpop.permute.xlu0 %4339
        %4341 = vrot.lane.b32.xlu0 %v3576, 96
        %v4342 = vpop.permute.xlu0 %4341
        %4343 = vrot.lane.b32.xlu0 %v3577, 96
        %v4344 = vpop.permute.xlu0 %4343
        %4345 = vrot.lane.b32.xlu0 %v3579, 96
        %v4346 = vpop.permute.xlu0 %4345
        %4347 = vrot.lane.b32.xlu0 %v3580, 96
        %v4348 = vpop.permute.xlu0 %4347
        %4349 = vrot.lane.b32.xlu0 %v3582, 96
        %v4350 = vpop.permute.xlu0 %4349
        %4351 = vrot.lane.b32.xlu0 %v3583, 96
        %v4352 = vpop.permute.xlu0 %4351
        %4353 = vrot.lane.b32.xlu0 %v3585, 96
        %v4354 = vpop.permute.xlu0 %4353
        %4355 = vrot.lane.b32.xlu0 %v3586, 96
        %v4356 = vpop.permute.xlu0 %4355
        %4357 = vrot.lane.b32.xlu0 %v3588, 96
        %v4358 = vpop.permute.xlu0 %4357
        %4359 = vrot.lane.b32.xlu0 %v3589, 96
        %v4360 = vpop.permute.xlu0 %4359
        %4361 = vrot.lane.b32.xlu0 %v3591, 96
        %v4362 = vpop.permute.xlu0 %4361
        %4363 = vrot.lane.b32.xlu0 %v3592, 96
        %v4364 = vpop.permute.xlu0 %4363
        %4365 = vrot.lane.b32.xlu0 %v3594, 96
        %v4366 = vpop.permute.xlu0 %4365
        %4367 = vrot.lane.b32.xlu0 %v3595, 96
        %v4368 = vpop.permute.xlu0 %4367
        %4369 = vrot.lane.b32.xlu0 %v3597, 96
        %v4370 = vpop.permute.xlu0 %4369
        %4371 = vrot.lane.b32.xlu0 %v3598, 96
        %v4372 = vpop.permute.xlu0 %4371
        %4373 = vrot.lane.b32.xlu0 %v3600, 96
        %v4374 = vpop.permute.xlu0 %4373
        %4375 = vrot.lane.b32.xlu0 %v3601, 96
        %v4376 = vpop.permute.xlu0 %4375
        %4377 = vrot.lane.b32.xlu0 %v3603, 96
        %v4378 = vpop.permute.xlu0 %4377
        %4379 = vrot.lane.b32.xlu0 %v3604, 96
        %v4380 = vpop.permute.xlu0 %4379
        %4381 = vrot.lane.b32.xlu0 %v3606, 96
        %v4382 = vpop.permute.xlu0 %4381
        %4383 = vrot.lane.b32.xlu0 %v3607, 96
        %v4384 = vpop.permute.xlu0 %4383
        %4385 = vrot.lane.b32.xlu0 %v3609, 96
        %v4386 = vpop.permute.xlu0 %4385
        %4387 = vrot.lane.b32.xlu0 %v3610, 96
        %v4388 = vpop.permute.xlu0 %4387
        %4389 = vrot.lane.b32.xlu0 %v3612, 96
        %v4390 = vpop.permute.xlu0 %4389
        %4391 = vrot.lane.b32.xlu0 %v3613, 96
        %v4392 = vpop.permute.xlu0 %4391
        %4425 = vrot.lane.b32.xlu0 %v3675, 112
        %v4426 = vpop.permute.xlu0 %4425
        %4427 = vrot.lane.b32.xlu0 %v3677, 112
        %v4428 = vpop.permute.xlu0 %4427
        %4429 = vrot.lane.b32.xlu0 %v3680, 112
        %v4430 = vpop.permute.xlu0 %4429
        %4431 = vrot.lane.b32.xlu0 %v3682, 112
        %v4432 = vpop.permute.xlu0 %4431
        %4433 = vrot.lane.b32.xlu0 %v3685, 112
        %v4434 = vpop.permute.xlu0 %4433
        %4435 = vrot.lane.b32.xlu0 %v3687, 112
        %v4436 = vpop.permute.xlu0 %4435
        %4437 = vrot.lane.b32.xlu0 %v3690, 112
        %v4438 = vpop.permute.xlu0 %4437
        %4439 = vrot.lane.b32.xlu0 %v3692, 112
        %v4440 = vpop.permute.xlu0 %4439
        %4441 = vrot.lane.b32.xlu0 %v3695, 112
        %v4442 = vpop.permute.xlu0 %4441
        %4443 = vrot.lane.b32.xlu0 %v3697, 112
        %v4444 = vpop.permute.xlu0 %4443
        %4445 = vrot.lane.b32.xlu0 %v3700, 112
        %v4446 = vpop.permute.xlu0 %4445
        %4447 = vrot.lane.b32.xlu0 %v3702, 112
        %v4448 = vpop.permute.xlu0 %4447
        %4449 = vrot.lane.b32.xlu0 %v3705, 112
        %v4450 = vpop.permute.xlu0 %4449
        %4451 = vrot.lane.b32.xlu0 %v3707, 112
        %v4452 = vpop.permute.xlu0 %4451
        %4453 = vrot.lane.b32.xlu0 %v3710, 112
        %v4454 = vpop.permute.xlu0 %4453
        %4455 = vrot.lane.b32.xlu0 %v3712, 112
        %v4456 = vpop.permute.xlu0 %4455
        %4457 = vrot.lane.b32.xlu0 %v3715, 112
        %v4458 = vpop.permute.xlu0 %4457
        %4459 = vrot.lane.b32.xlu0 %v3717, 112
        %v4460 = vpop.permute.xlu0 %4459
        %4461 = vrot.lane.b32.xlu0 %v3720, 112
        %v4462 = vpop.permute.xlu0 %4461
        %4463 = vrot.lane.b32.xlu0 %v3722, 112
        %v4464 = vpop.permute.xlu0 %4463
        %4465 = vrot.lane.b32.xlu0 %v3725, 112
        %v4466 = vpop.permute.xlu0 %4465
        %4467 = vrot.lane.b32.xlu0 %v3727, 112
        %v4468 = vpop.permute.xlu0 %4467
        %4469 = vrot.lane.b32.xlu0 %v3730, 112
        %v4470 = vpop.permute.xlu0 %4469
        %4471 = vrot.lane.b32.xlu0 %v3732, 112
        %v4472 = vpop.permute.xlu0 %4471
        %4473 = vrot.lane.b32.xlu0 %v3735, 112
        %v4474 = vpop.permute.xlu0 %4473
        %4475 = vrot.lane.b32.xlu0 %v3737, 112
        %v4476 = vpop.permute.xlu0 %4475
        %4477 = vrot.lane.b32.xlu0 %v3740, 112
        %v4478 = vpop.permute.xlu0 %4477
        %4479 = vrot.lane.b32.xlu0 %v3742, 112
        %v4480 = vpop.permute.xlu0 %4479
        %4481 = vrot.lane.b32.xlu0 %v3828, 112
        %v4482 = vpop.permute.xlu0 %4481
        %4483 = vrot.lane.b32.xlu0 %v3830, 112
        %v4484 = vpop.permute.xlu0 %4483
        %4485 = vrot.lane.b32.xlu0 %v3841, 112
        %v4486 = vpop.permute.xlu0 %4485
        %4487 = vrot.lane.b32.xlu0 %v3843, 112
        %v4488 = vpop.permute.xlu0 %4487
        %v4521 = vsel %vm319, %v3561, %v3850
        %v4522 = vsel %vm319, %v3562, %v3852
        %v4523 = vsel %vm319, %v3564, %v3854
        %v4524 = vsel %vm319, %v3565, %v3856
        %v4525 = vsel %vm319, %v3567, %v3858
        %v4526 = vsel %vm319, %v3568, %v3860
        %v4527 = vsel %vm319, %v3570, %v3862
        %v4528 = vsel %vm319, %v3571, %v3864
        %v4529 = vsel %vm319, %v3573, %v3866
        %v4530 = vsel %vm319, %v3574, %v3868
        %v4531 = vsel %vm319, %v3576, %v3870
        %v4532 = vsel %vm319, %v3577, %v3872
        %v4533 = vsel %vm319, %v3579, %v3874
        %v4534 = vsel %vm319, %v3580, %v3876
        %v4535 = vsel %vm319, %v3582, %v3878
        %v4536 = vsel %vm319, %v3583, %v3880
        %v4537 = vsel %vm319, %v3585, %v3882
        %v4538 = vsel %vm319, %v3586, %v3884
        %v4539 = vsel %vm319, %v3588, %v3886
        %v4540 = vsel %vm319, %v3589, %v3888
        %v4541 = vsel %vm319, %v3591, %v3890
        %v4542 = vsel %vm319, %v3592, %v3892
        %v4543 = vsel %vm319, %v3594, %v3894
        %v4544 = vsel %vm319, %v3595, %v3896
        %v4545 = vsel %vm319, %v3597, %v3898
        %v4546 = vsel %vm319, %v3598, %v3900
        %v4547 = vsel %vm319, %v3600, %v3902
        %v4548 = vsel %vm319, %v3601, %v3904
        %v4549 = vsel %vm319, %v3603, %v3906
        %v4550 = vsel %vm319, %v3604, %v3908
        %v4551 = vsel %vm319, %v3606, %v3910
        %v4552 = vsel %vm319, %v3607, %v3912
        %v4553 = vsel %vm1453, %v4521, %v3946
        %v4554 = vsel %vm1453, %v4522, %v3948
        %v4555 = vsel %vm1453, %v4523, %v3950
        %v4556 = vsel %vm1453, %v4524, %v3952
        %v4557 = vsel %vm1453, %v4525, %v3954
        %v4558 = vsel %vm1453, %v4526, %v3956
        %v4559 = vsel %vm1453, %v4527, %v3958
        %v4560 = vsel %vm1453, %v4528, %v3960
        %v4561 = vsel %vm1453, %v4529, %v3962
        %v4562 = vsel %vm1453, %v4530, %v3964
        %v4563 = vsel %vm1453, %v4531, %v3966
        %v4564 = vsel %vm1453, %v4532, %v3968
        %v4565 = vsel %vm1453, %v4533, %v3970
        %v4566 = vsel %vm1453, %v4534, %v3972
        %v4567 = vsel %vm1453, %v4535, %v3974
        %v4568 = vsel %vm1453, %v4536, %v3976
        %v4569 = vsel %vm1453, %v4537, %v3978
        %v4570 = vsel %vm1453, %v4538, %v3980
        %v4571 = vsel %vm1453, %v4539, %v3982
        %v4572 = vsel %vm1453, %v4540, %v3984
        %v4573 = vsel %vm1453, %v4541, %v3986
        %v4574 = vsel %vm1453, %v4542, %v3988
        %v4575 = vsel %vm1453, %v4543, %v3990
        %v4576 = vsel %vm1453, %v4544, %v3992
        %v4577 = vsel %vm1453, %v4545, %v3994
        %v4578 = vsel %vm1453, %v4546, %v3996
        %v4579 = vsel %vm1453, %v4547, %v3998
        %v4580 = vsel %vm1453, %v4548, %v4000
        %v4581 = vsel %vm1453, %v4549, %v4002
        %v4582 = vsel %vm1453, %v4550, %v4004
        %v4583 = vsel %vm1453, %v4551, %v4006
        %v4584 = vsel %vm1453, %v4552, %v4008
        %v4585 = vsel %vm1486, %v4553, %v4042
        %v4586 = vsel %vm1486, %v4554, %v4044
        %v4587 = vsel %vm1486, %v4555, %v4046
        %v4588 = vsel %vm1486, %v4556, %v4048
        %v4589 = vsel %vm1486, %v4557, %v4050
        %v4590 = vsel %vm1486, %v4558, %v4052
        %v4591 = vsel %vm1486, %v4559, %v4054
        %v4592 = vsel %vm1486, %v4560, %v4056
        %v4593 = vsel %vm1486, %v4561, %v4058
        %v4594 = vsel %vm1486, %v4562, %v4060
        %v4595 = vsel %vm1486, %v4563, %v4062
        %v4596 = vsel %vm1486, %v4564, %v4064
        %v4597 = vsel %vm1486, %v4565, %v4066
        %v4598 = vsel %vm1486, %v4566, %v4068
        %v4599 = vsel %vm1486, %v4567, %v4070
        %v4600 = vsel %vm1486, %v4568, %v4072
        %v4601 = vsel %vm1486, %v4569, %v4074
        %v4602 = vsel %vm1486, %v4570, %v4076
        %v4603 = vsel %vm1486, %v4571, %v4078
        %v4604 = vsel %vm1486, %v4572, %v4080
        %v4605 = vsel %vm1486, %v4573, %v4082
        %v4606 = vsel %vm1486, %v4574, %v4084
        %v4607 = vsel %vm1486, %v4575, %v4086
        %v4608 = vsel %vm1486, %v4576, %v4088
        %v4609 = vsel %vm1486, %v4577, %v4090
        %v4610 = vsel %vm1486, %v4578, %v4092
        %v4611 = vsel %vm1486, %v4579, %v4094
        %v4612 = vsel %vm1486, %v4580, %v4096
        %v4613 = vsel %vm1486, %v4581, %v4098
        %v4614 = vsel %vm1486, %v4582, %v4100
        %v4615 = vsel %vm1486, %v4583, %v4102
        %v4616 = vsel %vm1486, %v4584, %v4104
        %v4617 = vsel %vm1519, %v4585, %v4138
        %v4618 = vsel %vm1519, %v4586, %v4140
        %v4619 = vsel %vm1519, %v4587, %v4142
        %v4620 = vsel %vm1519, %v4588, %v4144
        %v4621 = vsel %vm1519, %v4589, %v4146
        %v4622 = vsel %vm1519, %v4590, %v4148
        %v4623 = vsel %vm1519, %v4591, %v4150
        %v4624 = vsel %vm1519, %v4592, %v4152
        %v4625 = vsel %vm1519, %v4593, %v4154
        %v4626 = vsel %vm1519, %v4594, %v4156
        %v4627 = vsel %vm1519, %v4595, %v4158
        %v4628 = vsel %vm1519, %v4596, %v4160
        %v4629 = vsel %vm1519, %v4597, %v4162
        %v4630 = vsel %vm1519, %v4598, %v4164
        %v4631 = vsel %vm1519, %v4599, %v4166
        %v4632 = vsel %vm1519, %v4600, %v4168
        %v4633 = vsel %vm1519, %v4601, %v4170
        %v4634 = vsel %vm1519, %v4602, %v4172
        %v4635 = vsel %vm1519, %v4603, %v4174
        %v4636 = vsel %vm1519, %v4604, %v4176
        %v4637 = vsel %vm1519, %v4605, %v4178
        %v4638 = vsel %vm1519, %v4606, %v4180
        %v4639 = vsel %vm1519, %v4607, %v4182
        %v4640 = vsel %vm1519, %v4608, %v4184
        %v4641 = vsel %vm1519, %v4609, %v4186
        %v4642 = vsel %vm1519, %v4610, %v4188
        %v4643 = vsel %vm1519, %v4611, %v4190
        %v4644 = vsel %vm1519, %v4612, %v4192
        %v4645 = vsel %vm1519, %v4613, %v4194
        %v4646 = vsel %vm1519, %v4614, %v4196
        %v4647 = vsel %vm1519, %v4615, %v4198
        %v4648 = vsel %vm1519, %v4616, %v4200
        %v4649 = vsel %vm1552, %v4617, %v4234
        %v4650 = vsel %vm1552, %v4618, %v4236
        %v4651 = vsel %vm1552, %v4619, %v4238
        %v4652 = vsel %vm1552, %v4620, %v4240
        %v4653 = vsel %vm1552, %v4621, %v4242
        %v4654 = vsel %vm1552, %v4622, %v4244
        %v4655 = vsel %vm1552, %v4623, %v4246
        %v4656 = vsel %vm1552, %v4624, %v4248
        %v4657 = vsel %vm1552, %v4625, %v4250
        %v4658 = vsel %vm1552, %v4626, %v4252
        %v4659 = vsel %vm1552, %v4627, %v4254
        %v4660 = vsel %vm1552, %v4628, %v4256
        %v4661 = vsel %vm1552, %v4629, %v4258
        %v4662 = vsel %vm1552, %v4630, %v4260
        %v4663 = vsel %vm1552, %v4631, %v4262
        %v4664 = vsel %vm1552, %v4632, %v4264
        %v4665 = vsel %vm1552, %v4633, %v4266
        %v4666 = vsel %vm1552, %v4634, %v4268
        %v4667 = vsel %vm1552, %v4635, %v4270
        %v4668 = vsel %vm1552, %v4636, %v4272
        %v4669 = vsel %vm1552, %v4637, %v4274
        %v4670 = vsel %vm1552, %v4638, %v4276
        %v4671 = vsel %vm1552, %v4639, %v4278
        %v4672 = vsel %vm1552, %v4640, %v4280
        %v4673 = vsel %vm1552, %v4641, %v4282
        %v4674 = vsel %vm1552, %v4642, %v4284
        %v4675 = vsel %vm1552, %v4643, %v4286
        %v4676 = vsel %vm1552, %v4644, %v4288
        %v4677 = vsel %vm1552, %v4645, %v4290
        %v4678 = vsel %vm1552, %v4646, %v4292
        %v4679 = vsel %vm1552, %v4647, %v4294
        %v4680 = vsel %vm1552, %v4648, %v4296
        %v4681 = vsel %vm1585, %v4649, %v4330
        %v4682 = vsel %vm1585, %v4650, %v4332
        %v4683 = vsel %vm1585, %v4651, %v4334
        %v4684 = vsel %vm1585, %v4652, %v4336
        %v4685 = vsel %vm1585, %v4653, %v4338
        %v4686 = vsel %vm1585, %v4654, %v4340
        %v4687 = vsel %vm1585, %v4655, %v4342
        %v4688 = vsel %vm1585, %v4656, %v4344
        %v4689 = vsel %vm1585, %v4657, %v4346
        %v4690 = vsel %vm1585, %v4658, %v4348
        %v4691 = vsel %vm1585, %v4659, %v4350
        %v4692 = vsel %vm1585, %v4660, %v4352
        %v4693 = vsel %vm1585, %v4661, %v4354
        %v4694 = vsel %vm1585, %v4662, %v4356
        %v4695 = vsel %vm1585, %v4663, %v4358
        %v4696 = vsel %vm1585, %v4664, %v4360
        %v4697 = vsel %vm1585, %v4665, %v4362
        %v4698 = vsel %vm1585, %v4666, %v4364
        %v4699 = vsel %vm1585, %v4667, %v4366
        %v4700 = vsel %vm1585, %v4668, %v4368
        %v4701 = vsel %vm1585, %v4669, %v4370
        %v4702 = vsel %vm1585, %v4670, %v4372
        %v4703 = vsel %vm1585, %v4671, %v4374
        %v4704 = vsel %vm1585, %v4672, %v4376
        %v4705 = vsel %vm1585, %v4673, %v4378
        %v4706 = vsel %vm1585, %v4674, %v4380
        %v4707 = vsel %vm1585, %v4675, %v4382
        %v4708 = vsel %vm1585, %v4676, %v4384
        %v4709 = vsel %vm1585, %v4677, %v4386
        %v4710 = vsel %vm1585, %v4678, %v4388
        %v4711 = vsel %vm1585, %v4679, %v4390
        %v4712 = vsel %vm1585, %v4680, %v4392
        %v4713 = vsel %vm1618, %v4681, %v4426
        %v4714 = vsel %vm1618, %v4682, %v4428
        %v4715 = vsel %vm1618, %v4683, %v4430
        %v4716 = vsel %vm1618, %v4684, %v4432
        %v4717 = vsel %vm1618, %v4685, %v4434
        %v4718 = vsel %vm1618, %v4686, %v4436
        %v4719 = vsel %vm1618, %v4687, %v4438
        %v4720 = vsel %vm1618, %v4688, %v4440
        %v4721 = vsel %vm1618, %v4689, %v4442
        %v4722 = vsel %vm1618, %v4690, %v4444
        %v4723 = vsel %vm1618, %v4691, %v4446
        %v4724 = vsel %vm1618, %v4692, %v4448
        %v4725 = vsel %vm1618, %v4693, %v4450
        %v4726 = vsel %vm1618, %v4694, %v4452
        %v4727 = vsel %vm1618, %v4695, %v4454
        %v4728 = vsel %vm1618, %v4696, %v4456
        %v4729 = vsel %vm1618, %v4697, %v4458
        %v4730 = vsel %vm1618, %v4698, %v4460
        %v4731 = vsel %vm1618, %v4699, %v4462
        %v4732 = vsel %vm1618, %v4700, %v4464
        %v4733 = vsel %vm1618, %v4701, %v4466
        %v4734 = vsel %vm1618, %v4702, %v4468
        %v4735 = vsel %vm1618, %v4703, %v4470
        %v4736 = vsel %vm1618, %v4704, %v4472
        %v4737 = vsel %vm1618, %v4705, %v4474
        %v4738 = vsel %vm1618, %v4706, %v4476
        %v4739 = vsel %vm1618, %v4707, %v4478
        %v4740 = vsel %vm1618, %v4708, %v4480
        %v4741 = vsel %vm1618, %v4709, %v4482
        %v4742 = vsel %vm1618, %v4710, %v4484
        %v4743 = vsel %vm1618, %v4711, %v4486
        %v4744 = vsel %vm1618, %v4712, %v4488
        %v4746 = vlaneseq
        %v4747 = vshrl.u32 %v4746, 7
        %v4748 = vsub.s32 0, %v4747
        %v4749 = vrot.slane %v3560, %v4748
        %v4751 = vsel %vm319, %v3755, 0
        %v4753 = vsel %vm319, %v3757, 0
        %v4755 = vsel %vm319, %v3760, 0
        %v4757 = vsel %vm319, %v3762, 0
        %v4759 = vsel %vm319, %v3765, 0
        %v4761 = vsel %vm319, %v3767, 0
        %v4763 = vsel %vm319, %v3770, 0
        %v4765 = vsel %vm319, %v3772, 0
        %v4767 = vsel %vm319, %v3775, 0
        %v4769 = vsel %vm319, %v3777, 0
        %v4771 = vsel %vm319, %v3780, 0
        %v4773 = vsel %vm319, %v3782, 0
        %v4775 = vsel %vm319, %v3785, 0
        %v4777 = vsel %vm319, %v3787, 0
        %v4779 = vsel %vm319, %v3790, 0
        %v4781 = vsel %vm319, %v3792, 0
        %v4783 = vsel %vm319, %v3795, 0
        %v4785 = vsel %vm319, %v3797, 0
        %v4787 = vsel %vm319, %v3800, 0
        %v4789 = vsel %vm319, %v3802, 0
        %v4791 = vsel %vm319, %v3805, 0
        %v4793 = vsel %vm319, %v3807, 0
        %v4795 = vsel %vm319, %v3810, 0
        %v4797 = vsel %vm319, %v3812, 0
        %v4799 = vsel %vm319, %v3815, 0
        %v4801 = vsel %vm319, %v3817, 0
        %v4803 = vsel %vm319, %v3820, 0
        %v4805 = vsel %vm319, %v3822, 0
        %v4807 = vsel %vm319, %v3833, 0
        %v4809 = vsel %vm319, %v3835, 0
        %v4811 = vsel %vm319, %v3846, 0
        %v4813 = vsel %vm319, %v3848, 0
        %4815 = vmatprep.subr.mxu0 0.0
        %4816 = vmatpush1.msra.mxu0 %v3541
        %4817 = vmatprep.subr.mxu0 0.0
        %4818 = vmatpush1.msra.mxu0 %v3542
        %4819 = vmatprep.subr.mxu0 0.0
        %4820 = vmatpush1.msra.mxu0 %v3543
        %4821 = vmatprep.subr.mxu0 0.0
        %4822 = vmatpush1.msra.mxu0 %v3544
        %4823 = vmatprep.subr.mxu0 0.0
        %4824 = vmatpush1.msra.mxu0 %v3545
        %4825 = vmatprep.subr.mxu0 0.0
        %4826 = vmatpush1.msra.mxu0 %v3546
        %4827 = vmatprep.subr.mxu0 0.0
        %4828 = vmatpush1.msra.mxu0 %v3547
        %4829 = vmatprep.subr.mxu0 0.0
        %4830 = vmatpush1.msra.mxu0 %v3548
        %4831 = vmatprep.subr.mxu0 0.0
        %4832 = vmatpush1.msra.mxu0 %v3549
        %4833 = vmatprep.subr.mxu0 0.0
        %4834 = vmatpush1.msra.mxu0 %v3550
        %4835 = vmatprep.subr.mxu0 0.0
        %4836 = vmatpush1.msra.mxu0 %v3551
        %4837 = vmatprep.subr.mxu0 0.0
        %4838 = vmatpush1.msra.mxu0 %v3552
        %4839 = vmatprep.subr.mxu0 0.0
        %4840 = vmatpush1.msra.mxu0 %v3553
        %4841 = vmatprep.subr.mxu0 0.0
        %4842 = vmatpush1.msra.mxu0 %v3554
        %4843 = vmatprep.subr.mxu0 0.0
        %4844 = vmatpush1.msra.mxu0 %v3555
        %4845 = vmatprep.subr.mxu0 0.0
        %4846 = vmatpush1.msra.mxu0 %v3556
        %4847 = vmatprep.subr.mxu0 0.0
        %4848 = vmatpush1.msra.mxu0 %v3557
        %4849 = vmatprep.subr.mxu0 0.0
        %4850 = vmatpush1.msra.mxu0 %v3558
        %4851 = vmatprep.subr.mxu0 0.0
        %4852 = vmatpush1.msra.mxu0 0.0
        %4853 = vmatprep.subr.mxu0 0.0
        %4854 = vmatpush1.msra.mxu0 0.0
        %4855 = vmatprep.subr.mxu0 0.0
        %4856 = vmatpush1.msra.mxu0 0.0
        %4857 = vmatprep.subr.mxu0 0.0
        %4858 = vmatpush1.msra.mxu0 0.0
        %4859 = vmatprep.subr.mxu0 0.0
        %4860 = vmatpush1.msra.mxu0 0.0
        %4861 = vmatprep.subr.mxu0 0.0
        %4862 = vmatpush1.msra.mxu0 0.0
        %4863 = vmatprep.subr.mxu0 0.0
        %4864 = vmatpush1.msra.mxu0 0.0
        %4865 = vmatprep.subr.mxu0 0.0
        %4866 = vmatpush1.msra.mxu0 0.0
        %4867 = vmatprep.subr.mxu0 0.0
        %4868 = vmatpush1.msra.mxu0 0.0
        %4869 = vmatprep.subr.mxu0 0.0
        %4870 = vmatpush1.msra.mxu0 0.0
        %4871 = vmatprep.subr.mxu0 0.0
        %4872 = vmatpush1.msra.mxu0 0.0
        %4873 = vmatprep.subr.mxu0 0.0
        %4874 = vmatpush1.msra.mxu0 0.0
        %4875 = vmatprep.subr.mxu0 0.0
        %4876 = vmatpush1.msra.mxu0 0.0
        %4877 = vmatprep.subr.mxu0 0.0
        %4878 = vmatpush1.msra.mxu0 0.0
        %4879 = vmatprep.mubr.f32.mxu0 %v4751
        %4880 = vmatmul.mubr.f32.gmra.mrb[0].mxu0 %v4713
        %v4881 = vpop.f32.mrb[0].mxu0
        %v4882 = vadd.f32 %v4749, %v4881
        %v4883 = vpop.f32.mrb[0].mxu0
        %4884 = vmatprep.mubr.f32.mxu0 %v4753
        %4885 = vmatmul.mubr.f32.gmra.mrb[0].mxu0 %v4714
        %v4886 = vpop.f32.mrb[0].mxu0
        %v4887 = vadd.f32 %v4749, %v4886
        %v4888 = vpop.f32.mrb[0].mxu0
        %4889 = vmatprep.mubr.f32.mxu0 %v4755
        %4890 = vmatmul.mubr.f32.gmra.mrb[0].mxu0 %v4715
        %v4891 = vpop.f32.mrb[0].mxu0
        %v4892 = vadd.f32 %v4749, %v4891
        %v4893 = vpop.f32.mrb[0].mxu0
        %4894 = vmatprep.mubr.f32.mxu0 %v4757
        %4895 = vmatmul.mubr.f32.gmra.mrb[0].mxu0 %v4716
        %v4896 = vpop.f32.mrb[0].mxu0
        %v4897 = vadd.f32 %v4749, %v4896
        %v4898 = vpop.f32.mrb[0].mxu0
        %4899 = vmatprep.mubr.f32.mxu0 %v4759
        %4900 = vmatmul.mubr.f32.gmra.mrb[0].mxu0 %v4717
        %v4901 = vpop.f32.mrb[0].mxu0
        %v4902 = vadd.f32 %v4749, %v4901
        %v4903 = vpop.f32.mrb[0].mxu0
        %4904 = vmatprep.mubr.f32.mxu0 %v4761
        %4905 = vmatmul.mubr.f32.gmra.mrb[0].mxu0 %v4718
        %v4906 = vpop.f32.mrb[0].mxu0
        %v4907 = vadd.f32 %v4749, %v4906
        %v4908 = vpop.f32.mrb[0].mxu0
        %4909 = vmatprep.mubr.f32.mxu0 %v4763
        %4910 = vmatmul.mubr.f32.gmra.mrb[0].mxu0 %v4719
        %v4911 = vpop.f32.mrb[0].mxu0
        %v4912 = vadd.f32 %v4749, %v4911
        %v4913 = vpop.f32.mrb[0].mxu0
        %4914 = vmatprep.mubr.f32.mxu0 %v4765
        %4915 = vmatmul.mubr.f32.gmra.mrb[0].mxu0 %v4720
        %v4916 = vpop.f32.mrb[0].mxu0
        %v4917 = vadd.f32 %v4749, %v4916
        %v4918 = vpop.f32.mrb[0].mxu0
        %4919 = vmatprep.mubr.f32.mxu0 %v4767
        %4920 = vmatmul.mubr.f32.gmra.mrb[0].mxu0 %v4721
        %v4921 = vpop.f32.mrb[0].mxu0
        %v4922 = vadd.f32 %v4749, %v4921
        %v4923 = vpop.f32.mrb[0].mxu0
        %4924 = vmatprep.mubr.f32.mxu0 %v4769
        %4925 = vmatmul.mubr.f32.gmra.mrb[0].mxu0 %v4722
        %v4926 = vpop.f32.mrb[0].mxu0
        %v4927 = vadd.f32 %v4749, %v4926
        %v4928 = vpop.f32.mrb[0].mxu0
        %4929 = vmatprep.mubr.f32.mxu0 %v4771
        %4930 = vmatmul.mubr.f32.gmra.mrb[0].mxu0 %v4723
        %v4931 = vpop.f32.mrb[0].mxu0
        %v4932 = vadd.f32 %v4749, %v4931
        %v4933 = vpop.f32.mrb[0].mxu0
        %4934 = vmatprep.mubr.f32.mxu0 %v4773
        %4935 = vmatmul.mubr.f32.gmra.mrb[0].mxu0 %v4724
        %v4936 = vpop.f32.mrb[0].mxu0
        %v4937 = vadd.f32 %v4749, %v4936
        %v4938 = vpop.f32.mrb[0].mxu0
        %4939 = vmatprep.mubr.f32.mxu0 %v4775
        %4940 = vmatmul.mubr.f32.gmra.mrb[0].mxu0 %v4725
        %v4941 = vpop.f32.mrb[0].mxu0
        %v4942 = vadd.f32 %v4749, %v4941
        %v4943 = vpop.f32.mrb[0].mxu0
        %4944 = vmatprep.mubr.f32.mxu0 %v4777
        %4945 = vmatmul.mubr.f32.gmra.mrb[0].mxu0 %v4726
        %v4946 = vpop.f32.mrb[0].mxu0
        %v4947 = vadd.f32 %v4749, %v4946
        %v4948 = vpop.f32.mrb[0].mxu0
        %4949 = vmatprep.mubr.f32.mxu0 %v4779
        %4950 = vmatmul.mubr.f32.gmra.mrb[0].mxu0 %v4727
        %v4951 = vpop.f32.mrb[0].mxu0
        %v4952 = vadd.f32 %v4749, %v4951
        %v4953 = vpop.f32.mrb[0].mxu0
        %4954 = vmatprep.mubr.f32.mxu0 %v4781
        %4955 = vmatmul.mubr.f32.gmra.mrb[0].mxu0 %v4728
        %v4956 = vpop.f32.mrb[0].mxu0
        %v4957 = vadd.f32 %v4749, %v4956
        %v4958 = vpop.f32.mrb[0].mxu0
        %4959 = vmatprep.mubr.f32.mxu0 %v4783
        %4960 = vmatmul.mubr.f32.gmra.mrb[0].mxu0 %v4729
        %v4961 = vpop.f32.mrb[0].mxu0
        %v4962 = vadd.f32 %v4749, %v4961
        %v4963 = vpop.f32.mrb[0].mxu0
        %4964 = vmatprep.mubr.f32.mxu0 %v4785
        %4965 = vmatmul.mubr.f32.gmra.mrb[0].mxu0 %v4730
        %v4966 = vpop.f32.mrb[0].mxu0
        %v4967 = vadd.f32 %v4749, %v4966
        %v4968 = vpop.f32.mrb[0].mxu0
        %4969 = vmatprep.mubr.f32.mxu0 %v4787
        %4970 = vmatmul.mubr.f32.gmra.mrb[0].mxu0 %v4731
        %v4971 = vpop.f32.mrb[0].mxu0
        %v4972 = vadd.f32 %v4749, %v4971
        %v4973 = vpop.f32.mrb[0].mxu0
        %4974 = vmatprep.mubr.f32.mxu0 %v4789
        %4975 = vmatmul.mubr.f32.gmra.mrb[0].mxu0 %v4732
        %v4976 = vpop.f32.mrb[0].mxu0
        %v4977 = vadd.f32 %v4749, %v4976
        %v4978 = vpop.f32.mrb[0].mxu0
        %4979 = vmatprep.mubr.f32.mxu0 %v4791
        %4980 = vmatmul.mubr.f32.gmra.mrb[0].mxu0 %v4733
        %v4981 = vpop.f32.mrb[0].mxu0
        %v4982 = vadd.f32 %v4749, %v4981
        %v4983 = vpop.f32.mrb[0].mxu0
        %4984 = vmatprep.mubr.f32.mxu0 %v4793
        %4985 = vmatmul.mubr.f32.gmra.mrb[0].mxu0 %v4734
        %v4986 = vpop.f32.mrb[0].mxu0
        %v4987 = vadd.f32 %v4749, %v4986
        %v4988 = vpop.f32.mrb[0].mxu0
        %4989 = vmatprep.mubr.f32.mxu0 %v4795
        %4990 = vmatmul.mubr.f32.gmra.mrb[0].mxu0 %v4735
        %v4991 = vpop.f32.mrb[0].mxu0
        %v4992 = vadd.f32 %v4749, %v4991
        %v4993 = vpop.f32.mrb[0].mxu0
        %4994 = vmatprep.mubr.f32.mxu0 %v4797
        %4995 = vmatmul.mubr.f32.gmra.mrb[0].mxu0 %v4736
        %v4996 = vpop.f32.mrb[0].mxu0
        %v4997 = vadd.f32 %v4749, %v4996
        %v4998 = vpop.f32.mrb[0].mxu0
        %4999 = vmatprep.mubr.f32.mxu0 %v4799
        %5000 = vmatmul.mubr.f32.gmra.mrb[0].mxu0 %v4737
        %v5001 = vpop.f32.mrb[0].mxu0
        %v5002 = vadd.f32 %v4749, %v5001
        %v5003 = vpop.f32.mrb[0].mxu0
        %5004 = vmatprep.mubr.f32.mxu0 %v4801
        %5005 = vmatmul.mubr.f32.gmra.mrb[0].mxu0 %v4738
        %v5006 = vpop.f32.mrb[0].mxu0
        %v5007 = vadd.f32 %v4749, %v5006
        %v5008 = vpop.f32.mrb[0].mxu0
        %5009 = vmatprep.mubr.f32.mxu0 %v4803
        %5010 = vmatmul.mubr.f32.gmra.mrb[0].mxu0 %v4739
        %v5011 = vpop.f32.mrb[0].mxu0
        %v5012 = vadd.f32 %v4749, %v5011
        %v5013 = vpop.f32.mrb[0].mxu0
        %5014 = vmatprep.mubr.f32.mxu0 %v4805
        %5015 = vmatmul.mubr.f32.gmra.mrb[0].mxu0 %v4740
        %v5016 = vpop.f32.mrb[0].mxu0
        %v5017 = vadd.f32 %v4749, %v5016
        %v5018 = vpop.f32.mrb[0].mxu0
        %5019 = vmatprep.mubr.f32.mxu0 %v4807
        %5020 = vmatmul.mubr.f32.gmra.mrb[0].mxu0 %v4741
        %v5021 = vpop.f32.mrb[0].mxu0
        %v5022 = vadd.f32 %v4749, %v5021
        %v5023 = vpop.f32.mrb[0].mxu0
        %5024 = vmatprep.mubr.f32.mxu0 %v4809
        %5025 = vmatmul.mubr.f32.gmra.mrb[0].mxu0 %v4742
        %v5026 = vpop.f32.mrb[0].mxu0
        %v5027 = vadd.f32 %v4749, %v5026
        %v5028 = vpop.f32.mrb[0].mxu0
        %5029 = vmatprep.mubr.f32.mxu0 %v4811
        %5030 = vmatmul.mubr.f32.gmra.mrb[0].mxu0 %v4743
        %v5031 = vpop.f32.mrb[0].mxu0
        %v5032 = vadd.f32 %v4749, %v5031
        %v5033 = vpop.f32.mrb[0].mxu0
        %5034 = vmatprep.mubr.f32.mxu0 %v4813
        %5035 = vmatmul.mubr.f32.gmra.mrb[0].mxu0 %v4744
        %v5036 = vpop.f32.mrb[0].mxu0
        %v5037 = vadd.f32 %v4749, %v5036
        %v5038 = vpop.f32.mrb[0].mxu0
        %5039 = vdwg.mxu0
        %v5040 = vmax.f32 %v4882, 0.0
        %v5041 = vmax.f32 %v4887, 0.0
        %v5042 = vmax.f32 %v4892, 0.0
        %v5043 = vmax.f32 %v4897, 0.0
        %v5044 = vmax.f32 %v4902, 0.0
        %v5045 = vmax.f32 %v4907, 0.0
        %v5046 = vmax.f32 %v4912, 0.0
        %v5047 = vmax.f32 %v4917, 0.0
        %v5048 = vmax.f32 %v4922, 0.0
        %v5049 = vmax.f32 %v4927, 0.0
        %v5050 = vmax.f32 %v4932, 0.0
        %v5051 = vmax.f32 %v4937, 0.0
        %v5052 = vmax.f32 %v4942, 0.0
        %v5053 = vmax.f32 %v4947, 0.0
        %v5054 = vmax.f32 %v4952, 0.0
        %v5055 = vmax.f32 %v4957, 0.0
        %v5056 = vmax.f32 %v4962, 0.0
        %v5057 = vmax.f32 %v4967, 0.0
        %v5058 = vmax.f32 %v4972, 0.0
        %v5059 = vmax.f32 %v4977, 0.0
        %v5060 = vmax.f32 %v4982, 0.0
        %v5061 = vmax.f32 %v4987, 0.0
        %v5062 = vmax.f32 %v4992, 0.0
        %v5063 = vmax.f32 %v4997, 0.0
        %v5064 = vmax.f32 %v5002, 0.0
        %v5065 = vmax.f32 %v5007, 0.0
        %v5066 = vmax.f32 %v5012, 0.0
        %v5067 = vmax.f32 %v5017, 0.0
        %v5068 = vmax.f32 %v5022, 0.0
        %v5069 = vmax.f32 %v5027, 0.0
        %v5070 = vmax.f32 %v5032, 0.0
        %v5071 = vmax.f32 %v5037, 0.0
        %5072 = vst.msk [vmem:[%s407 + $0x1] sm:$0xff] %vm319, %v5040
        %5073 = vst.msk [vmem:[%s407 + $0x9] sm:$0xff] %vm319, %v5041
        %5074 = vst.msk [vmem:[%s407 + $0x19] sm:$0xff] %vm319, %v5042
        %5075 = vst.msk [vmem:[%s407 + $0x21] sm:$0xff] %vm319, %v5043
        %5076 = vst.msk [vmem:[%s407 + $0x31] sm:$0xff] %vm319, %v5044
        %5077 = vst.msk [vmem:[%s407 + $0x39] sm:$0xff] %vm319, %v5045
        %5078 = vst.msk [vmem:[%s407 + $0x49] sm:$0xff] %vm319, %v5046
        %5079 = vst.msk [vmem:[%s407 + $0x51] sm:$0xff] %vm319, %v5047
        %5080 = vst.msk [vmem:[%s407 + $0x61] sm:$0xff] %vm319, %v5048
        %5081 = vst.msk [vmem:[%s407 + $0x69] sm:$0xff] %vm319, %v5049
        %5082 = vst.msk [vmem:[%s407 + $0x79] sm:$0xff] %vm319, %v5050
        %5083 = vst.msk [vmem:[%s407 + $0x81] sm:$0xff] %vm319, %v5051
        %5084 = vst.msk [vmem:[%s407 + $0x91] sm:$0xff] %vm319, %v5052
        %5085 = vst.msk [vmem:[%s407 + $0x99] sm:$0xff] %vm319, %v5053
        %5086 = vst.msk [vmem:[%s407 + $0xa9] sm:$0xff] %vm319, %v5054
        %5087 = vst.msk [vmem:[%s407 + $0xb1] sm:$0xff] %vm319, %v5055
        %5088 = vst.msk [vmem:[%s407 + $0xc1] sm:$0xff] %vm319, %v5056
        %5089 = vst.msk [vmem:[%s407 + $0xc9] sm:$0xff] %vm319, %v5057
        %5090 = vst.msk [vmem:[%s407 + $0xd9] sm:$0xff] %vm319, %v5058
        %5091 = vst.msk [vmem:[%s407 + $0xe1] sm:$0xff] %vm319, %v5059
        %5092 = vst.msk [vmem:[%s407 + $0xf1] sm:$0xff] %vm319, %v5060
        %5093 = vst.msk [vmem:[%s407 + $0xf9] sm:$0xff] %vm319, %v5061
        %5094 = vst.msk [vmem:[%s407 + $0x109] sm:$0xff] %vm319, %v5062
        %5095 = vst.msk [vmem:[%s407 + $0x111] sm:$0xff] %vm319, %v5063
        %5096 = vst.msk [vmem:[%s407 + $0x121] sm:$0xff] %vm319, %v5064
        %5097 = vst.msk [vmem:[%s407 + $0x129] sm:$0xff] %vm319, %v5065
        %5098 = vst.msk [vmem:[%s407 + $0x139] sm:$0xff] %vm319, %v5066
        %5099 = vst.msk [vmem:[%s407 + $0x141] sm:$0xff] %vm319, %v5067
        %5100 = vst.msk [vmem:[%s407 + $0x151] sm:$0xff] %vm319, %v5068
        %5101 = vst.msk [vmem:[%s407 + $0x159] sm:$0xff] %vm319, %v5069
        %5102 = vst.msk [vmem:[%s407 + $0x169] sm:$0xff] %vm319, %v5070
        %5103 = vst.msk [vmem:[%s407 + $0x171] sm:$0xff] %vm319, %v5071
        %v5104 = vadd.f32 %v1788, %v5040
        %v5105 = vadd.f32 %v1793, %v5041
        %v5106 = vadd.f32 %v1798, %v5042
        %v5107 = vadd.f32 %v1803, %v5043
        %v5108 = vadd.f32 %v1808, %v5044
        %v5109 = vadd.f32 %v1813, %v5045
        %v5110 = vadd.f32 %v1818, %v5046
        %v5111 = vadd.f32 %v1823, %v5047
        %v5112 = vadd.f32 %v1828, %v5048
        %v5113 = vadd.f32 %v1833, %v5049
        %v5114 = vadd.f32 %v1838, %v5050
        %v5115 = vadd.f32 %v1843, %v5051
        %v5116 = vadd.f32 %v1848, %v5052
        %v5117 = vadd.f32 %v1853, %v5053
        %v5118 = vadd.f32 %v1858, %v5054
        %v5119 = vadd.f32 %v1863, %v5055
        %v5120 = vadd.f32 %v1868, %v5056
        %v5121 = vadd.f32 %v1873, %v5057
        %v5122 = vadd.f32 %v1878, %v5058
        %v5123 = vadd.f32 %v1883, %v5059
        %v5124 = vadd.f32 %v1888, %v5060
        %v5125 = vadd.f32 %v1893, %v5061
        %v5126 = vadd.f32 %v1898, %v5062
        %v5127 = vadd.f32 %v1903, %v5063
        %v5128 = vadd.f32 %v1908, %v5064
        %v5129 = vadd.f32 %v1913, %v5065
        %v5130 = vadd.f32 %v1918, %v5066
        %v5131 = vadd.f32 %v1923, %v5067
        %v5132 = vadd.f32 %v1928, %v5068
        %v5133 = vadd.f32 %v1933, %v5069
        %v5134 = vadd.f32 %v1938, %v5070
        %v5135 = vadd.f32 %v1943, %v5071
        %5136 = vst.msk [vmem:[%s407 + $0x1] sm:$0xff] %vm319, %v5104
        %5137 = vst.msk [vmem:[%s407 + $0x9] sm:$0xff] %vm319, %v5105
        %5138 = vst.msk [vmem:[%s407 + $0x19] sm:$0xff] %vm319, %v5106
        %5139 = vst.msk [vmem:[%s407 + $0x21] sm:$0xff] %vm319, %v5107
        %5140 = vst.msk [vmem:[%s407 + $0x31] sm:$0xff] %vm319, %v5108
        %5141 = vst.msk [vmem:[%s407 + $0x39] sm:$0xff] %vm319, %v5109
        %5142 = vst.msk [vmem:[%s407 + $0x49] sm:$0xff] %vm319, %v5110
        %5143 = vst.msk [vmem:[%s407 + $0x51] sm:$0xff] %vm319, %v5111
        %5144 = vst.msk [vmem:[%s407 + $0x61] sm:$0xff] %vm319, %v5112
        %5145 = vst.msk [vmem:[%s407 + $0x69] sm:$0xff] %vm319, %v5113
        %5146 = vst.msk [vmem:[%s407 + $0x79] sm:$0xff] %vm319, %v5114
        %5147 = vst.msk [vmem:[%s407 + $0x81] sm:$0xff] %vm319, %v5115
        %5148 = vst.msk [vmem:[%s407 + $0x91] sm:$0xff] %vm319, %v5116
        %5149 = vst.msk [vmem:[%s407 + $0x99] sm:$0xff] %vm319, %v5117
        %5150 = vst.msk [vmem:[%s407 + $0xa9] sm:$0xff] %vm319, %v5118
        %5151 = vst.msk [vmem:[%s407 + $0xb1] sm:$0xff] %vm319, %v5119
        %5152 = vst.msk [vmem:[%s407 + $0xc1] sm:$0xff] %vm319, %v5120
        %5153 = vst.msk [vmem:[%s407 + $0xc9] sm:$0xff] %vm319, %v5121
        %5154 = vst.msk [vmem:[%s407 + $0xd9] sm:$0xff] %vm319, %v5122
        %5155 = vst.msk [vmem:[%s407 + $0xe1] sm:$0xff] %vm319, %v5123
        %5156 = vst.msk [vmem:[%s407 + $0xf1] sm:$0xff] %vm319, %v5124
        %5157 = vst.msk [vmem:[%s407 + $0xf9] sm:$0xff] %vm319, %v5125
        %5158 = vst.msk [vmem:[%s407 + $0x109] sm:$0xff] %vm319, %v5126
        %5159 = vst.msk [vmem:[%s407 + $0x111] sm:$0xff] %vm319, %v5127
        %5160 = vst.msk [vmem:[%s407 + $0x121] sm:$0xff] %vm319, %v5128
        %5161 = vst.msk [vmem:[%s407 + $0x129] sm:$0xff] %vm319, %v5129
        %5162 = vst.msk [vmem:[%s407 + $0x139] sm:$0xff] %vm319, %v5130
        %5163 = vst.msk [vmem:[%s407 + $0x141] sm:$0xff] %vm319, %v5131
        %5164 = vst.msk [vmem:[%s407 + $0x151] sm:$0xff] %vm319, %v5132
        %5165 = vst.msk [vmem:[%s407 + $0x159] sm:$0xff] %vm319, %v5133
        %5166 = vst.msk [vmem:[%s407 + $0x169] sm:$0xff] %vm319, %v5134
        %5167 = vst.msk [vmem:[%s407 + $0x171] sm:$0xff] %vm319, %v5135
        %v5168 = vld [vmem:[#allocation5] sm:$0xff]
        %v5169 = vld [vmem:[#allocation5 + $0x8] sm:$0xff]
        %v5170 = vld [vmem:[#allocation5 + $0x10] sm:$0xff]
        %v5171 = vld [vmem:[#allocation5 + $0x18] sm:$0xff]
        %v5172 = vld [vmem:[#allocation5 + $0x20] sm:$0xff]
        %v5173 = vld [vmem:[#allocation5 + $0x28] sm:$0xff]
        %v5174 = vld [vmem:[#allocation5 + $0x30] sm:$0xff]
        %v5175 = vld [vmem:[#allocation5 + $0x38] sm:$0xff]
        %v5176 = vld [vmem:[#allocation5 + $0x40] sm:$0xff]
        %v5177 = vld [vmem:[#allocation5 + $0x48] sm:$0xff]
        %v5178 = vld [vmem:[#allocation5 + $0x50] sm:$0xff]
        %v5179 = vld [vmem:[#allocation5 + $0x58] sm:$0xff]
        %v5180 = vld [vmem:[#allocation5 + $0x60] sm:$0xff]
        %v5181 = vld [vmem:[#allocation5 + $0x68] sm:$0xff]
        %v5182 = vld [vmem:[#allocation5 + $0x70] sm:$0xff]
        %v5183 = vld [vmem:[#allocation5 + $0x78] sm:$0xff]
        %v5184 = vld [vmem:[#allocation5 + $0x80] sm:$0xff]
        %v5185 = vld [vmem:[#allocation5 + $0x88] sm:$0xff]
        %v5186 = vld [vmem:[#allocation7] sm:$0x1]
        %v5187 = vld [vmem:[#allocation2] sm:$0xff]
        %v5188 = vld [vmem:[#allocation2 + $0x8] sm:$0xff]
        %v5189 = vld [vmem:[#allocation2 + $0x10] sm:$0x3]
        %v5190 = vld [vmem:[#allocation2 + $0x18] sm:$0xff]
        %v5191 = vld [vmem:[#allocation2 + $0x20] sm:$0xff]
        %v5192 = vld [vmem:[#allocation2 + $0x28] sm:$0x3]
        %v5193 = vld [vmem:[#allocation2 + $0x30] sm:$0xff]
        %v5194 = vld [vmem:[#allocation2 + $0x38] sm:$0xff]
        %v5195 = vld [vmem:[#allocation2 + $0x40] sm:$0x3]
        %v5196 = vld [vmem:[#allocation2 + $0x48] sm:$0xff]
        %v5197 = vld [vmem:[#allocation2 + $0x50] sm:$0xff]
        %v5198 = vld [vmem:[#allocation2 + $0x58] sm:$0x3]
        %v5199 = vld [vmem:[#allocation2 + $0x60] sm:$0xff]
        %v5200 = vld [vmem:[#allocation2 + $0x68] sm:$0xff]
        %v5201 = vld [vmem:[#allocation2 + $0x70] sm:$0x3]
        %v5202 = vld [vmem:[#allocation2 + $0x78] sm:$0xff]
        %v5203 = vld [vmem:[#allocation2 + $0x80] sm:$0xff]
        %v5204 = vld [vmem:[#allocation2 + $0x88] sm:$0x3]
        %v5205 = vld [vmem:[#allocation2 + $0x90] sm:$0xff]
        %v5206 = vld [vmem:[#allocation2 + $0x98] sm:$0xff]
        %v5207 = vld [vmem:[#allocation2 + $0xa0] sm:$0x3]
        %v5208 = vld [vmem:[#allocation2 + $0xa8] sm:$0xff]
        %v5209 = vld [vmem:[#allocation2 + $0xb0] sm:$0xff]
        %v5210 = vld [vmem:[#allocation2 + $0xb8] sm:$0x3]
        %v5211 = vld [vmem:[#allocation2 + $0xc0] sm:$0xff]
        %v5212 = vld [vmem:[#allocation2 + $0xc8] sm:$0xff]
        %v5213 = vld [vmem:[#allocation2 + $0xd0] sm:$0x3]
        %v5214 = vld [vmem:[#allocation2 + $0xd8] sm:$0xff]
        %v5215 = vld [vmem:[#allocation2 + $0xe0] sm:$0xff]
        %v5216 = vld [vmem:[#allocation2 + $0xe8] sm:$0x3]
        %v5217 = vld [vmem:[#allocation2 + $0xf0] sm:$0xff]
        %v5218 = vld [vmem:[#allocation2 + $0xf8] sm:$0xff]
        %v5219 = vld [vmem:[#allocation2 + $0x100] sm:$0x3]
        %v5220 = vld [vmem:[#allocation2 + $0x108] sm:$0xff]
        %v5221 = vld [vmem:[#allocation2 + $0x110] sm:$0xff]
        %v5222 = vld [vmem:[#allocation2 + $0x118] sm:$0x3]
        %v5223 = vld [vmem:[#allocation2 + $0x120] sm:$0xff]
        %v5224 = vld [vmem:[#allocation2 + $0x128] sm:$0xff]
        %v5225 = vld [vmem:[#allocation2 + $0x130] sm:$0x3]
        %v5226 = vld [vmem:[#allocation2 + $0x138] sm:$0xff]
        %v5227 = vld [vmem:[#allocation2 + $0x140] sm:$0xff]
        %v5228 = vld [vmem:[#allocation2 + $0x148] sm:$0x3]
        %v5229 = vld [vmem:[#allocation2 + $0x150] sm:$0xff]
        %v5230 = vld [vmem:[#allocation2 + $0x158] sm:$0xff]
        %v5231 = vld [vmem:[#allocation2 + $0x160] sm:$0x3]
        %v5232 = vld [vmem:[#allocation2 + $0x168] sm:$0xff]
        %v5233 = vld [vmem:[#allocation2 + $0x170] sm:$0xff]
        %v5234 = vld [vmem:[#allocation2 + $0x178] sm:$0x3]
        %v5235 = vld [vmem:[#allocation2 + $0x180] sm:$0xff]
        %v5236 = vld [vmem:[#allocation2 + $0x188] sm:$0xff]
        %v5237 = vld [vmem:[#allocation2 + $0x190] sm:$0x3]
        %v5238 = vld [vmem:[#allocation2 + $0x198] sm:$0xff]
        %v5239 = vld [vmem:[#allocation2 + $0x1a0] sm:$0xff]
        %v5240 = vld [vmem:[#allocation2 + $0x1a8] sm:$0x3]
        %v5289 = vrot.slane %v5187, 1
        %v5290 = vrot.slane %v5188, 1
        %v5291 = vsel %vm561, %v5289, %v5290
        %v5292 = vrot.slane %v5189, 1
        %v5293 = vsel %vm561, %v5290, %v5292
        %v5294 = vrot.slane %v5190, 1
        %v5295 = vrot.slane %v5191, 1
        %v5296 = vsel %vm561, %v5294, %v5295
        %v5297 = vrot.slane %v5192, 1
        %v5298 = vsel %vm561, %v5295, %v5297
        %v5299 = vrot.slane %v5193, 1
        %v5300 = vrot.slane %v5194, 1
        %v5301 = vsel %vm561, %v5299, %v5300
        %v5302 = vrot.slane %v5195, 1
        %v5303 = vsel %vm561, %v5300, %v5302
        %v5304 = vrot.slane %v5196, 1
        %v5305 = vrot.slane %v5197, 1
        %v5306 = vsel %vm561, %v5304, %v5305
        %v5307 = vrot.slane %v5198, 1
        %v5308 = vsel %vm561, %v5305, %v5307
        %v5309 = vrot.slane %v5199, 1
        %v5310 = vrot.slane %v5200, 1
        %v5311 = vsel %vm561, %v5309, %v5310
        %v5312 = vrot.slane %v5201, 1
        %v5313 = vsel %vm561, %v5310, %v5312
        %v5314 = vrot.slane %v5202, 1
        %v5315 = vrot.slane %v5203, 1
        %v5316 = vsel %vm561, %v5314, %v5315
        %v5317 = vrot.slane %v5204, 1
        %v5318 = vsel %vm561, %v5315, %v5317
        %v5319 = vrot.slane %v5205, 1
        %v5320 = vrot.slane %v5206, 1
        %v5321 = vsel %vm561, %v5319, %v5320
        %v5322 = vrot.slane %v5207, 1
        %v5323 = vsel %vm561, %v5320, %v5322
        %v5324 = vrot.slane %v5208, 1
        %v5325 = vrot.slane %v5209, 1
        %v5326 = vsel %vm561, %v5324, %v5325
        %v5327 = vrot.slane %v5210, 1
        %v5328 = vsel %vm561, %v5325, %v5327
        %v5329 = vrot.slane %v5211, 1
        %v5330 = vrot.slane %v5212, 1
        %v5331 = vsel %vm561, %v5329, %v5330
        %v5332 = vrot.slane %v5213, 1
        %v5333 = vsel %vm561, %v5330, %v5332
        %v5334 = vrot.slane %v5214, 1
        %v5335 = vrot.slane %v5215, 1
        %v5336 = vsel %vm561, %v5334, %v5335
        %v5337 = vrot.slane %v5216, 1
        %v5338 = vsel %vm561, %v5335, %v5337
        %v5339 = vrot.slane %v5217, 1
        %v5340 = vrot.slane %v5218, 1
        %v5341 = vsel %vm561, %v5339, %v5340
        %v5342 = vrot.slane %v5219, 1
        %v5343 = vsel %vm561, %v5340, %v5342
        %v5344 = vrot.slane %v5220, 1
        %v5345 = vrot.slane %v5221, 1
        %v5346 = vsel %vm561, %v5344, %v5345
        %v5347 = vrot.slane %v5222, 1
        %v5348 = vsel %vm561, %v5345, %v5347
        %v5349 = vrot.slane %v5223, 1
        %v5350 = vrot.slane %v5224, 1
        %v5351 = vsel %vm561, %v5349, %v5350
        %v5352 = vrot.slane %v5225, 1
        %v5353 = vsel %vm561, %v5350, %v5352
        %v5354 = vrot.slane %v5226, 1
        %v5355 = vrot.slane %v5227, 1
        %v5356 = vsel %vm561, %v5354, %v5355
        %v5357 = vrot.slane %v5228, 1
        %v5358 = vsel %vm561, %v5355, %v5357
        %v5359 = vrot.slane %v5229, 1
        %v5360 = vrot.slane %v5230, 1
        %v5361 = vsel %vm561, %v5359, %v5360
        %v5362 = vrot.slane %v5231, 1
        %v5363 = vsel %vm561, %v5360, %v5362
        %v5364 = vrot.slane %v5232, 1
        %v5365 = vrot.slane %v5233, 1
        %v5366 = vsel %vm561, %v5364, %v5365
        %v5367 = vrot.slane %v5234, 1
        %v5368 = vsel %vm561, %v5365, %v5367
        %v5369 = vrot.slane %v5187, 2
        %v5370 = vrot.slane %v5188, 2
        %v5371 = vsel %vm642, %v5369, %v5370
        %v5372 = vrot.slane %v5189, 2
        %v5373 = vsel %vm642, %v5370, %v5372
        %v5374 = vrot.slane %v5190, 2
        %v5375 = vrot.slane %v5191, 2
        %v5376 = vsel %vm642, %v5374, %v5375
        %v5377 = vrot.slane %v5192, 2
        %v5378 = vsel %vm642, %v5375, %v5377
        %v5379 = vrot.slane %v5193, 2
        %v5380 = vrot.slane %v5194, 2
        %v5381 = vsel %vm642, %v5379, %v5380
        %v5382 = vrot.slane %v5195, 2
        %v5383 = vsel %vm642, %v5380, %v5382
        %v5384 = vrot.slane %v5196, 2
        %v5385 = vrot.slane %v5197, 2
        %v5386 = vsel %vm642, %v5384, %v5385
        %v5387 = vrot.slane %v5198, 2
        %v5388 = vsel %vm642, %v5385, %v5387
        %v5389 = vrot.slane %v5199, 2
        %v5390 = vrot.slane %v5200, 2
        %v5391 = vsel %vm642, %v5389, %v5390
        %v5392 = vrot.slane %v5201, 2
        %v5393 = vsel %vm642, %v5390, %v5392
        %v5394 = vrot.slane %v5202, 2
        %v5395 = vrot.slane %v5203, 2
        %v5396 = vsel %vm642, %v5394, %v5395
        %v5397 = vrot.slane %v5204, 2
        %v5398 = vsel %vm642, %v5395, %v5397
        %v5399 = vrot.slane %v5205, 2
        %v5400 = vrot.slane %v5206, 2
        %v5401 = vsel %vm642, %v5399, %v5400
        %v5402 = vrot.slane %v5207, 2
        %v5403 = vsel %vm642, %v5400, %v5402
        %v5404 = vrot.slane %v5208, 2
        %v5405 = vrot.slane %v5209, 2
        %v5406 = vsel %vm642, %v5404, %v5405
        %v5407 = vrot.slane %v5210, 2
        %v5408 = vsel %vm642, %v5405, %v5407
        %v5409 = vrot.slane %v5211, 2
        %v5410 = vrot.slane %v5212, 2
        %v5411 = vsel %vm642, %v5409, %v5410
        %v5412 = vrot.slane %v5213, 2
        %v5413 = vsel %vm642, %v5410, %v5412
        %v5414 = vrot.slane %v5214, 2
        %v5415 = vrot.slane %v5215, 2
        %v5416 = vsel %vm642, %v5414, %v5415
        %v5417 = vrot.slane %v5216, 2
        %v5418 = vsel %vm642, %v5415, %v5417
        %v5419 = vrot.slane %v5217, 2
        %v5420 = vrot.slane %v5218, 2
        %v5421 = vsel %vm642, %v5419, %v5420
        %v5422 = vrot.slane %v5219, 2
        %v5423 = vsel %vm642, %v5420, %v5422
        %v5424 = vrot.slane %v5220, 2
        %v5425 = vrot.slane %v5221, 2
        %v5426 = vsel %vm642, %v5424, %v5425
        %v5427 = vrot.slane %v5222, 2
        %v5428 = vsel %vm642, %v5425, %v5427
        %v5429 = vrot.slane %v5223, 2
        %v5430 = vrot.slane %v5224, 2
        %v5431 = vsel %vm642, %v5429, %v5430
        %v5432 = vrot.slane %v5225, 2
        %v5433 = vsel %vm642, %v5430, %v5432
        %v5434 = vrot.slane %v5226, 2
        %v5435 = vrot.slane %v5227, 2
        %v5436 = vsel %vm642, %v5434, %v5435
        %v5437 = vrot.slane %v5228, 2
        %v5438 = vsel %vm642, %v5435, %v5437
        %v5439 = vrot.slane %v5229, 2
        %v5440 = vrot.slane %v5230, 2
        %v5441 = vsel %vm642, %v5439, %v5440
        %v5442 = vrot.slane %v5231, 2
        %v5443 = vsel %vm642, %v5440, %v5442
        %v5444 = vrot.slane %v5232, 2
        %v5445 = vrot.slane %v5233, 2
        %v5446 = vsel %vm642, %v5444, %v5445
        %v5447 = vrot.slane %v5234, 2
        %v5448 = vsel %vm642, %v5445, %v5447
        %v5452 = vrot.slane %v5235, 1
        %v5453 = vrot.slane %v5236, 1
        %v5454 = vsel %vm561, %v5452, %v5453
        %v5455 = vrot.slane %v5237, 1
        %v5456 = vsel %vm561, %v5453, %v5455
        %v5457 = vrot.slane %v5235, 2
        %v5458 = vrot.slane %v5236, 2
        %v5459 = vsel %vm642, %v5457, %v5458
        %v5460 = vrot.slane %v5237, 2
        %v5461 = vsel %vm642, %v5458, %v5460
        %v5465 = vrot.slane %v5238, 1
        %v5466 = vrot.slane %v5239, 1
        %v5467 = vsel %vm561, %v5465, %v5466
        %v5468 = vrot.slane %v5240, 1
        %v5469 = vsel %vm561, %v5466, %v5468
        %v5470 = vrot.slane %v5238, 2
        %v5471 = vrot.slane %v5239, 2
        %v5472 = vsel %vm642, %v5470, %v5471
        %v5473 = vrot.slane %v5240, 2
        %v5474 = vsel %vm642, %v5471, %v5473
        %5475 = vrot.lane.b32.xlu0 %v5291, 16
        %v5476 = vpop.permute.xlu0 %5475
        %5477 = vrot.lane.b32.xlu0 %v5293, 16
        %v5478 = vpop.permute.xlu0 %5477
        %5479 = vrot.lane.b32.xlu0 %v5296, 16
        %v5480 = vpop.permute.xlu0 %5479
        %5481 = vrot.lane.b32.xlu0 %v5298, 16
        %v5482 = vpop.permute.xlu0 %5481
        %5483 = vrot.lane.b32.xlu0 %v5301, 16
        %v5484 = vpop.permute.xlu0 %5483
        %5485 = vrot.lane.b32.xlu0 %v5303, 16
        %v5486 = vpop.permute.xlu0 %5485
        %5487 = vrot.lane.b32.xlu0 %v5306, 16
        %v5488 = vpop.permute.xlu0 %5487
        %5489 = vrot.lane.b32.xlu0 %v5308, 16
        %v5490 = vpop.permute.xlu0 %5489
        %5491 = vrot.lane.b32.xlu0 %v5311, 16
        %v5492 = vpop.permute.xlu0 %5491
        %5493 = vrot.lane.b32.xlu0 %v5313, 16
        %v5494 = vpop.permute.xlu0 %5493
        %5495 = vrot.lane.b32.xlu0 %v5316, 16
        %v5496 = vpop.permute.xlu0 %5495
        %5497 = vrot.lane.b32.xlu0 %v5318, 16
        %v5498 = vpop.permute.xlu0 %5497
        %5499 = vrot.lane.b32.xlu0 %v5321, 16
        %v5500 = vpop.permute.xlu0 %5499
        %5501 = vrot.lane.b32.xlu0 %v5323, 16
        %v5502 = vpop.permute.xlu0 %5501
        %5503 = vrot.lane.b32.xlu0 %v5326, 16
        %v5504 = vpop.permute.xlu0 %5503
        %5505 = vrot.lane.b32.xlu0 %v5328, 16
        %v5506 = vpop.permute.xlu0 %5505
        %5507 = vrot.lane.b32.xlu0 %v5331, 16
        %v5508 = vpop.permute.xlu0 %5507
        %5509 = vrot.lane.b32.xlu0 %v5333, 16
        %v5510 = vpop.permute.xlu0 %5509
        %5511 = vrot.lane.b32.xlu0 %v5336, 16
        %v5512 = vpop.permute.xlu0 %5511
        %5513 = vrot.lane.b32.xlu0 %v5338, 16
        %v5514 = vpop.permute.xlu0 %5513
        %5515 = vrot.lane.b32.xlu0 %v5341, 16
        %v5516 = vpop.permute.xlu0 %5515
        %5517 = vrot.lane.b32.xlu0 %v5343, 16
        %v5518 = vpop.permute.xlu0 %5517
        %5519 = vrot.lane.b32.xlu0 %v5346, 16
        %v5520 = vpop.permute.xlu0 %5519
        %5521 = vrot.lane.b32.xlu0 %v5348, 16
        %v5522 = vpop.permute.xlu0 %5521
        %5523 = vrot.lane.b32.xlu0 %v5351, 16
        %v5524 = vpop.permute.xlu0 %5523
        %5525 = vrot.lane.b32.xlu0 %v5353, 16
        %v5526 = vpop.permute.xlu0 %5525
        %5527 = vrot.lane.b32.xlu0 %v5356, 16
        %v5528 = vpop.permute.xlu0 %5527
        %5529 = vrot.lane.b32.xlu0 %v5358, 16
        %v5530 = vpop.permute.xlu0 %5529
        %5531 = vrot.lane.b32.xlu0 %v5361, 16
        %v5532 = vpop.permute.xlu0 %5531
        %5533 = vrot.lane.b32.xlu0 %v5363, 16
        %v5534 = vpop.permute.xlu0 %5533
        %5535 = vrot.lane.b32.xlu0 %v5366, 16
        %v5536 = vpop.permute.xlu0 %5535
        %5537 = vrot.lane.b32.xlu0 %v5368, 16
        %v5538 = vpop.permute.xlu0 %5537
        %5571 = vrot.lane.b32.xlu0 %v5371, 32
        %v5572 = vpop.permute.xlu0 %5571
        %5573 = vrot.lane.b32.xlu0 %v5373, 32
        %v5574 = vpop.permute.xlu0 %5573
        %5575 = vrot.lane.b32.xlu0 %v5376, 32
        %v5576 = vpop.permute.xlu0 %5575
        %5577 = vrot.lane.b32.xlu0 %v5378, 32
        %v5578 = vpop.permute.xlu0 %5577
        %5579 = vrot.lane.b32.xlu0 %v5381, 32
        %v5580 = vpop.permute.xlu0 %5579
        %5581 = vrot.lane.b32.xlu0 %v5383, 32
        %v5582 = vpop.permute.xlu0 %5581
        %5583 = vrot.lane.b32.xlu0 %v5386, 32
        %v5584 = vpop.permute.xlu0 %5583
        %5585 = vrot.lane.b32.xlu0 %v5388, 32
        %v5586 = vpop.permute.xlu0 %5585
        %5587 = vrot.lane.b32.xlu0 %v5391, 32
        %v5588 = vpop.permute.xlu0 %5587
        %5589 = vrot.lane.b32.xlu0 %v5393, 32
        %v5590 = vpop.permute.xlu0 %5589
        %5591 = vrot.lane.b32.xlu0 %v5396, 32
        %v5592 = vpop.permute.xlu0 %5591
        %5593 = vrot.lane.b32.xlu0 %v5398, 32
        %v5594 = vpop.permute.xlu0 %5593
        %5595 = vrot.lane.b32.xlu0 %v5401, 32
        %v5596 = vpop.permute.xlu0 %5595
        %5597 = vrot.lane.b32.xlu0 %v5403, 32
        %v5598 = vpop.permute.xlu0 %5597
        %5599 = vrot.lane.b32.xlu0 %v5406, 32
        %v5600 = vpop.permute.xlu0 %5599
        %5601 = vrot.lane.b32.xlu0 %v5408, 32
        %v5602 = vpop.permute.xlu0 %5601
        %5603 = vrot.lane.b32.xlu0 %v5411, 32
        %v5604 = vpop.permute.xlu0 %5603
        %5605 = vrot.lane.b32.xlu0 %v5413, 32
        %v5606 = vpop.permute.xlu0 %5605
        %5607 = vrot.lane.b32.xlu0 %v5416, 32
        %v5608 = vpop.permute.xlu0 %5607
        %5609 = vrot.lane.b32.xlu0 %v5418, 32
        %v5610 = vpop.permute.xlu0 %5609
        %5611 = vrot.lane.b32.xlu0 %v5421, 32
        %v5612 = vpop.permute.xlu0 %5611
        %5613 = vrot.lane.b32.xlu0 %v5423, 32
        %v5614 = vpop.permute.xlu0 %5613
        %5615 = vrot.lane.b32.xlu0 %v5426, 32
        %v5616 = vpop.permute.xlu0 %5615
        %5617 = vrot.lane.b32.xlu0 %v5428, 32
        %v5618 = vpop.permute.xlu0 %5617
        %5619 = vrot.lane.b32.xlu0 %v5431, 32
        %v5620 = vpop.permute.xlu0 %5619
        %5621 = vrot.lane.b32.xlu0 %v5433, 32
        %v5622 = vpop.permute.xlu0 %5621
        %5623 = vrot.lane.b32.xlu0 %v5436, 32
        %v5624 = vpop.permute.xlu0 %5623
        %5625 = vrot.lane.b32.xlu0 %v5438, 32
        %v5626 = vpop.permute.xlu0 %5625
        %5627 = vrot.lane.b32.xlu0 %v5441, 32
        %v5628 = vpop.permute.xlu0 %5627
        %5629 = vrot.lane.b32.xlu0 %v5443, 32
        %v5630 = vpop.permute.xlu0 %5629
        %5631 = vrot.lane.b32.xlu0 %v5446, 32
        %v5632 = vpop.permute.xlu0 %5631
        %5633 = vrot.lane.b32.xlu0 %v5448, 32
        %v5634 = vpop.permute.xlu0 %5633
        %5667 = vrot.lane.b32.xlu0 %v5190, 48
        %v5668 = vpop.permute.xlu0 %5667
        %5669 = vrot.lane.b32.xlu0 %v5191, 48
        %v5670 = vpop.permute.xlu0 %5669
        %5671 = vrot.lane.b32.xlu0 %v5193, 48
        %v5672 = vpop.permute.xlu0 %5671
        %5673 = vrot.lane.b32.xlu0 %v5194, 48
        %v5674 = vpop.permute.xlu0 %5673
        %5675 = vrot.lane.b32.xlu0 %v5196, 48
        %v5676 = vpop.permute.xlu0 %5675
        %5677 = vrot.lane.b32.xlu0 %v5197, 48
        %v5678 = vpop.permute.xlu0 %5677
        %5679 = vrot.lane.b32.xlu0 %v5199, 48
        %v5680 = vpop.permute.xlu0 %5679
        %5681 = vrot.lane.b32.xlu0 %v5200, 48
        %v5682 = vpop.permute.xlu0 %5681
        %5683 = vrot.lane.b32.xlu0 %v5202, 48
        %v5684 = vpop.permute.xlu0 %5683
        %5685 = vrot.lane.b32.xlu0 %v5203, 48
        %v5686 = vpop.permute.xlu0 %5685
        %5687 = vrot.lane.b32.xlu0 %v5205, 48
        %v5688 = vpop.permute.xlu0 %5687
        %5689 = vrot.lane.b32.xlu0 %v5206, 48
        %v5690 = vpop.permute.xlu0 %5689
        %5691 = vrot.lane.b32.xlu0 %v5208, 48
        %v5692 = vpop.permute.xlu0 %5691
        %5693 = vrot.lane.b32.xlu0 %v5209, 48
        %v5694 = vpop.permute.xlu0 %5693
        %5695 = vrot.lane.b32.xlu0 %v5211, 48
        %v5696 = vpop.permute.xlu0 %5695
        %5697 = vrot.lane.b32.xlu0 %v5212, 48
        %v5698 = vpop.permute.xlu0 %5697
        %5699 = vrot.lane.b32.xlu0 %v5214, 48
        %v5700 = vpop.permute.xlu0 %5699
        %5701 = vrot.lane.b32.xlu0 %v5215, 48
        %v5702 = vpop.permute.xlu0 %5701
        %5703 = vrot.lane.b32.xlu0 %v5217, 48
        %v5704 = vpop.permute.xlu0 %5703
        %5705 = vrot.lane.b32.xlu0 %v5218, 48
        %v5706 = vpop.permute.xlu0 %5705
        %5707 = vrot.lane.b32.xlu0 %v5220, 48
        %v5708 = vpop.permute.xlu0 %5707
        %5709 = vrot.lane.b32.xlu0 %v5221, 48
        %v5710 = vpop.permute.xlu0 %5709
        %5711 = vrot.lane.b32.xlu0 %v5223, 48
        %v5712 = vpop.permute.xlu0 %5711
        %5713 = vrot.lane.b32.xlu0 %v5224, 48
        %v5714 = vpop.permute.xlu0 %5713
        %5715 = vrot.lane.b32.xlu0 %v5226, 48
        %v5716 = vpop.permute.xlu0 %5715
        %5717 = vrot.lane.b32.xlu0 %v5227, 48
        %v5718 = vpop.permute.xlu0 %5717
        %5719 = vrot.lane.b32.xlu0 %v5229, 48
        %v5720 = vpop.permute.xlu0 %5719
        %5721 = vrot.lane.b32.xlu0 %v5230, 48
        %v5722 = vpop.permute.xlu0 %5721
        %5723 = vrot.lane.b32.xlu0 %v5232, 48
        %v5724 = vpop.permute.xlu0 %5723
        %5725 = vrot.lane.b32.xlu0 %v5233, 48
        %v5726 = vpop.permute.xlu0 %5725
        %5727 = vrot.lane.b32.xlu0 %v5235, 48
        %v5728 = vpop.permute.xlu0 %5727
        %5729 = vrot.lane.b32.xlu0 %v5236, 48
        %v5730 = vpop.permute.xlu0 %5729
        %5763 = vrot.lane.b32.xlu0 %v5296, 64
        %v5764 = vpop.permute.xlu0 %5763
        %5765 = vrot.lane.b32.xlu0 %v5298, 64
        %v5766 = vpop.permute.xlu0 %5765
        %5767 = vrot.lane.b32.xlu0 %v5301, 64
        %v5768 = vpop.permute.xlu0 %5767
        %5769 = vrot.lane.b32.xlu0 %v5303, 64
        %v5770 = vpop.permute.xlu0 %5769
        %5771 = vrot.lane.b32.xlu0 %v5306, 64
        %v5772 = vpop.permute.xlu0 %5771
        %5773 = vrot.lane.b32.xlu0 %v5308, 64
        %v5774 = vpop.permute.xlu0 %5773
        %5775 = vrot.lane.b32.xlu0 %v5311, 64
        %v5776 = vpop.permute.xlu0 %5775
        %5777 = vrot.lane.b32.xlu0 %v5313, 64
        %v5778 = vpop.permute.xlu0 %5777
        %5779 = vrot.lane.b32.xlu0 %v5316, 64
        %v5780 = vpop.permute.xlu0 %5779
        %5781 = vrot.lane.b32.xlu0 %v5318, 64
        %v5782 = vpop.permute.xlu0 %5781
        %5783 = vrot.lane.b32.xlu0 %v5321, 64
        %v5784 = vpop.permute.xlu0 %5783
        %5785 = vrot.lane.b32.xlu0 %v5323, 64
        %v5786 = vpop.permute.xlu0 %5785
        %5787 = vrot.lane.b32.xlu0 %v5326, 64
        %v5788 = vpop.permute.xlu0 %5787
        %5789 = vrot.lane.b32.xlu0 %v5328, 64
        %v5790 = vpop.permute.xlu0 %5789
        %5791 = vrot.lane.b32.xlu0 %v5331, 64
        %v5792 = vpop.permute.xlu0 %5791
        %5793 = vrot.lane.b32.xlu0 %v5333, 64
        %v5794 = vpop.permute.xlu0 %5793
        %5795 = vrot.lane.b32.xlu0 %v5336, 64
        %v5796 = vpop.permute.xlu0 %5795
        %5797 = vrot.lane.b32.xlu0 %v5338, 64
        %v5798 = vpop.permute.xlu0 %5797
        %5799 = vrot.lane.b32.xlu0 %v5341, 64
        %v5800 = vpop.permute.xlu0 %5799
        %5801 = vrot.lane.b32.xlu0 %v5343, 64
        %v5802 = vpop.permute.xlu0 %5801
        %5803 = vrot.lane.b32.xlu0 %v5346, 64
        %v5804 = vpop.permute.xlu0 %5803
        %5805 = vrot.lane.b32.xlu0 %v5348, 64
        %v5806 = vpop.permute.xlu0 %5805
        %5807 = vrot.lane.b32.xlu0 %v5351, 64
        %v5808 = vpop.permute.xlu0 %5807
        %5809 = vrot.lane.b32.xlu0 %v5353, 64
        %v5810 = vpop.permute.xlu0 %5809
        %5811 = vrot.lane.b32.xlu0 %v5356, 64
        %v5812 = vpop.permute.xlu0 %5811
        %5813 = vrot.lane.b32.xlu0 %v5358, 64
        %v5814 = vpop.permute.xlu0 %5813
        %5815 = vrot.lane.b32.xlu0 %v5361, 64
        %v5816 = vpop.permute.xlu0 %5815
        %5817 = vrot.lane.b32.xlu0 %v5363, 64
        %v5818 = vpop.permute.xlu0 %5817
        %5819 = vrot.lane.b32.xlu0 %v5366, 64
        %v5820 = vpop.permute.xlu0 %5819
        %5821 = vrot.lane.b32.xlu0 %v5368, 64
        %v5822 = vpop.permute.xlu0 %5821
        %5823 = vrot.lane.b32.xlu0 %v5454, 64
        %v5824 = vpop.permute.xlu0 %5823
        %5825 = vrot.lane.b32.xlu0 %v5456, 64
        %v5826 = vpop.permute.xlu0 %5825
        %5859 = vrot.lane.b32.xlu0 %v5376, 80
        %v5860 = vpop.permute.xlu0 %5859
        %5861 = vrot.lane.b32.xlu0 %v5378, 80
        %v5862 = vpop.permute.xlu0 %5861
        %5863 = vrot.lane.b32.xlu0 %v5381, 80
        %v5864 = vpop.permute.xlu0 %5863
        %5865 = vrot.lane.b32.xlu0 %v5383, 80
        %v5866 = vpop.permute.xlu0 %5865
        %5867 = vrot.lane.b32.xlu0 %v5386, 80
        %v5868 = vpop.permute.xlu0 %5867
        %5869 = vrot.lane.b32.xlu0 %v5388, 80
        %v5870 = vpop.permute.xlu0 %5869
        %5871 = vrot.lane.b32.xlu0 %v5391, 80
        %v5872 = vpop.permute.xlu0 %5871
        %5873 = vrot.lane.b32.xlu0 %v5393, 80
        %v5874 = vpop.permute.xlu0 %5873
        %5875 = vrot.lane.b32.xlu0 %v5396, 80
        %v5876 = vpop.permute.xlu0 %5875
        %5877 = vrot.lane.b32.xlu0 %v5398, 80
        %v5878 = vpop.permute.xlu0 %5877
        %5879 = vrot.lane.b32.xlu0 %v5401, 80
        %v5880 = vpop.permute.xlu0 %5879
        %5881 = vrot.lane.b32.xlu0 %v5403, 80
        %v5882 = vpop.permute.xlu0 %5881
        %5883 = vrot.lane.b32.xlu0 %v5406, 80
        %v5884 = vpop.permute.xlu0 %5883
        %5885 = vrot.lane.b32.xlu0 %v5408, 80
        %v5886 = vpop.permute.xlu0 %5885
        %5887 = vrot.lane.b32.xlu0 %v5411, 80
        %v5888 = vpop.permute.xlu0 %5887
        %5889 = vrot.lane.b32.xlu0 %v5413, 80
        %v5890 = vpop.permute.xlu0 %5889
        %5891 = vrot.lane.b32.xlu0 %v5416, 80
        %v5892 = vpop.permute.xlu0 %5891
        %5893 = vrot.lane.b32.xlu0 %v5418, 80
        %v5894 = vpop.permute.xlu0 %5893
        %5895 = vrot.lane.b32.xlu0 %v5421, 80
        %v5896 = vpop.permute.xlu0 %5895
        %5897 = vrot.lane.b32.xlu0 %v5423, 80
        %v5898 = vpop.permute.xlu0 %5897
        %5899 = vrot.lane.b32.xlu0 %v5426, 80
        %v5900 = vpop.permute.xlu0 %5899
        %5901 = vrot.lane.b32.xlu0 %v5428, 80
        %v5902 = vpop.permute.xlu0 %5901
        %5903 = vrot.lane.b32.xlu0 %v5431, 80
        %v5904 = vpop.permute.xlu0 %5903
        %5905 = vrot.lane.b32.xlu0 %v5433, 80
        %v5906 = vpop.permute.xlu0 %5905
        %5907 = vrot.lane.b32.xlu0 %v5436, 80
        %v5908 = vpop.permute.xlu0 %5907
        %5909 = vrot.lane.b32.xlu0 %v5438, 80
        %v5910 = vpop.permute.xlu0 %5909
        %5911 = vrot.lane.b32.xlu0 %v5441, 80
        %v5912 = vpop.permute.xlu0 %5911
        %5913 = vrot.lane.b32.xlu0 %v5443, 80
        %v5914 = vpop.permute.xlu0 %5913
        %5915 = vrot.lane.b32.xlu0 %v5446, 80
        %v5916 = vpop.permute.xlu0 %5915
        %5917 = vrot.lane.b32.xlu0 %v5448, 80
        %v5918 = vpop.permute.xlu0 %5917
        %5919 = vrot.lane.b32.xlu0 %v5459, 80
        %v5920 = vpop.permute.xlu0 %5919
        %5921 = vrot.lane.b32.xlu0 %v5461, 80
        %v5922 = vpop.permute.xlu0 %5921
        %5955 = vrot.lane.b32.xlu0 %v5193, 96
        %v5956 = vpop.permute.xlu0 %5955
        %5957 = vrot.lane.b32.xlu0 %v5194, 96
        %v5958 = vpop.permute.xlu0 %5957
        %5959 = vrot.lane.b32.xlu0 %v5196, 96
        %v5960 = vpop.permute.xlu0 %5959
        %5961 = vrot.lane.b32.xlu0 %v5197, 96
        %v5962 = vpop.permute.xlu0 %5961
        %5963 = vrot.lane.b32.xlu0 %v5199, 96
        %v5964 = vpop.permute.xlu0 %5963
        %5965 = vrot.lane.b32.xlu0 %v5200, 96
        %v5966 = vpop.permute.xlu0 %5965
        %5967 = vrot.lane.b32.xlu0 %v5202, 96
        %v5968 = vpop.permute.xlu0 %5967
        %5969 = vrot.lane.b32.xlu0 %v5203, 96
        %v5970 = vpop.permute.xlu0 %5969
        %5971 = vrot.lane.b32.xlu0 %v5205, 96
        %v5972 = vpop.permute.xlu0 %5971
        %5973 = vrot.lane.b32.xlu0 %v5206, 96
        %v5974 = vpop.permute.xlu0 %5973
        %5975 = vrot.lane.b32.xlu0 %v5208, 96
        %v5976 = vpop.permute.xlu0 %5975
        %5977 = vrot.lane.b32.xlu0 %v5209, 96
        %v5978 = vpop.permute.xlu0 %5977
        %5979 = vrot.lane.b32.xlu0 %v5211, 96
        %v5980 = vpop.permute.xlu0 %5979
        %5981 = vrot.lane.b32.xlu0 %v5212, 96
        %v5982 = vpop.permute.xlu0 %5981
        %5983 = vrot.lane.b32.xlu0 %v5214, 96
        %v5984 = vpop.permute.xlu0 %5983
        %5985 = vrot.lane.b32.xlu0 %v5215, 96
        %v5986 = vpop.permute.xlu0 %5985
        %5987 = vrot.lane.b32.xlu0 %v5217, 96
        %v5988 = vpop.permute.xlu0 %5987
        %5989 = vrot.lane.b32.xlu0 %v5218, 96
        %v5990 = vpop.permute.xlu0 %5989
        %5991 = vrot.lane.b32.xlu0 %v5220, 96
        %v5992 = vpop.permute.xlu0 %5991
        %5993 = vrot.lane.b32.xlu0 %v5221, 96
        %v5994 = vpop.permute.xlu0 %5993
        %5995 = vrot.lane.b32.xlu0 %v5223, 96
        %v5996 = vpop.permute.xlu0 %5995
        %5997 = vrot.lane.b32.xlu0 %v5224, 96
        %v5998 = vpop.permute.xlu0 %5997
        %5999 = vrot.lane.b32.xlu0 %v5226, 96
        %v6000 = vpop.permute.xlu0 %5999
        %6001 = vrot.lane.b32.xlu0 %v5227, 96
        %v6002 = vpop.permute.xlu0 %6001
        %6003 = vrot.lane.b32.xlu0 %v5229, 96
        %v6004 = vpop.permute.xlu0 %6003
        %6005 = vrot.lane.b32.xlu0 %v5230, 96
        %v6006 = vpop.permute.xlu0 %6005
        %6007 = vrot.lane.b32.xlu0 %v5232, 96
        %v6008 = vpop.permute.xlu0 %6007
        %6009 = vrot.lane.b32.xlu0 %v5233, 96
        %v6010 = vpop.permute.xlu0 %6009
        %6011 = vrot.lane.b32.xlu0 %v5235, 96
        %v6012 = vpop.permute.xlu0 %6011
        %6013 = vrot.lane.b32.xlu0 %v5236, 96
        %v6014 = vpop.permute.xlu0 %6013
        %6015 = vrot.lane.b32.xlu0 %v5238, 96
        %v6016 = vpop.permute.xlu0 %6015
        %6017 = vrot.lane.b32.xlu0 %v5239, 96
        %v6018 = vpop.permute.xlu0 %6017
        %6051 = vrot.lane.b32.xlu0 %v5301, 112
        %v6052 = vpop.permute.xlu0 %6051
        %6053 = vrot.lane.b32.xlu0 %v5303, 112
        %v6054 = vpop.permute.xlu0 %6053
        %6055 = vrot.lane.b32.xlu0 %v5306, 112
        %v6056 = vpop.permute.xlu0 %6055
        %6057 = vrot.lane.b32.xlu0 %v5308, 112
        %v6058 = vpop.permute.xlu0 %6057
        %6059 = vrot.lane.b32.xlu0 %v5311, 112
        %v6060 = vpop.permute.xlu0 %6059
        %6061 = vrot.lane.b32.xlu0 %v5313, 112
        %v6062 = vpop.permute.xlu0 %6061
        %6063 = vrot.lane.b32.xlu0 %v5316, 112
        %v6064 = vpop.permute.xlu0 %6063
        %6065 = vrot.lane.b32.xlu0 %v5318, 112
        %v6066 = vpop.permute.xlu0 %6065
        %6067 = vrot.lane.b32.xlu0 %v5321, 112
        %v6068 = vpop.permute.xlu0 %6067
        %6069 = vrot.lane.b32.xlu0 %v5323, 112
        %v6070 = vpop.permute.xlu0 %6069
        %6071 = vrot.lane.b32.xlu0 %v5326, 112
        %v6072 = vpop.permute.xlu0 %6071
        %6073 = vrot.lane.b32.xlu0 %v5328, 112
        %v6074 = vpop.permute.xlu0 %6073
        %6075 = vrot.lane.b32.xlu0 %v5331, 112
        %v6076 = vpop.permute.xlu0 %6075
        %6077 = vrot.lane.b32.xlu0 %v5333, 112
        %v6078 = vpop.permute.xlu0 %6077
        %6079 = vrot.lane.b32.xlu0 %v5336, 112
        %v6080 = vpop.permute.xlu0 %6079
        %6081 = vrot.lane.b32.xlu0 %v5338, 112
        %v6082 = vpop.permute.xlu0 %6081
        %6083 = vrot.lane.b32.xlu0 %v5341, 112
        %v6084 = vpop.permute.xlu0 %6083
        %6085 = vrot.lane.b32.xlu0 %v5343, 112
        %v6086 = vpop.permute.xlu0 %6085
        %6087 = vrot.lane.b32.xlu0 %v5346, 112
        %v6088 = vpop.permute.xlu0 %6087
        %6089 = vrot.lane.b32.xlu0 %v5348, 112
        %v6090 = vpop.permute.xlu0 %6089
        %6091 = vrot.lane.b32.xlu0 %v5351, 112
        %v6092 = vpop.permute.xlu0 %6091
        %6093 = vrot.lane.b32.xlu0 %v5353, 112
        %v6094 = vpop.permute.xlu0 %6093
        %6095 = vrot.lane.b32.xlu0 %v5356, 112
        %v6096 = vpop.permute.xlu0 %6095
        %6097 = vrot.lane.b32.xlu0 %v5358, 112
        %v6098 = vpop.permute.xlu0 %6097
        %6099 = vrot.lane.b32.xlu0 %v5361, 112
        %v6100 = vpop.permute.xlu0 %6099
        %6101 = vrot.lane.b32.xlu0 %v5363, 112
        %v6102 = vpop.permute.xlu0 %6101
        %6103 = vrot.lane.b32.xlu0 %v5366, 112
        %v6104 = vpop.permute.xlu0 %6103
        %6105 = vrot.lane.b32.xlu0 %v5368, 112
        %v6106 = vpop.permute.xlu0 %6105
        %6107 = vrot.lane.b32.xlu0 %v5454, 112
        %v6108 = vpop.permute.xlu0 %6107
        %6109 = vrot.lane.b32.xlu0 %v5456, 112
        %v6110 = vpop.permute.xlu0 %6109
        %6111 = vrot.lane.b32.xlu0 %v5467, 112
        %v6112 = vpop.permute.xlu0 %6111
        %6113 = vrot.lane.b32.xlu0 %v5469, 112
        %v6114 = vpop.permute.xlu0 %6113
        %v6147 = vsel %vm319, %v5187, %v5476
        %v6148 = vsel %vm319, %v5188, %v5478
        %v6149 = vsel %vm319, %v5190, %v5480
        %v6150 = vsel %vm319, %v5191, %v5482
        %v6151 = vsel %vm319, %v5193, %v5484
        %v6152 = vsel %vm319, %v5194, %v5486
        %v6153 = vsel %vm319, %v5196, %v5488
        %v6154 = vsel %vm319, %v5197, %v5490
        %v6155 = vsel %vm319, %v5199, %v5492
        %v6156 = vsel %vm319, %v5200, %v5494
        %v6157 = vsel %vm319, %v5202, %v5496
        %v6158 = vsel %vm319, %v5203, %v5498
        %v6159 = vsel %vm319, %v5205, %v5500
        %v6160 = vsel %vm319, %v5206, %v5502
        %v6161 = vsel %vm319, %v5208, %v5504
        %v6162 = vsel %vm319, %v5209, %v5506
        %v6163 = vsel %vm319, %v5211, %v5508
        %v6164 = vsel %vm319, %v5212, %v5510
        %v6165 = vsel %vm319, %v5214, %v5512
        %v6166 = vsel %vm319, %v5215, %v5514
        %v6167 = vsel %vm319, %v5217, %v5516
        %v6168 = vsel %vm319, %v5218, %v5518
        %v6169 = vsel %vm319, %v5220, %v5520
        %v6170 = vsel %vm319, %v5221, %v5522
        %v6171 = vsel %vm319, %v5223, %v5524
        %v6172 = vsel %vm319, %v5224, %v5526
        %v6173 = vsel %vm319, %v5226, %v5528
        %v6174 = vsel %vm319, %v5227, %v5530
        %v6175 = vsel %vm319, %v5229, %v5532
        %v6176 = vsel %vm319, %v5230, %v5534
        %v6177 = vsel %vm319, %v5232, %v5536
        %v6178 = vsel %vm319, %v5233, %v5538
        %v6179 = vsel %vm1453, %v6147, %v5572
        %v6180 = vsel %vm1453, %v6148, %v5574
        %v6181 = vsel %vm1453, %v6149, %v5576
        %v6182 = vsel %vm1453, %v6150, %v5578
        %v6183 = vsel %vm1453, %v6151, %v5580
        %v6184 = vsel %vm1453, %v6152, %v5582
        %v6185 = vsel %vm1453, %v6153, %v5584
        %v6186 = vsel %vm1453, %v6154, %v5586
        %v6187 = vsel %vm1453, %v6155, %v5588
        %v6188 = vsel %vm1453, %v6156, %v5590
        %v6189 = vsel %vm1453, %v6157, %v5592
        %v6190 = vsel %vm1453, %v6158, %v5594
        %v6191 = vsel %vm1453, %v6159, %v5596
        %v6192 = vsel %vm1453, %v6160, %v5598
        %v6193 = vsel %vm1453, %v6161, %v5600
        %v6194 = vsel %vm1453, %v6162, %v5602
        %v6195 = vsel %vm1453, %v6163, %v5604
        %v6196 = vsel %vm1453, %v6164, %v5606
        %v6197 = vsel %vm1453, %v6165, %v5608
        %v6198 = vsel %vm1453, %v6166, %v5610
        %v6199 = vsel %vm1453, %v6167, %v5612
        %v6200 = vsel %vm1453, %v6168, %v5614
        %v6201 = vsel %vm1453, %v6169, %v5616
        %v6202 = vsel %vm1453, %v6170, %v5618
        %v6203 = vsel %vm1453, %v6171, %v5620
        %v6204 = vsel %vm1453, %v6172, %v5622
        %v6205 = vsel %vm1453, %v6173, %v5624
        %v6206 = vsel %vm1453, %v6174, %v5626
        %v6207 = vsel %vm1453, %v6175, %v5628
        %v6208 = vsel %vm1453, %v6176, %v5630
        %v6209 = vsel %vm1453, %v6177, %v5632
        %v6210 = vsel %vm1453, %v6178, %v5634
        %v6211 = vsel %vm1486, %v6179, %v5668
        %v6212 = vsel %vm1486, %v6180, %v5670
        %v6213 = vsel %vm1486, %v6181, %v5672
        %v6214 = vsel %vm1486, %v6182, %v5674
        %v6215 = vsel %vm1486, %v6183, %v5676
        %v6216 = vsel %vm1486, %v6184, %v5678
        %v6217 = vsel %vm1486, %v6185, %v5680
        %v6218 = vsel %vm1486, %v6186, %v5682
        %v6219 = vsel %vm1486, %v6187, %v5684
        %v6220 = vsel %vm1486, %v6188, %v5686
        %v6221 = vsel %vm1486, %v6189, %v5688
        %v6222 = vsel %vm1486, %v6190, %v5690
        %v6223 = vsel %vm1486, %v6191, %v5692
        %v6224 = vsel %vm1486, %v6192, %v5694
        %v6225 = vsel %vm1486, %v6193, %v5696
        %v6226 = vsel %vm1486, %v6194, %v5698
        %v6227 = vsel %vm1486, %v6195, %v5700
        %v6228 = vsel %vm1486, %v6196, %v5702
        %v6229 = vsel %vm1486, %v6197, %v5704
        %v6230 = vsel %vm1486, %v6198, %v5706
        %v6231 = vsel %vm1486, %v6199, %v5708
        %v6232 = vsel %vm1486, %v6200, %v5710
        %v6233 = vsel %vm1486, %v6201, %v5712
        %v6234 = vsel %vm1486, %v6202, %v5714
        %v6235 = vsel %vm1486, %v6203, %v5716
        %v6236 = vsel %vm1486, %v6204, %v5718
        %v6237 = vsel %vm1486, %v6205, %v5720
        %v6238 = vsel %vm1486, %v6206, %v5722
        %v6239 = vsel %vm1486, %v6207, %v5724
        %v6240 = vsel %vm1486, %v6208, %v5726
        %v6241 = vsel %vm1486, %v6209, %v5728
        %v6242 = vsel %vm1486, %v6210, %v5730
        %v6243 = vsel %vm1519, %v6211, %v5764
        %v6244 = vsel %vm1519, %v6212, %v5766
        %v6245 = vsel %vm1519, %v6213, %v5768
        %v6246 = vsel %vm1519, %v6214, %v5770
        %v6247 = vsel %vm1519, %v6215, %v5772
        %v6248 = vsel %vm1519, %v6216, %v5774
        %v6249 = vsel %vm1519, %v6217, %v5776
        %v6250 = vsel %vm1519, %v6218, %v5778
        %v6251 = vsel %vm1519, %v6219, %v5780
        %v6252 = vsel %vm1519, %v6220, %v5782
        %v6253 = vsel %vm1519, %v6221, %v5784
        %v6254 = vsel %vm1519, %v6222, %v5786
        %v6255 = vsel %vm1519, %v6223, %v5788
        %v6256 = vsel %vm1519, %v6224, %v5790
        %v6257 = vsel %vm1519, %v6225, %v5792
        %v6258 = vsel %vm1519, %v6226, %v5794
        %v6259 = vsel %vm1519, %v6227, %v5796
        %v6260 = vsel %vm1519, %v6228, %v5798
        %v6261 = vsel %vm1519, %v6229, %v5800
        %v6262 = vsel %vm1519, %v6230, %v5802
        %v6263 = vsel %vm1519, %v6231, %v5804
        %v6264 = vsel %vm1519, %v6232, %v5806
        %v6265 = vsel %vm1519, %v6233, %v5808
        %v6266 = vsel %vm1519, %v6234, %v5810
        %v6267 = vsel %vm1519, %v6235, %v5812
        %v6268 = vsel %vm1519, %v6236, %v5814
        %v6269 = vsel %vm1519, %v6237, %v5816
        %v6270 = vsel %vm1519, %v6238, %v5818
        %v6271 = vsel %vm1519, %v6239, %v5820
        %v6272 = vsel %vm1519, %v6240, %v5822
        %v6273 = vsel %vm1519, %v6241, %v5824
        %v6274 = vsel %vm1519, %v6242, %v5826
        %v6275 = vsel %vm1552, %v6243, %v5860
        %v6276 = vsel %vm1552, %v6244, %v5862
        %v6277 = vsel %vm1552, %v6245, %v5864
        %v6278 = vsel %vm1552, %v6246, %v5866
        %v6279 = vsel %vm1552, %v6247, %v5868
        %v6280 = vsel %vm1552, %v6248, %v5870
        %v6281 = vsel %vm1552, %v6249, %v5872
        %v6282 = vsel %vm1552, %v6250, %v5874
        %v6283 = vsel %vm1552, %v6251, %v5876
        %v6284 = vsel %vm1552, %v6252, %v5878
        %v6285 = vsel %vm1552, %v6253, %v5880
        %v6286 = vsel %vm1552, %v6254, %v5882
        %v6287 = vsel %vm1552, %v6255, %v5884
        %v6288 = vsel %vm1552, %v6256, %v5886
        %v6289 = vsel %vm1552, %v6257, %v5888
        %v6290 = vsel %vm1552, %v6258, %v5890
        %v6291 = vsel %vm1552, %v6259, %v5892
        %v6292 = vsel %vm1552, %v6260, %v5894
        %v6293 = vsel %vm1552, %v6261, %v5896
        %v6294 = vsel %vm1552, %v6262, %v5898
        %v6295 = vsel %vm1552, %v6263, %v5900
        %v6296 = vsel %vm1552, %v6264, %v5902
        %v6297 = vsel %vm1552, %v6265, %v5904
        %v6298 = vsel %vm1552, %v6266, %v5906
        %v6299 = vsel %vm1552, %v6267, %v5908
        %v6300 = vsel %vm1552, %v6268, %v5910
        %v6301 = vsel %vm1552, %v6269, %v5912
        %v6302 = vsel %vm1552, %v6270, %v5914
        %v6303 = vsel %vm1552, %v6271, %v5916
        %v6304 = vsel %vm1552, %v6272, %v5918
        %v6305 = vsel %vm1552, %v6273, %v5920
        %v6306 = vsel %vm1552, %v6274, %v5922
        %v6307 = vsel %vm1585, %v6275, %v5956
        %v6308 = vsel %vm1585, %v6276, %v5958
        %v6309 = vsel %vm1585, %v6277, %v5960
        %v6310 = vsel %vm1585, %v6278, %v5962
        %v6311 = vsel %vm1585, %v6279, %v5964
        %v6312 = vsel %vm1585, %v6280, %v5966
        %v6313 = vsel %vm1585, %v6281, %v5968
        %v6314 = vsel %vm1585, %v6282, %v5970
        %v6315 = vsel %vm1585, %v6283, %v5972
        %v6316 = vsel %vm1585, %v6284, %v5974
        %v6317 = vsel %vm1585, %v6285, %v5976
        %v6318 = vsel %vm1585, %v6286, %v5978
        %v6319 = vsel %vm1585, %v6287, %v5980
        %v6320 = vsel %vm1585, %v6288, %v5982
        %v6321 = vsel %vm1585, %v6289, %v5984
        %v6322 = vsel %vm1585, %v6290, %v5986
        %v6323 = vsel %vm1585, %v6291, %v5988
        %v6324 = vsel %vm1585, %v6292, %v5990
        %v6325 = vsel %vm1585, %v6293, %v5992
        %v6326 = vsel %vm1585, %v6294, %v5994
        %v6327 = vsel %vm1585, %v6295, %v5996
        %v6328 = vsel %vm1585, %v6296, %v5998
        %v6329 = vsel %vm1585, %v6297, %v6000
        %v6330 = vsel %vm1585, %v6298, %v6002
        %v6331 = vsel %vm1585, %v6299, %v6004
        %v6332 = vsel %vm1585, %v6300, %v6006
        %v6333 = vsel %vm1585, %v6301, %v6008
        %v6334 = vsel %vm1585, %v6302, %v6010
        %v6335 = vsel %vm1585, %v6303, %v6012
        %v6336 = vsel %vm1585, %v6304, %v6014
        %v6337 = vsel %vm1585, %v6305, %v6016
        %v6338 = vsel %vm1585, %v6306, %v6018
        %v6339 = vsel %vm1618, %v6307, %v6052
        %v6340 = vsel %vm1618, %v6308, %v6054
        %v6341 = vsel %vm1618, %v6309, %v6056
        %v6342 = vsel %vm1618, %v6310, %v6058
        %v6343 = vsel %vm1618, %v6311, %v6060
        %v6344 = vsel %vm1618, %v6312, %v6062
        %v6345 = vsel %vm1618, %v6313, %v6064
        %v6346 = vsel %vm1618, %v6314, %v6066
        %v6347 = vsel %vm1618, %v6315, %v6068
        %v6348 = vsel %vm1618, %v6316, %v6070
        %v6349 = vsel %vm1618, %v6317, %v6072
        %v6350 = vsel %vm1618, %v6318, %v6074
        %v6351 = vsel %vm1618, %v6319, %v6076
        %v6352 = vsel %vm1618, %v6320, %v6078
        %v6353 = vsel %vm1618, %v6321, %v6080
        %v6354 = vsel %vm1618, %v6322, %v6082
        %v6355 = vsel %vm1618, %v6323, %v6084
        %v6356 = vsel %vm1618, %v6324, %v6086
        %v6357 = vsel %vm1618, %v6325, %v6088
        %v6358 = vsel %vm1618, %v6326, %v6090
        %v6359 = vsel %vm1618, %v6327, %v6092
        %v6360 = vsel %vm1618, %v6328, %v6094
        %v6361 = vsel %vm1618, %v6329, %v6096
        %v6362 = vsel %vm1618, %v6330, %v6098
        %v6363 = vsel %vm1618, %v6331, %v6100
        %v6364 = vsel %vm1618, %v6332, %v6102
        %v6365 = vsel %vm1618, %v6333, %v6104
        %v6366 = vsel %vm1618, %v6334, %v6106
        %v6367 = vsel %vm1618, %v6335, %v6108
        %v6368 = vsel %vm1618, %v6336, %v6110
        %v6369 = vsel %vm1618, %v6337, %v6112
        %v6370 = vsel %vm1618, %v6338, %v6114
        %v6372 = vlaneseq
        %v6373 = vshrl.u32 %v6372, 7
        %v6374 = vsub.s32 0, %v6373
        %v6375 = vrot.slane %v5186, %v6374
        %v6377 = vsel %vm319, %v5381, 0
        %v6379 = vsel %vm319, %v5383, 0
        %v6381 = vsel %vm319, %v5386, 0
        %v6383 = vsel %vm319, %v5388, 0
        %v6385 = vsel %vm319, %v5391, 0
        %v6387 = vsel %vm319, %v5393, 0
        %v6389 = vsel %vm319, %v5396, 0
        %v6391 = vsel %vm319, %v5398, 0
        %v6393 = vsel %vm319, %v5401, 0
        %v6395 = vsel %vm319, %v5403, 0
        %v6397 = vsel %vm319, %v5406, 0
        %v6399 = vsel %vm319, %v5408, 0
        %v6401 = vsel %vm319, %v5411, 0
        %v6403 = vsel %vm319, %v5413, 0
        %v6405 = vsel %vm319, %v5416, 0
        %v6407 = vsel %vm319, %v5418, 0
        %v6409 = vsel %vm319, %v5421, 0
        %v6411 = vsel %vm319, %v5423, 0
        %v6413 = vsel %vm319, %v5426, 0
        %v6415 = vsel %vm319, %v5428, 0
        %v6417 = vsel %vm319, %v5431, 0
        %v6419 = vsel %vm319, %v5433, 0
        %v6421 = vsel %vm319, %v5436, 0
        %v6423 = vsel %vm319, %v5438, 0
        %v6425 = vsel %vm319, %v5441, 0
        %v6427 = vsel %vm319, %v5443, 0
        %v6429 = vsel %vm319, %v5446, 0
        %v6431 = vsel %vm319, %v5448, 0
        %v6433 = vsel %vm319, %v5459, 0
        %v6435 = vsel %vm319, %v5461, 0
        %v6437 = vsel %vm319, %v5472, 0
        %v6439 = vsel %vm319, %v5474, 0
        %6441 = vmatprep.subr.mxu0 0.0
        %6442 = vmatpush1.msra.mxu0 %v5168
        %6443 = vmatprep.subr.mxu0 0.0
        %6444 = vmatpush1.msra.mxu0 %v5169
        %6445 = vmatprep.subr.mxu0 0.0
        %6446 = vmatpush1.msra.mxu0 %v5170
        %6447 = vmatprep.subr.mxu0 0.0
        %6448 = vmatpush1.msra.mxu0 %v5171
        %6449 = vmatprep.subr.mxu0 0.0
        %6450 = vmatpush1.msra.mxu0 %v5172
        %6451 = vmatprep.subr.mxu0 0.0
        %6452 = vmatpush1.msra.mxu0 %v5173
        %6453 = vmatprep.subr.mxu0 0.0
        %6454 = vmatpush1.msra.mxu0 %v5174
        %6455 = vmatprep.subr.mxu0 0.0
        %6456 = vmatpush1.msra.mxu0 %v5175
        %6457 = vmatprep.subr.mxu0 0.0
        %6458 = vmatpush1.msra.mxu0 %v5176
        %6459 = vmatprep.subr.mxu0 0.0
        %6460 = vmatpush1.msra.mxu0 %v5177
        %6461 = vmatprep.subr.mxu0 0.0
        %6462 = vmatpush1.msra.mxu0 %v5178
        %6463 = vmatprep.subr.mxu0 0.0
        %6464 = vmatpush1.msra.mxu0 %v5179
        %6465 = vmatprep.subr.mxu0 0.0
        %6466 = vmatpush1.msra.mxu0 %v5180
        %6467 = vmatprep.subr.mxu0 0.0
        %6468 = vmatpush1.msra.mxu0 %v5181
        %6469 = vmatprep.subr.mxu0 0.0
        %6470 = vmatpush1.msra.mxu0 %v5182
        %6471 = vmatprep.subr.mxu0 0.0
        %6472 = vmatpush1.msra.mxu0 %v5183
        %6473 = vmatprep.subr.mxu0 0.0
        %6474 = vmatpush1.msra.mxu0 %v5184
        %6475 = vmatprep.subr.mxu0 0.0
        %6476 = vmatpush1.msra.mxu0 %v5185
        %6477 = vmatprep.subr.mxu0 0.0
        %6478 = vmatpush1.msra.mxu0 0.0
        %6479 = vmatprep.subr.mxu0 0.0
        %6480 = vmatpush1.msra.mxu0 0.0
        %6481 = vmatprep.subr.mxu0 0.0
        %6482 = vmatpush1.msra.mxu0 0.0
        %6483 = vmatprep.subr.mxu0 0.0
        %6484 = vmatpush1.msra.mxu0 0.0
        %6485 = vmatprep.subr.mxu0 0.0
        %6486 = vmatpush1.msra.mxu0 0.0
        %6487 = vmatprep.subr.mxu0 0.0
        %6488 = vmatpush1.msra.mxu0 0.0
        %6489 = vmatprep.subr.mxu0 0.0
        %6490 = vmatpush1.msra.mxu0 0.0
        %6491 = vmatprep.subr.mxu0 0.0
        %6492 = vmatpush1.msra.mxu0 0.0
        %6493 = vmatprep.subr.mxu0 0.0
        %6494 = vmatpush1.msra.mxu0 0.0
        %6495 = vmatprep.subr.mxu0 0.0
        %6496 = vmatpush1.msra.mxu0 0.0
        %6497 = vmatprep.subr.mxu0 0.0
        %6498 = vmatpush1.msra.mxu0 0.0
        %6499 = vmatprep.subr.mxu0 0.0
        %6500 = vmatpush1.msra.mxu0 0.0
        %6501 = vmatprep.subr.mxu0 0.0
        %6502 = vmatpush1.msra.mxu0 0.0
        %6503 = vmatprep.subr.mxu0 0.0
        %6504 = vmatpush1.msra.mxu0 0.0
        %6505 = vmatprep.mubr.f32.mxu0 %v6377
        %6506 = vmatmul.mubr.f32.gmra.mrb[0].mxu0 %v6339
        %v6507 = vpop.f32.mrb[0].mxu0
        %v6508 = vadd.f32 %v6375, %v6507
        %v6509 = vpop.f32.mrb[0].mxu0
        %6510 = vmatprep.mubr.f32.mxu0 %v6379
        %6511 = vmatmul.mubr.f32.gmra.mrb[0].mxu0 %v6340
        %v6512 = vpop.f32.mrb[0].mxu0
        %v6513 = vadd.f32 %v6375, %v6512
        %v6514 = vpop.f32.mrb[0].mxu0
        %6515 = vmatprep.mubr.f32.mxu0 %v6381
        %6516 = vmatmul.mubr.f32.gmra.mrb[0].mxu0 %v6341
        %v6517 = vpop.f32.mrb[0].mxu0
        %v6518 = vadd.f32 %v6375, %v6517
        %v6519 = vpop.f32.mrb[0].mxu0
        %6520 = vmatprep.mubr.f32.mxu0 %v6383
        %6521 = vmatmul.mubr.f32.gmra.mrb[0].mxu0 %v6342
        %v6522 = vpop.f32.mrb[0].mxu0
        %v6523 = vadd.f32 %v6375, %v6522
        %v6524 = vpop.f32.mrb[0].mxu0
        %6525 = vmatprep.mubr.f32.mxu0 %v6385
        %6526 = vmatmul.mubr.f32.gmra.mrb[0].mxu0 %v6343
        %v6527 = vpop.f32.mrb[0].mxu0
        %v6528 = vadd.f32 %v6375, %v6527
        %v6529 = vpop.f32.mrb[0].mxu0
        %6530 = vmatprep.mubr.f32.mxu0 %v6387
        %6531 = vmatmul.mubr.f32.gmra.mrb[0].mxu0 %v6344
        %v6532 = vpop.f32.mrb[0].mxu0
        %v6533 = vadd.f32 %v6375, %v6532
        %v6534 = vpop.f32.mrb[0].mxu0
        %6535 = vmatprep.mubr.f32.mxu0 %v6389
        %6536 = vmatmul.mubr.f32.gmra.mrb[0].mxu0 %v6345
        %v6537 = vpop.f32.mrb[0].mxu0
        %v6538 = vadd.f32 %v6375, %v6537
        %v6539 = vpop.f32.mrb[0].mxu0
        %6540 = vmatprep.mubr.f32.mxu0 %v6391
        %6541 = vmatmul.mubr.f32.gmra.mrb[0].mxu0 %v6346
        %v6542 = vpop.f32.mrb[0].mxu0
        %v6543 = vadd.f32 %v6375, %v6542
        %v6544 = vpop.f32.mrb[0].mxu0
        %6545 = vmatprep.mubr.f32.mxu0 %v6393
        %6546 = vmatmul.mubr.f32.gmra.mrb[0].mxu0 %v6347
        %v6547 = vpop.f32.mrb[0].mxu0
        %v6548 = vadd.f32 %v6375, %v6547
        %v6549 = vpop.f32.mrb[0].mxu0
        %6550 = vmatprep.mubr.f32.mxu0 %v6395
        %6551 = vmatmul.mubr.f32.gmra.mrb[0].mxu0 %v6348
        %v6552 = vpop.f32.mrb[0].mxu0
        %v6553 = vadd.f32 %v6375, %v6552
        %v6554 = vpop.f32.mrb[0].mxu0
        %6555 = vmatprep.mubr.f32.mxu0 %v6397
        %6556 = vmatmul.mubr.f32.gmra.mrb[0].mxu0 %v6349
        %v6557 = vpop.f32.mrb[0].mxu0
        %v6558 = vadd.f32 %v6375, %v6557
        %v6559 = vpop.f32.mrb[0].mxu0
        %6560 = vmatprep.mubr.f32.mxu0 %v6399
        %6561 = vmatmul.mubr.f32.gmra.mrb[0].mxu0 %v6350
        %v6562 = vpop.f32.mrb[0].mxu0
        %v6563 = vadd.f32 %v6375, %v6562
        %v6564 = vpop.f32.mrb[0].mxu0
        %6565 = vmatprep.mubr.f32.mxu0 %v6401
        %6566 = vmatmul.mubr.f32.gmra.mrb[0].mxu0 %v6351
        %v6567 = vpop.f32.mrb[0].mxu0
        %v6568 = vadd.f32 %v6375, %v6567
        %v6569 = vpop.f32.mrb[0].mxu0
        %6570 = vmatprep.mubr.f32.mxu0 %v6403
        %6571 = vmatmul.mubr.f32.gmra.mrb[0].mxu0 %v6352
        %v6572 = vpop.f32.mrb[0].mxu0
        %v6573 = vadd.f32 %v6375, %v6572
        %v6574 = vpop.f32.mrb[0].mxu0
        %6575 = vmatprep.mubr.f32.mxu0 %v6405
        %6576 = vmatmul.mubr.f32.gmra.mrb[0].mxu0 %v6353
        %v6577 = vpop.f32.mrb[0].mxu0
        %v6578 = vadd.f32 %v6375, %v6577
        %v6579 = vpop.f32.mrb[0].mxu0
        %6580 = vmatprep.mubr.f32.mxu0 %v6407
        %6581 = vmatmul.mubr.f32.gmra.mrb[0].mxu0 %v6354
        %v6582 = vpop.f32.mrb[0].mxu0
        %v6583 = vadd.f32 %v6375, %v6582
        %v6584 = vpop.f32.mrb[0].mxu0
        %6585 = vmatprep.mubr.f32.mxu0 %v6409
        %6586 = vmatmul.mubr.f32.gmra.mrb[0].mxu0 %v6355
        %v6587 = vpop.f32.mrb[0].mxu0
        %v6588 = vadd.f32 %v6375, %v6587
        %v6589 = vpop.f32.mrb[0].mxu0
        %6590 = vmatprep.mubr.f32.mxu0 %v6411
        %6591 = vmatmul.mubr.f32.gmra.mrb[0].mxu0 %v6356
        %v6592 = vpop.f32.mrb[0].mxu0
        %v6593 = vadd.f32 %v6375, %v6592
        %v6594 = vpop.f32.mrb[0].mxu0
        %6595 = vmatprep.mubr.f32.mxu0 %v6413
        %6596 = vmatmul.mubr.f32.gmra.mrb[0].mxu0 %v6357
        %v6597 = vpop.f32.mrb[0].mxu0
        %v6598 = vadd.f32 %v6375, %v6597
        %v6599 = vpop.f32.mrb[0].mxu0
        %6600 = vmatprep.mubr.f32.mxu0 %v6415
        %6601 = vmatmul.mubr.f32.gmra.mrb[0].mxu0 %v6358
        %v6602 = vpop.f32.mrb[0].mxu0
        %v6603 = vadd.f32 %v6375, %v6602
        %v6604 = vpop.f32.mrb[0].mxu0
        %6605 = vmatprep.mubr.f32.mxu0 %v6417
        %6606 = vmatmul.mubr.f32.gmra.mrb[0].mxu0 %v6359
        %v6607 = vpop.f32.mrb[0].mxu0
        %v6608 = vadd.f32 %v6375, %v6607
        %v6609 = vpop.f32.mrb[0].mxu0
        %6610 = vmatprep.mubr.f32.mxu0 %v6419
        %6611 = vmatmul.mubr.f32.gmra.mrb[0].mxu0 %v6360
        %v6612 = vpop.f32.mrb[0].mxu0
        %v6613 = vadd.f32 %v6375, %v6612
        %v6614 = vpop.f32.mrb[0].mxu0
        %6615 = vmatprep.mubr.f32.mxu0 %v6421
        %6616 = vmatmul.mubr.f32.gmra.mrb[0].mxu0 %v6361
        %v6617 = vpop.f32.mrb[0].mxu0
        %v6618 = vadd.f32 %v6375, %v6617
        %v6619 = vpop.f32.mrb[0].mxu0
        %6620 = vmatprep.mubr.f32.mxu0 %v6423
        %6621 = vmatmul.mubr.f32.gmra.mrb[0].mxu0 %v6362
        %v6622 = vpop.f32.mrb[0].mxu0
        %v6623 = vadd.f32 %v6375, %v6622
        %v6624 = vpop.f32.mrb[0].mxu0
        %6625 = vmatprep.mubr.f32.mxu0 %v6425
        %6626 = vmatmul.mubr.f32.gmra.mrb[0].mxu0 %v6363
        %v6627 = vpop.f32.mrb[0].mxu0
        %v6628 = vadd.f32 %v6375, %v6627
        %v6629 = vpop.f32.mrb[0].mxu0
        %6630 = vmatprep.mubr.f32.mxu0 %v6427
        %6631 = vmatmul.mubr.f32.gmra.mrb[0].mxu0 %v6364
        %v6632 = vpop.f32.mrb[0].mxu0
        %v6633 = vadd.f32 %v6375, %v6632
        %v6634 = vpop.f32.mrb[0].mxu0
        %6635 = vmatprep.mubr.f32.mxu0 %v6429
        %6636 = vmatmul.mubr.f32.gmra.mrb[0].mxu0 %v6365
        %v6637 = vpop.f32.mrb[0].mxu0
        %v6638 = vadd.f32 %v6375, %v6637
        %v6639 = vpop.f32.mrb[0].mxu0
        %6640 = vmatprep.mubr.f32.mxu0 %v6431
        %6641 = vmatmul.mubr.f32.gmra.mrb[0].mxu0 %v6366
        %v6642 = vpop.f32.mrb[0].mxu0
        %v6643 = vadd.f32 %v6375, %v6642
        %v6644 = vpop.f32.mrb[0].mxu0
        %6645 = vmatprep.mubr.f32.mxu0 %v6433
        %6646 = vmatmul.mubr.f32.gmra.mrb[0].mxu0 %v6367
        %v6647 = vpop.f32.mrb[0].mxu0
        %v6648 = vadd.f32 %v6375, %v6647
        %v6649 = vpop.f32.mrb[0].mxu0
        %6650 = vmatprep.mubr.f32.mxu0 %v6435
        %6651 = vmatmul.mubr.f32.gmra.mrb[0].mxu0 %v6368
        %v6652 = vpop.f32.mrb[0].mxu0
        %v6653 = vadd.f32 %v6375, %v6652
        %v6654 = vpop.f32.mrb[0].mxu0
        %6655 = vmatprep.mubr.f32.mxu0 %v6437
        %6656 = vmatmul.mubr.f32.gmra.mrb[0].mxu0 %v6369
        %v6657 = vpop.f32.mrb[0].mxu0
        %v6658 = vadd.f32 %v6375, %v6657
        %v6659 = vpop.f32.mrb[0].mxu0
        %6660 = vmatprep.mubr.f32.mxu0 %v6439
        %6661 = vmatmul.mubr.f32.gmra.mrb[0].mxu0 %v6370
        %v6662 = vpop.f32.mrb[0].mxu0
        %v6663 = vadd.f32 %v6375, %v6662
        %v6664 = vpop.f32.mrb[0].mxu0
        %6665 = vdwg.mxu0
        %vm6666 = vcmask 97280
        %6667 = vst.msk [vmem:[%s318] sm:$0xff] %vm6666, %v6508
        %6668 = vst.msk [vmem:[%s318 + $0x8] sm:$0xff] %vm6666, %v6513
        %6669 = vst.msk [vmem:[%s318 + $0x10] sm:$0xff] %vm6666, %v6518
        %6670 = vst.msk [vmem:[%s318 + $0x18] sm:$0xff] %vm6666, %v6523
        %6671 = vst.msk [vmem:[%s318 + $0x20] sm:$0xff] %vm6666, %v6528
        %6672 = vst.msk [vmem:[%s318 + $0x28] sm:$0xff] %vm6666, %v6533
        %6673 = vst.msk [vmem:[%s318 + $0x30] sm:$0xff] %vm6666, %v6538
        %6674 = vst.msk [vmem:[%s318 + $0x38] sm:$0xff] %vm6666, %v6543
        %6675 = vst.msk [vmem:[%s318 + $0x40] sm:$0xff] %vm6666, %v6548
        %6676 = vst.msk [vmem:[%s318 + $0x48] sm:$0xff] %vm6666, %v6553
        %6677 = vst.msk [vmem:[%s318 + $0x50] sm:$0xff] %vm6666, %v6558
        %6678 = vst.msk [vmem:[%s318 + $0x58] sm:$0xff] %vm6666, %v6563
        %6679 = vst.msk [vmem:[%s318 + $0x60] sm:$0xff] %vm6666, %v6568
        %6680 = vst.msk [vmem:[%s318 + $0x68] sm:$0xff] %vm6666, %v6573
        %6681 = vst.msk [vmem:[%s318 + $0x70] sm:$0xff] %vm6666, %v6578
        %6682 = vst.msk [vmem:[%s318 + $0x78] sm:$0xff] %vm6666, %v6583
        %6683 = vst.msk [vmem:[%s318 + $0x80] sm:$0xff] %vm6666, %v6588
        %6684 = vst.msk [vmem:[%s318 + $0x88] sm:$0xff] %vm6666, %v6593
        %6685 = vst.msk [vmem:[%s318 + $0x90] sm:$0xff] %vm6666, %v6598
        %6686 = vst.msk [vmem:[%s318 + $0x98] sm:$0xff] %vm6666, %v6603
        %6687 = vst.msk [vmem:[%s318 + $0xa0] sm:$0xff] %vm6666, %v6608
        %6688 = vst.msk [vmem:[%s318 + $0xa8] sm:$0xff] %vm6666, %v6613
        %6689 = vst.msk [vmem:[%s318 + $0xb0] sm:$0xff] %vm6666, %v6618
        %6690 = vst.msk [vmem:[%s318 + $0xb8] sm:$0xff] %vm6666, %v6623
        %6691 = vst.msk [vmem:[%s318 + $0xc0] sm:$0xff] %vm6666, %v6628
        %6692 = vst.msk [vmem:[%s318 + $0xc8] sm:$0xff] %vm6666, %v6633
        %6693 = vst.msk [vmem:[%s318 + $0xd0] sm:$0xff] %vm6666, %v6638
        %6694 = vst.msk [vmem:[%s318 + $0xd8] sm:$0xff] %vm6666, %v6643
        %6695 = vst.msk [vmem:[%s318 + $0xe0] sm:$0xff] %vm6666, %v6648
        %6696 = vst.msk [vmem:[%s318 + $0xe8] sm:$0xff] %vm6666, %v6653
        %6697 = vst.msk [vmem:[%s318 + $0xf0] sm:$0xff] %vm6666, %v6658
        %6698 = vst.msk [vmem:[%s318 + $0xf8] sm:$0xff] %vm6666, %v6663
        %p6699 = scmp.lt.s32.totalorder %s20, 1
        %s6700 = scalar_select %p6699, %s20, 1
        %s6701 = smul.addr %s6700, 32
        %s6702 = smul.addr %s6701, 8
        %s6703 = scalar_lea.vmem %s7, %s6702
        // Predicated region
        $region61: #{srnet_forward.1} parent=47 // pred_check
          %p6704 = pneg %p190
        $region62: #{srnet_forward.1} parent=47 // pred_check_branch
          %6706 = sbr.rel (%p6704) target = $region64
        $region63: #{srnet_forward.1} parent=47 // pred_region
          _
        $region64: #{srnet_forward.1} parent=47 // pred_fallthru
          _
      $region48: #{srnet_forward.1} parent=5 // pred_fallthru
        _
      %p6707 = scmp.le.s32.totalorder 2, %s15
      // Predicated region
      $region65: #{srnet_forward.1} parent=5 // pred_check
        %p6708 = pneg %p6707
      $region66: #{srnet_forward.1} parent=5 // pred_check_branch
        %6710 = sbr.rel (%p6708) target = $region68
      $region67: #{srnet_forward.1} parent=5 // pred_region
        %s6711 = ssub.s32 %s15, 2
        // Predicated region
        $region69: #{srnet_forward.1} parent=67 // pred_check
          %p6712 = pneg %p196
        $region70: #{srnet_forward.1} parent=67 // pred_check_branch
          %6714 = sbr.rel (%p6712) target = $region72
        $region71: #{srnet_forward.1} parent=67 // pred_region
          %p6715 = scmp.lt.s32.totalorder %s21, 1
          %s6716 = scalar_select %p6715, %s21, 1
          %s6717 = smul.addr %s6716, 32
          %s6718 = smul.addr %s6717, 8
          %s6719 = scalar_lea.vmem %s7, %s6718
        $region72: #{srnet_forward.1} parent=67 // pred_fallthru
          _
      $region68: #{srnet_forward.1} parent=5 // pred_fallthru
        _
    $region6: #{srnet_forward.1} parent=1 // loop_footer
      %s19 = sadd.s32 1, %s15
    $region7: #{srnet_forward.1} parent=1 // loop_footer_branch
      %14 = sbr.rel target = $region3
    $region8: #{srnet_forward.1} parent=1 // loop_exit
      _
    %6720 = vsyncpa [#allocation4], 1
    %s6721 = scalar_lea.sflag [#allocation4], 1
    %6722 = vsyncpa %s6721, 1
    %6723 = vsyncpa [#allocation6], 1

</llo_original>
